<compile_context>
chip_gen: v7x
topology: tpu7x:2x2x1
jax: 0.10.0
libtpu: 0.0.40
codegen_flags: <defaults>
</compile_context>

<pallas_src>
import functools

import numpy as np
import jax
import jax.numpy as jnp
from jax import lax
from jax.experimental import pallas as pl
from jax.experimental.pallas import tpu as pltpu


# ----------------------------------------------------------------------------
# Fused forward kernel: hyper-net linear -> conv stack -> flatten -> FC stack
# ----------------------------------------------------------------------------
def _fused_forward_kernel(layer_dims, num_hidden_fcs, npadf, wrow, off,
                          emb_ref, img_ref, mask_ref, wgen_ref, bgen_ref,
                          *fc_and_out):
    """Whole forward for ONE example (one grid step).

    emb_ref : (1, 1, E)        utterance embedding
    img_ref : (1, Cin0, WIDE)  padded-flat input image, WIDE = npadf + 2*off
    mask_ref: (1, npadf)       1.0 at valid columns q = y*(W+2)+x (y<H, x<W)
    wgen_ref: (E, TOT)         all layers' generator weights (kernel col order)
    bgen_ref: (1, TOT)
    fc refs : w0, b0, w1, b1, ...  (w0 is the flatten-expanded first FC weight)
    out ref : (1, 1, 1)
    """
    fc_refs = fc_and_out[:-1]
    o_ref = fc_and_out[-1]
    f32 = jnp.float32

    emb = emb_ref[0]                                   # (1, E)
    act = img_ref[0]                                   # (Cin0, WIDE)
    mask = mask_ref[...]                               # (1, npadf)
    ones_row = jnp.ones((1, npadf), f32)
    shifts = [ky * wrow + kx for ky in range(3) for kx in range(3)]

    # --- all per-example conv weights + biases in ONE MXU matmul -------------
    flat = jnp.dot(emb, wgen_ref[...],
                   preferred_element_type=f32) + bgen_ref[...]     # (1, TOT)

    col = 0
    y = None
    n_layers = len(layer_dims)
    for li, (cin, cout) in enumerate(layer_dims):
        blk = 9 * cin + 1                              # 9 taps * cin + bias
        # (Cout, 9*Cin+1) weight matrix (bias in last column); built from lane
        # slices of `flat` (column order fixed at init, so no reshape needed).
        wmat = jnp.concatenate(
            [flat[:, col + o * blk: col + (o + 1) * blk] for o in range(cout)],
            axis=0)                                                # (cout, blk)
        # im2col patches: 9 lane-shifted copies of the padded-flat activation
        # plus a ones row for the bias.
        patches = jnp.concatenate(
            [act[:, s: s + npadf] for s in shifts] + [ones_row],
            axis=0)                                                # (blk, npadf)
        # Single MXU matmul per conv layer, lane-dense (npadf=324) output.
        y = jnp.dot(wmat, patches, preferred_element_type=f32)     # (cout, npadf)
        # post_cnn ReLU, then zero the out-of-image columns: this *is* the
        # padding=1 of the next layer, done entirely in VMEM.
        y = jnp.maximum(y, 0.0) * mask
        if li + 1 < n_layers:
            zpad = jnp.zeros((cout, off), f32)
            act = jnp.concatenate([zpad, y, zpad], axis=1)         # (cout, WIDE)
        col += cout * blk

    # --- flatten + OutputFCs (flatten permutation folded into fc w0) ---------
    cout_last = layer_dims[-1][1]
    feat = jnp.concatenate([y[c: c + 1, :] for c in range(cout_last)],
                           axis=1)                                 # (1, cout*npadf)
    h = feat                                                       # dropout p=0 -> identity
    for j in range(num_hidden_fcs):
        w_ref, b_ref = fc_refs[2 * j], fc_refs[2 * j + 1]
        h = jnp.dot(h, w_ref[...], preferred_element_type=f32) + b_ref[...]
        h = jnp.maximum(h, 0.0)
    w_ref, b_ref = fc_refs[-2], fc_refs[-1]
    logit = jnp.dot(h, w_ref[...], preferred_element_type=f32) + b_ref[...]  # (1,1)
    o_ref[0] = logit.astype(o_ref.dtype)


# ----------------------------------------------------------------------------
# Parameters: canonical (PyTorch-layout) init + one-time kernel re-layout
# ----------------------------------------------------------------------------
def init_params(key, embedding_size, grid_planes, grid_size, cnn_sizes, num_output_fcs):
    """Canonical parameters (PyTorch layout) - consumed by the pure-JAX reference."""
    params = {"gen": [], "fcs": []}
    keys = jax.random.split(key, 2 * (len(cnn_sizes) + num_output_fcs + 1) + 2)
    ki = 0
    cin = grid_planes
    for cout in cnn_sizes:
        odim = cout * cin * 9 + cout                   # OIHW conv weights + bias
        wg = jax.random.normal(keys[ki], (embedding_size, odim), jnp.float32)
        wg = wg * (0.1 / np.sqrt(embedding_size)); ki += 1
        bg = 0.01 * jax.random.normal(keys[ki], (odim,), jnp.float32); ki += 1
        params["gen"].append((wg, bg))
        cin = cout
    in_dim = cnn_sizes[-1] * grid_size * grid_size     # no max-pooling in this config
    for _ in range(num_output_fcs):
        w = jax.random.normal(keys[ki], (in_dim, embedding_size), jnp.float32)
        w = w / np.sqrt(in_dim); ki += 1
        params["fcs"].append((w, jnp.zeros((embedding_size,), jnp.float32)))
        in_dim = embedding_size
    w = jax.random.normal(keys[ki], (in_dim, 1), jnp.float32) / np.sqrt(in_dim); ki += 1
    params["fcs"].append((w, jnp.zeros((1,), jnp.float32)))
    return params


def prepare_kernel_params(params, *, grid_planes, grid_size, cnn_sizes):
    """One-time re-layout of canonical params into the fused-kernel layout.

    * Generator weights: columns permuted to per-out-channel blocks
      [tap-major, channel-minor taps | bias] and concatenated across layers.
    * First FC weight: rows scattered from NCHW-flatten order (c*H*W + y*W + x)
      to the kernel's padded-flat order (c*NPADF + y*(W+2) + x); rows mapping to
      padding columns stay zero -> folds flatten + transpose into the weights.
    """
    H = W = grid_size
    wrow = W + 2
    npadf = (H + 2) * wrow

    wgen_cols, bgen_cols = [], []
    cin = grid_planes
    for (wg, bg), cout in zip(params["gen"], cnn_sizes):
        blk = 9 * cin + 1
        src = np.empty((cout * blk,), np.int32)
        for o in range(cout):
            for t in range(9):                         # t = ky*3 + kx
                for i in range(cin):
                    src[o * blk + t * cin + i] = o * cin * 9 + i * 9 + t
            src[o * blk + 9 * cin] = cout * cin * 9 + o
        src = jnp.asarray(src)
        wgen_cols.append(jnp.take(wg, src, axis=1))
        bgen_cols.append(jnp.take(bg, src, axis=0))
        cin = cout
    wgen = jnp.concatenate(wgen_cols, axis=1)                       # (E, TOT)
    bgen = jnp.concatenate(bgen_cols, axis=0)[None, :]              # (1, TOT)

    q = np.arange(npadf)
    mask = ((q % wrow < W) & (q // wrow < H)).astype(np.float32)[None, :]

    cL = cnn_sizes[-1]
    w1, b1 = params["fcs"][0]
    c_i, y_i, x_i = np.meshgrid(np.arange(cL), np.arange(H), np.arange(W),
                                indexing="ij")
    dst = jnp.asarray((c_i * npadf + y_i * wrow + x_i).reshape(-1))
    w1e = jnp.zeros((cL * npadf, w1.shape[1]), jnp.float32).at[dst].set(w1)
    fc_ws = [w1e] + [w for w, _ in params["fcs"][1:]]
    fc_bs = [b1[None, :]] + [b[None, :] for _, b in params["fcs"][1:]]

    return {"wgen": wgen, "bgen": bgen, "mask": jnp.asarray(mask),
            "fc_ws": fc_ws, "fc_bs": fc_bs}


# ----------------------------------------------------------------------------
# Forward wrappers
# ----------------------------------------------------------------------------
def pallas_forward(kparams, utts_emb, images, *, grid_planes, grid_size, cnn_sizes):
    B, E = utts_emb.shape
    H = W = grid_size
    wrow = W + 2
    npadf = (H + 2) * wrow
    off = wrow + 1
    wide = npadf + 2 * off

    layer_dims = []
    cin = grid_planes
    for cout in cnn_sizes:
        layer_dims.append((cin, cout))
        cin = cout
    num_hidden_fcs = len(kparams["fc_ws"]) - 1

    # One-time layout of the (tiny, ~4KiB) input image into padded-flat-wide
    # rows; all intermediate-layer padding happens inside the kernel in VMEM.
    imgs = jnp.pad(images.astype(jnp.float32), ((0, 0), (0, 0), (1, 1), (1, 1)))
    imgs = imgs.reshape(B, grid_planes, npadf)
    imgs = jnp.pad(imgs, ((0, 0), (0, 0), (0, wide - npadf)))
    utts3 = utts_emb.astype(jnp.float32)[:, None, :]                # (B, 1, E)

    fc_args, fc_specs = [], []
    for w, b in zip(kparams["fc_ws"], kparams["fc_bs"]):
        fc_args += [w, b]
        fc_specs += [pl.BlockSpec(w.shape, lambda bi: (0, 0)),
                     pl.BlockSpec(b.shape, lambda bi: (0, 0))]

    kernel = functools.partial(_fused_forward_kernel, tuple(layer_dims),
                               num_hidden_fcs, npadf, wrow, off)

    out = pl.pallas_call(
        kernel,
        out_shape=jax.ShapeDtypeStruct((B, 1, 1), jnp.float32),
        grid=(B,),
        in_specs=[
            pl.BlockSpec((1, 1, E), lambda bi: (bi, 0, 0)),
            pl.BlockSpec((1, grid_planes, wide), lambda bi: (bi, 0, 0)),
            pl.BlockSpec(kparams["mask"].shape, lambda bi: (0, 0)),
            pl.BlockSpec(kparams["wgen"].shape, lambda bi: (0, 0)),
            pl.BlockSpec(kparams["bgen"].shape, lambda bi: (0, 0)),
        ] + fc_specs,
        out_specs=pl.BlockSpec((1, 1, 1), lambda bi: (bi, 0, 0)),
        compiler_params=pltpu.CompilerParams(dimension_semantics=("parallel",)),
    )(utts3, imgs, kparams["mask"], kparams["wgen"], kparams["bgen"], *fc_args)
    return out.reshape(B, 1)


def reference_forward(params, utts_emb, images):
    """Pure-JAX reference with float32-accurate matmuls (same math, canonical params)."""
    PREC = lax.Precision.HIGHEST
    B = utts_emb.shape[0]
    x = jnp.transpose(images, (0, 2, 3, 1))                         # NCHW -> NHWC
    for wg, bg in params["gen"]:
        cin = x.shape[-1]
        flat = jnp.dot(utts_emb, wg, precision=PREC) + bg
        cout = flat.shape[1] // (cin * 9 + 1)
        wconv = flat[:, :cout * cin * 9].reshape(B, cout, cin, 3, 3)
        bconv = flat[:, cout * cin * 9:]
        w_hwio = jnp.transpose(wconv, (0, 3, 4, 2, 1))               # (B,3,3,Cin,Cout)
        H, W = x.shape[1], x.shape[2]
        xpad = jnp.pad(x, ((0, 0), (1, 1), (1, 1), (0, 0)))
        acc = jnp.zeros((B, H, W, cout), jnp.float32)
        for dy in range(3):
            for dx in range(3):
                acc = acc + jnp.einsum("bhwi,bio->bhwo",
                                       xpad[:, dy:dy + H, dx:dx + W, :],
                                       w_hwio[:, dy, dx], precision=PREC)
        x = jnp.maximum(acc + bconv[:, None, None, :], 0.0)
    feat = jnp.transpose(x, (0, 3, 1, 2)).reshape(B, -1)             # NCHW flatten
    h = feat
    for w, b in params["fcs"][:-1]:
        h = jnp.maximum(jnp.dot(h, w, precision=PREC) + b, 0.0)
    w, b = params["fcs"][-1]
    return jnp.dot(h, w, precision=PREC) + b


# ----------------------------------------------------------------------------
if __name__ == "__main__":
    B = 2
    embedding_size = 32
    grid_planes = 4
    grid_size = 16
    cnn_sizes = [8, 8]
    num_output_fcs = 2

    key = jax.random.PRNGKey(0)
    k_emb, k_img, k_par = jax.random.split(key, 3)
    utts_emb = jax.random.normal(k_emb, (B, embedding_size), jnp.float32)
    images = jax.random.normal(k_img, (B, grid_planes, grid_size, grid_size),
                               jnp.float32)

    params = init_params(k_par, embedding_size, grid_planes, grid_size,
                         cnn_sizes, num_output_fcs)
    kparams = prepare_kernel_params(params, grid_planes=grid_planes,
                                    grid_size=grid_size, cnn_sizes=cnn_sizes)

    fwd = jax.jit(functools.partial(pallas_forward, grid_planes=grid_planes,
                                    grid_size=grid_size,
                                    cnn_sizes=tuple(cnn_sizes)))
    out = jax.block_until_ready(fwd(kparams, utts_emb, images))
    assert out.shape == (B, 1), out.shape

    ref = reference_forward(params, utts_emb, images)
    # Tightened vs. the previous 2e-2: reference forced to HIGHEST precision;
    # remaining slack only covers the MXU's default f32 matmul precision.
    assert jnp.allclose(out, ref, rtol=5e-3, atol=5e-3), (out, ref)

    print("KERNEL_OK")
</pallas_src>

<mosaic_0001>
module attributes {stable_mosaic.version = 11 : i64} {
  func.func @_fused_forward_kernel(%arg0: i32, %arg1: memref<1x1x32xf32, #tpu.memory_space<vmem>>, %arg2: memref<1x4x362xf32, #tpu.memory_space<vmem>>, %arg3: memref<1x324xf32, #tpu.memory_space<vmem>>, %arg4: memref<32x880xf32, #tpu.memory_space<vmem>>, %arg5: memref<1x880xf32, #tpu.memory_space<vmem>>, %arg6: memref<2592x32xf32, #tpu.memory_space<vmem>>, %arg7: memref<1x32xf32, #tpu.memory_space<vmem>>, %arg8: memref<32x32xf32, #tpu.memory_space<vmem>>, %arg9: memref<1x32xf32, #tpu.memory_space<vmem>>, %arg10: memref<32x1xf32, #tpu.memory_space<vmem>>, %arg11: memref<1x1xf32, #tpu.memory_space<vmem>>, %arg12: memref<1x1x1xf32, #tpu.memory_space<vmem>>) attributes {dimension_semantics = [#tpu.dimension_semantics<parallel>], iteration_bounds = array<i64: 2>, scalar_prefetch = 0 : i64, scratch_operands = 0 : i64, tpu.core_type = #tpu.core_type<tc>, window_params = [{transform_indices = @transform_0, window_bounds = array<i64: 1, 1, 32>}, {transform_indices = @transform_1, window_bounds = array<i64: 1, 4, 362>}, {pipeline_mode = #tpu.pipeline_mode<synchronous>, transform_indices = @transform_2, window_bounds = array<i64: 1, 324>}, {pipeline_mode = #tpu.pipeline_mode<synchronous>, transform_indices = @transform_3, window_bounds = array<i64: 32, 880>}, {pipeline_mode = #tpu.pipeline_mode<synchronous>, transform_indices = @transform_4, window_bounds = array<i64: 1, 880>}, {pipeline_mode = #tpu.pipeline_mode<synchronous>, transform_indices = @transform_5, window_bounds = array<i64: 2592, 32>}, {pipeline_mode = #tpu.pipeline_mode<synchronous>, transform_indices = @transform_6, window_bounds = array<i64: 1, 32>}, {pipeline_mode = #tpu.pipeline_mode<synchronous>, transform_indices = @transform_7, window_bounds = array<i64: 32, 32>}, {pipeline_mode = #tpu.pipeline_mode<synchronous>, transform_indices = @transform_8, window_bounds = array<i64: 1, 32>}, {pipeline_mode = #tpu.pipeline_mode<synchronous>, transform_indices = @transform_9, window_bounds = array<i64: 32, 1>}, {pipeline_mode = #tpu.pipeline_mode<synchronous>, transform_indices = @transform_10, window_bounds = array<i64: 1, 1>}, {transform_indices = @transform_11, window_bounds = array<i64: 1, 1, 1>}]} {
    %c0 = arith.constant 0 : index
    %c0_0 = arith.constant 0 : index
    %c0_1 = arith.constant 0 : index
    %0 = vector.load %arg1[%c0, %c0_0, %c0_1] : memref<1x1x32xf32, #tpu.memory_space<vmem>>, vector<1x1x32xf32>
    %1 = vector.shape_cast %0 : vector<1x1x32xf32> to vector<1x32xf32>
    %c0_2 = arith.constant 0 : index
    %c0_3 = arith.constant 0 : index
    %c0_4 = arith.constant 0 : index
    %2 = vector.load %arg2[%c0_2, %c0_3, %c0_4] : memref<1x4x362xf32, #tpu.memory_space<vmem>>, vector<1x4x362xf32>
    %3 = vector.shape_cast %2 : vector<1x4x362xf32> to vector<4x362xf32>
    %c0_5 = arith.constant 0 : index
    %c0_6 = arith.constant 0 : index
    %4 = vector.load %arg3[%c0_5, %c0_6] : memref<1x324xf32, #tpu.memory_space<vmem>>, vector<1x324xf32>
    %cst = arith.constant 1.000000e+00 : f32
    %5 = vector.broadcast %cst : f32 to vector<1x324xf32>
    %c0_7 = arith.constant 0 : index
    %c0_8 = arith.constant 0 : index
    %6 = vector.load %arg4[%c0_7, %c0_8] : memref<32x880xf32, #tpu.memory_space<vmem>>, vector<32x880xf32>
    %cst_9 = arith.constant dense<0.000000e+00> : vector<1x880xf32>
    %7 = tpu.matmul %1, %6, %cst_9 {dimension_numbers = #tpu.dot_dimension_numbers<[1], [0], [0], [1], [0, 0, 1, 1], [], []>} : vector<1x32xf32>, vector<32x880xf32>, vector<1x880xf32> -> vector<1x880xf32>
    %c0_10 = arith.constant 0 : index
    %c0_11 = arith.constant 0 : index
    %8 = vector.load %arg5[%c0_10, %c0_11] : memref<1x880xf32, #tpu.memory_space<vmem>>, vector<1x880xf32>
    %9 = arith.addf %7, %8 : vector<1x880xf32>
    %10 = vector.extract_strided_slice %9 {offsets = [0, 0], sizes = [1, 37], strides = [1, 1]} : vector<1x880xf32> to vector<1x37xf32>
    %11 = vector.extract_strided_slice %9 {offsets = [0, 37], sizes = [1, 37], strides = [1, 1]} : vector<1x880xf32> to vector<1x37xf32>
    %12 = vector.extract_strided_slice %9 {offsets = [0, 74], sizes = [1, 37], strides = [1, 1]} : vector<1x880xf32> to vector<1x37xf32>
    %13 = vector.extract_strided_slice %9 {offsets = [0, 111], sizes = [1, 37], strides = [1, 1]} : vector<1x880xf32> to vector<1x37xf32>
    %14 = vector.extract_strided_slice %9 {offsets = [0, 148], sizes = [1, 37], strides = [1, 1]} : vector<1x880xf32> to vector<1x37xf32>
    %15 = vector.extract_strided_slice %9 {offsets = [0, 185], sizes = [1, 37], strides = [1, 1]} : vector<1x880xf32> to vector<1x37xf32>
    %16 = vector.extract_strided_slice %9 {offsets = [0, 222], sizes = [1, 37], strides = [1, 1]} : vector<1x880xf32> to vector<1x37xf32>
    %17 = vector.extract_strided_slice %9 {offsets = [0, 259], sizes = [1, 37], strides = [1, 1]} : vector<1x880xf32> to vector<1x37xf32>
    %18 = tpu.concatenate %10, %11, %12, %13, %14, %15, %16, %17 in 0 : vector<1x37xf32>, vector<1x37xf32>, vector<1x37xf32>, vector<1x37xf32>, vector<1x37xf32>, vector<1x37xf32>, vector<1x37xf32>, vector<1x37xf32> -> vector<8x37xf32>
    %19 = vector.extract_strided_slice %3 {offsets = [0, 0], sizes = [4, 324], strides = [1, 1]} : vector<4x362xf32> to vector<4x324xf32>
    %20 = vector.extract_strided_slice %3 {offsets = [0, 1], sizes = [4, 324], strides = [1, 1]} : vector<4x362xf32> to vector<4x324xf32>
    %21 = vector.extract_strided_slice %3 {offsets = [0, 2], sizes = [4, 324], strides = [1, 1]} : vector<4x362xf32> to vector<4x324xf32>
    %22 = vector.extract_strided_slice %3 {offsets = [0, 18], sizes = [4, 324], strides = [1, 1]} : vector<4x362xf32> to vector<4x324xf32>
    %23 = vector.extract_strided_slice %3 {offsets = [0, 19], sizes = [4, 324], strides = [1, 1]} : vector<4x362xf32> to vector<4x324xf32>
    %24 = vector.extract_strided_slice %3 {offsets = [0, 20], sizes = [4, 324], strides = [1, 1]} : vector<4x362xf32> to vector<4x324xf32>
    %25 = vector.extract_strided_slice %3 {offsets = [0, 36], sizes = [4, 324], strides = [1, 1]} : vector<4x362xf32> to vector<4x324xf32>
    %26 = vector.extract_strided_slice %3 {offsets = [0, 37], sizes = [4, 324], strides = [1, 1]} : vector<4x362xf32> to vector<4x324xf32>
    %27 = vector.extract_strided_slice %3 {offsets = [0, 38], sizes = [4, 324], strides = [1, 1]} : vector<4x362xf32> to vector<4x324xf32>
    %28 = tpu.concatenate %19, %20, %21, %22, %23, %24, %25, %26, %27, %5 in 0 : vector<4x324xf32>, vector<4x324xf32>, vector<4x324xf32>, vector<4x324xf32>, vector<4x324xf32>, vector<4x324xf32>, vector<4x324xf32>, vector<4x324xf32>, vector<4x324xf32>, vector<1x324xf32> -> vector<37x324xf32>
    %cst_12 = arith.constant dense<0.000000e+00> : vector<8x324xf32>
    %29 = tpu.matmul %18, %28, %cst_12 {dimension_numbers = #tpu.dot_dimension_numbers<[1], [0], [0], [1], [0, 0, 1, 1], [], []>} : vector<8x37xf32>, vector<37x324xf32>, vector<8x324xf32> -> vector<8x324xf32>
    %cst_13 = arith.constant 0.000000e+00 : f32
    %30 = vector.broadcast %cst_13 : f32 to vector<8x324xf32>
    %31 = arith.maximumf %29, %30 : vector<8x324xf32>
    %32 = vector.broadcast %4 : vector<1x324xf32> to vector<8x324xf32>
    %33 = arith.mulf %31, %32 : vector<8x324xf32>
    %cst_14 = arith.constant 0.000000e+00 : f32
    %34 = vector.broadcast %cst_14 : f32 to vector<8x19xf32>
    %35 = tpu.concatenate %34, %33, %34 in 1 : vector<8x19xf32>, vector<8x324xf32>, vector<8x19xf32> -> vector<8x362xf32>
    %36 = vector.extract_strided_slice %9 {offsets = [0, 296], sizes = [1, 73], strides = [1, 1]} : vector<1x880xf32> to vector<1x73xf32>
    %37 = vector.extract_strided_slice %9 {offsets = [0, 369], sizes = [1, 73], strides = [1, 1]} : vector<1x880xf32> to vector<1x73xf32>
    %38 = vector.extract_strided_slice %9 {offsets = [0, 442], sizes = [1, 73], strides = [1, 1]} : vector<1x880xf32> to vector<1x73xf32>
    %39 = vector.extract_strided_slice %9 {offsets = [0, 515], sizes = [1, 73], strides = [1, 1]} : vector<1x880xf32> to vector<1x73xf32>
    %40 = vector.extract_strided_slice %9 {offsets = [0, 588], sizes = [1, 73], strides = [1, 1]} : vector<1x880xf32> to vector<1x73xf32>
    %41 = vector.extract_strided_slice %9 {offsets = [0, 661], sizes = [1, 73], strides = [1, 1]} : vector<1x880xf32> to vector<1x73xf32>
    %42 = vector.extract_strided_slice %9 {offsets = [0, 734], sizes = [1, 73], strides = [1, 1]} : vector<1x880xf32> to vector<1x73xf32>
    %43 = vector.extract_strided_slice %9 {offsets = [0, 807], sizes = [1, 73], strides = [1, 1]} : vector<1x880xf32> to vector<1x73xf32>
    %44 = tpu.concatenate %36, %37, %38, %39, %40, %41, %42, %43 in 0 : vector<1x73xf32>, vector<1x73xf32>, vector<1x73xf32>, vector<1x73xf32>, vector<1x73xf32>, vector<1x73xf32>, vector<1x73xf32>, vector<1x73xf32> -> vector<8x73xf32>
    %45 = vector.extract_strided_slice %35 {offsets = [0, 0], sizes = [8, 324], strides = [1, 1]} : vector<8x362xf32> to vector<8x324xf32>
    %46 = vector.extract_strided_slice %35 {offsets = [0, 1], sizes = [8, 324], strides = [1, 1]} : vector<8x362xf32> to vector<8x324xf32>
    %47 = vector.extract_strided_slice %35 {offsets = [0, 2], sizes = [8, 324], strides = [1, 1]} : vector<8x362xf32> to vector<8x324xf32>
    %48 = vector.extract_strided_slice %35 {offsets = [0, 18], sizes = [8, 324], strides = [1, 1]} : vector<8x362xf32> to vector<8x324xf32>
    %49 = vector.extract_strided_slice %35 {offsets = [0, 19], sizes = [8, 324], strides = [1, 1]} : vector<8x362xf32> to vector<8x324xf32>
    %50 = vector.extract_strided_slice %35 {offsets = [0, 20], sizes = [8, 324], strides = [1, 1]} : vector<8x362xf32> to vector<8x324xf32>
    %51 = vector.extract_strided_slice %35 {offsets = [0, 36], sizes = [8, 324], strides = [1, 1]} : vector<8x362xf32> to vector<8x324xf32>
    %52 = vector.extract_strided_slice %35 {offsets = [0, 37], sizes = [8, 324], strides = [1, 1]} : vector<8x362xf32> to vector<8x324xf32>
    %53 = vector.extract_strided_slice %35 {offsets = [0, 38], sizes = [8, 324], strides = [1, 1]} : vector<8x362xf32> to vector<8x324xf32>
    %54 = tpu.concatenate %45, %46, %47, %48, %49, %50, %51, %52, %53, %5 in 0 : vector<8x324xf32>, vector<8x324xf32>, vector<8x324xf32>, vector<8x324xf32>, vector<8x324xf32>, vector<8x324xf32>, vector<8x324xf32>, vector<8x324xf32>, vector<8x324xf32>, vector<1x324xf32> -> vector<73x324xf32>
    %cst_15 = arith.constant dense<0.000000e+00> : vector<8x324xf32>
    %55 = tpu.matmul %44, %54, %cst_15 {dimension_numbers = #tpu.dot_dimension_numbers<[1], [0], [0], [1], [0, 0, 1, 1], [], []>} : vector<8x73xf32>, vector<73x324xf32>, vector<8x324xf32> -> vector<8x324xf32>
    %cst_16 = arith.constant 0.000000e+00 : f32
    %56 = vector.broadcast %cst_16 : f32 to vector<8x324xf32>
    %57 = arith.maximumf %55, %56 : vector<8x324xf32>
    %58 = vector.broadcast %4 : vector<1x324xf32> to vector<8x324xf32>
    %59 = arith.mulf %57, %58 : vector<8x324xf32>
    %60 = vector.extract_strided_slice %59 {offsets = [0, 0], sizes = [1, 324], strides = [1, 1]} : vector<8x324xf32> to vector<1x324xf32>
    %61 = vector.extract_strided_slice %59 {offsets = [1, 0], sizes = [1, 324], strides = [1, 1]} : vector<8x324xf32> to vector<1x324xf32>
    %62 = vector.extract_strided_slice %59 {offsets = [2, 0], sizes = [1, 324], strides = [1, 1]} : vector<8x324xf32> to vector<1x324xf32>
    %63 = vector.extract_strided_slice %59 {offsets = [3, 0], sizes = [1, 324], strides = [1, 1]} : vector<8x324xf32> to vector<1x324xf32>
    %64 = vector.extract_strided_slice %59 {offsets = [4, 0], sizes = [1, 324], strides = [1, 1]} : vector<8x324xf32> to vector<1x324xf32>
    %65 = vector.extract_strided_slice %59 {offsets = [5, 0], sizes = [1, 324], strides = [1, 1]} : vector<8x324xf32> to vector<1x324xf32>
    %66 = vector.extract_strided_slice %59 {offsets = [6, 0], sizes = [1, 324], strides = [1, 1]} : vector<8x324xf32> to vector<1x324xf32>
    %67 = vector.extract_strided_slice %59 {offsets = [7, 0], sizes = [1, 324], strides = [1, 1]} : vector<8x324xf32> to vector<1x324xf32>
    %68 = tpu.concatenate %60, %61, %62, %63, %64, %65, %66, %67 in 1 : vector<1x324xf32>, vector<1x324xf32>, vector<1x324xf32>, vector<1x324xf32>, vector<1x324xf32>, vector<1x324xf32>, vector<1x324xf32>, vector<1x324xf32> -> vector<1x2592xf32>
    %c0_17 = arith.constant 0 : index
    %c0_18 = arith.constant 0 : index
    %69 = vector.load %arg6[%c0_17, %c0_18] : memref<2592x32xf32, #tpu.memory_space<vmem>>, vector<2592x32xf32>
    %cst_19 = arith.constant dense<0.000000e+00> : vector<1x32xf32>
    %70 = tpu.matmul %68, %69, %cst_19 {dimension_numbers = #tpu.dot_dimension_numbers<[1], [0], [0], [1], [0, 0, 1, 1], [], []>} : vector<1x2592xf32>, vector<2592x32xf32>, vector<1x32xf32> -> vector<1x32xf32>
    %c0_20 = arith.constant 0 : index
    %c0_21 = arith.constant 0 : index
    %71 = vector.load %arg7[%c0_20, %c0_21] : memref<1x32xf32, #tpu.memory_space<vmem>>, vector<1x32xf32>
    %72 = arith.addf %70, %71 : vector<1x32xf32>
    %cst_22 = arith.constant 0.000000e+00 : f32
    %73 = vector.broadcast %cst_22 : f32 to vector<1x32xf32>
    %74 = arith.maximumf %72, %73 : vector<1x32xf32>
    %c0_23 = arith.constant 0 : index
    %c0_24 = arith.constant 0 : index
    %75 = vector.load %arg8[%c0_23, %c0_24] : memref<32x32xf32, #tpu.memory_space<vmem>>, vector<32x32xf32>
    %cst_25 = arith.constant dense<0.000000e+00> : vector<1x32xf32>
    %76 = tpu.matmul %74, %75, %cst_25 {dimension_numbers = #tpu.dot_dimension_numbers<[1], [0], [0], [1], [0, 0, 1, 1], [], []>} : vector<1x32xf32>, vector<32x32xf32>, vector<1x32xf32> -> vector<1x32xf32>
    %c0_26 = arith.constant 0 : index
    %c0_27 = arith.constant 0 : index
    %77 = vector.load %arg9[%c0_26, %c0_27] : memref<1x32xf32, #tpu.memory_space<vmem>>, vector<1x32xf32>
    %78 = arith.addf %76, %77 : vector<1x32xf32>
    %cst_28 = arith.constant 0.000000e+00 : f32
    %79 = vector.broadcast %cst_28 : f32 to vector<1x32xf32>
    %80 = arith.maximumf %78, %79 : vector<1x32xf32>
    %c0_29 = arith.constant 0 : index
    %c0_30 = arith.constant 0 : index
    %81 = vector.load %arg10[%c0_29, %c0_30] : memref<32x1xf32, #tpu.memory_space<vmem>>, vector<32x1xf32>
    %cst_31 = arith.constant dense<0.000000e+00> : vector<1x1xf32>
    %82 = tpu.matmul %80, %81, %cst_31 {dimension_numbers = #tpu.dot_dimension_numbers<[1], [0], [0], [1], [0, 0, 1, 1], [], []>} : vector<1x32xf32>, vector<32x1xf32>, vector<1x1xf32> -> vector<1x1xf32>
    %c0_32 = arith.constant 0 : index
    %c0_33 = arith.constant 0 : index
    %83 = vector.load %arg11[%c0_32, %c0_33] : memref<1x1xf32, #tpu.memory_space<vmem>>, vector<1x1xf32>
    %84 = arith.addf %82, %83 : vector<1x1xf32>
    %c0_34 = arith.constant 0 : index
    %c0_35 = arith.constant 0 : index
    %c0_36 = arith.constant 0 : index
    %85 = vector.load %arg12[%c0_34, %c0_35, %c0_36] : memref<1x1x1xf32, #tpu.memory_space<vmem>>, vector<1x1x1xf32>
    %86 = vector.shape_cast %85 : vector<1x1x1xf32> to vector<1x1xf32>
    %87 = vector.shape_cast %84 : vector<1x1xf32> to vector<1x1x1xf32>
    tpu.vector_store %arg12[%c0_34, %c0_35, %c0_36], %87 {strides = array<i32>} : memref<1x1x1xf32, #tpu.memory_space<vmem>>, vector<1x1x1xf32>,
    return
  }
  func.func @transform_0(%arg0: i32) -> (i32, i32, i32) {
    %c0_i32 = arith.constant 0 : i32
    %c0_i32_0 = arith.constant 0 : i32
    %c0_i32_1 = arith.constant 0 : i32
    return %arg0, %c0_i32, %c0_i32_0 : i32, i32, i32
  }
  func.func @transform_1(%arg0: i32) -> (i32, i32, i32) {
    %c0_i32 = arith.constant 0 : i32
    %c0_i32_0 = arith.constant 0 : i32
    %c0_i32_1 = arith.constant 0 : i32
    return %arg0, %c0_i32, %c0_i32_0 : i32, i32, i32
  }
  func.func @transform_2(%arg0: i32) -> (i32, i32) {
    %c0_i32 = arith.constant 0 : i32
    %c0_i32_0 = arith.constant 0 : i32
    %c0_i32_1 = arith.constant 0 : i32
    return %c0_i32, %c0_i32_0 : i32, i32
  }
  func.func @transform_3(%arg0: i32) -> (i32, i32) {
    %c0_i32 = arith.constant 0 : i32
    %c0_i32_0 = arith.constant 0 : i32
    %c0_i32_1 = arith.constant 0 : i32
    return %c0_i32, %c0_i32_0 : i32, i32
  }
  func.func @transform_4(%arg0: i32) -> (i32, i32) {
    %c0_i32 = arith.constant 0 : i32
    %c0_i32_0 = arith.constant 0 : i32
    %c0_i32_1 = arith.constant 0 : i32
    return %c0_i32, %c0_i32_0 : i32, i32
  }
  func.func @transform_5(%arg0: i32) -> (i32, i32) {
    %c0_i32 = arith.constant 0 : i32
    %c0_i32_0 = arith.constant 0 : i32
    %c0_i32_1 = arith.constant 0 : i32
    return %c0_i32, %c0_i32_0 : i32, i32
  }
  func.func @transform_6(%arg0: i32) -> (i32, i32) {
    %c0_i32 = arith.constant 0 : i32
    %c0_i32_0 = arith.constant 0 : i32
    %c0_i32_1 = arith.constant 0 : i32
    return %c0_i32, %c0_i32_0 : i32, i32
  }
  func.func @transform_7(%arg0: i32) -> (i32, i32) {
    %c0_i32 = arith.constant 0 : i32
    %c0_i32_0 = arith.constant 0 : i32
    %c0_i32_1 = arith.constant 0 : i32
    return %c0_i32, %c0_i32_0 : i32, i32
  }
  func.func @transform_8(%arg0: i32) -> (i32, i32) {
    %c0_i32 = arith.constant 0 : i32
    %c0_i32_0 = arith.constant 0 : i32
    %c0_i32_1 = arith.constant 0 : i32
    return %c0_i32, %c0_i32_0 : i32, i32
  }
  func.func @transform_9(%arg0: i32) -> (i32, i32) {
    %c0_i32 = arith.constant 0 : i32
    %c0_i32_0 = arith.constant 0 : i32
    %c0_i32_1 = arith.constant 0 : i32
    return %c0_i32, %c0_i32_0 : i32, i32
  }
  func.func @transform_10(%arg0: i32) -> (i32, i32) {
    %c0_i32 = arith.constant 0 : i32
    %c0_i32_0 = arith.constant 0 : i32
    %c0_i32_1 = arith.constant 0 : i32
    return %c0_i32, %c0_i32_0 : i32, i32
  }
  func.func @transform_11(%arg0: i32) -> (i32, i32, i32) {
    %c0_i32 = arith.constant 0 : i32
    %c0_i32_0 = arith.constant 0 : i32
    %c0_i32_1 = arith.constant 0 : i32
    return %arg0, %c0_i32, %c0_i32_0 : i32, i32, i32
  }
}

</mosaic_0001>

<llo_original>
// kernel: pallas_forward.1
$region0: #{pallas_forward.1}
  #allocation0 [shape = 'u32[]', space=smem, size = 0x4, offset = 0x4, fixed_abs, tag = 'smem constant byte address 0x4 - core index']
  #allocation1 [shape = 'u32[144,128]{1,0:T(1,128)}', space=vmem, size = 0x12000, scoped, tag = 'internal scratch']
  #allocation2 [shape = 'f32[1,1]{1,0:T(1,128)S(1)}', space=vmem, size = 0x200, scoped, tag = 'scoped memory for pallas_forward.1']
  %s0 = inlined_call_operand.vmem [shape: f32[2,1,32], index: 0, kind: input, shape index: {}]
  %s1 = inlined_call_operand.vmem [shape: f32[2,4,362], index: 1, kind: input, shape index: {}]
  %s2 = inlined_call_operand.vmem [shape: f32[1,324], index: 2, kind: input, shape index: {}]
  %s3 = inlined_call_operand.vmem [shape: f32[32,880], index: 3, kind: input, shape index: {}]
  %s4 = inlined_call_operand.vmem [shape: f32[1,880], index: 4, kind: input, shape index: {}]
  %s5 = inlined_call_operand.vmem [shape: f32[2592,32], index: 5, kind: input, shape index: {}]
  %s6 = inlined_call_operand.vmem [shape: f32[1,32], index: 6, kind: input, shape index: {}]
  %s7 = inlined_call_operand.vmem [shape: f32[32,32], index: 7, kind: input, shape index: {}]
  %s8 = inlined_call_operand.vmem [shape: f32[1,32], index: 8, kind: input, shape index: {}]
  %s9 = inlined_call_operand.vmem [shape: f32[32,1], index: 9, kind: input, shape index: {}]
  %s10 = inlined_call_operand.<no memory space> [shape: f32[1,1], index: 10, kind: input, shape index: {}]
  %s11 = inlined_call_operand.vmem [shape: f32[2,1,1], index: 11, kind: output, shape index: {}]
  %s12 = sld [smem:[#allocation0]]
  $region77: #{pallas_forward.1} parent=0
    _
  %s14 = ssub.s32 1, %s12
  %s15 = scalar_select 0, %s14, %s12
  %v16 = vstv %s10
  %17 = vst [vmem:[#allocation2] sm:$0x1] %v16
  loop: start=0, step=1, limit=4
  $region2: #{pallas_forward.1} parent=0 // loop_pre_header
    _
  $region3: #{pallas_forward.1} parent=0 // loop_header
    %s19 = sphi 0, %s23
    %p20 = scmp.ge.s32.totalorder %s19, 4
    %s29 = sphi 0, %s31
    %s32 = sphi 0, %s29
    %s33 = sphi 0, %s32
    %s49 = sphi 0, %s33
    %s55 = sphi 0, %s57
    %s58 = sphi 0, %s55
    %s59 = sphi 0, %s58
    %s75 = sphi 0, %s59
    %s79 = sphi 0, %s79
    %s81 = sphi 0, %s79
    %s82 = sphi 0, %s81
    %s96 = sphi 0, %s82
    %s100 = sphi 0, %s100
    %s102 = sphi 0, %s100
    %s103 = sphi 0, %s102
    %s117 = sphi 0, %s103
    %s121 = sphi 0, %s121
    %s123 = sphi 0, %s121
    %s124 = sphi 0, %s123
    %s138 = sphi 0, %s124
    %s142 = sphi 0, %s142
    %s144 = sphi 0, %s142
    %s145 = sphi 0, %s144
    %s159 = sphi 0, %s145
    %s163 = sphi 0, %s163
    %s165 = sphi 0, %s163
    %s166 = sphi 0, %s165
    %s180 = sphi 0, %s166
    %s184 = sphi 0, %s184
    %s186 = sphi 0, %s184
    %s187 = sphi 0, %s186
    %s201 = sphi 0, %s187
    %s205 = sphi 0, %s205
    %s207 = sphi 0, %s205
    %s208 = sphi 0, %s207
    %s222 = sphi 0, %s208
    %s226 = sphi 0, %s226
    %s228 = sphi 0, %s226
    %s229 = sphi 0, %s228
    %s243 = sphi 0, %s229
    %s247 = sphi 0, %s247
    %s249 = sphi 0, %s247
    %s250 = sphi 0, %s249
    %s264 = sphi 0, %s250
    %s270 = sphi 0, %s272
    %s273 = sphi 0, %s270
    %s274 = sphi 0, %s273
    %s290 = sphi 0, %s274
  $region4: #{pallas_forward.1} parent=0 // loop_header_branch
    %22 = sbr.rel (%p20) target = $region8
  $region5: #{pallas_forward.1} parent=0 // loop_body
    %s24 = ssub.s32 %s19, 1
    %s25 = ssub.s32 %s19, 2
    %s26 = sadd.s32 %s19, 1
    %s27 = ssub.s32 %s19, %s26
    %p28 = scmp.eq.s32.totalorder %s27, 0
    %s30 = sadd.s32 %s29, 1
    %s31 = scalar_select %p28, %s29, %s30
    %p34 = pneg %p28
    %p35 = scmp.eq.s32.totalorder %s19, 1
    %p36 = por %p34, %p35
    %p37 = scmp.ne.s32.totalorder %s29, %s32
    %p38 = scmp.eq.s32.totalorder %s19, 0
    %p39 = por %p37, %p38
    %p40 = scmp.ne.s32.totalorder %s29, %s32
    %p41 = scmp.eq.s32.totalorder %s24, 1
    %p42 = por %p40, %p41
    %p43 = scmp.ne.s32.totalorder %s32, %s33
    %p44 = scmp.eq.s32.totalorder %s24, 0
    %p45 = por %p43, %p44
    %p46 = scmp.ne.s32.totalorder %s32, %s33
    %p47 = scmp.eq.s32.totalorder %s25, 1
    %p48 = por %p46, %p47
    %p50 = scmp.ne.s32.totalorder %s33, %s49
    %p51 = scmp.eq.s32.totalorder %s25, 0
    %p52 = por %p50, %p51
    %s53 = ssub.s32 %s19, %s26
    %p54 = scmp.eq.s32.totalorder %s53, 0
    %s56 = sadd.s32 %s55, 1
    %s57 = scalar_select %p54, %s55, %s56
    %p60 = pneg %p54
    %p61 = scmp.eq.s32.totalorder %s19, 1
    %p62 = por %p60, %p61
    %p63 = scmp.ne.s32.totalorder %s55, %s58
    %p64 = scmp.eq.s32.totalorder %s19, 0
    %p65 = por %p63, %p64
    %p66 = scmp.ne.s32.totalorder %s55, %s58
    %p67 = scmp.eq.s32.totalorder %s24, 1
    %p68 = por %p66, %p67
    %p69 = scmp.ne.s32.totalorder %s58, %s59
    %p70 = scmp.eq.s32.totalorder %s24, 0
    %p71 = por %p69, %p70
    %p72 = scmp.ne.s32.totalorder %s58, %s59
    %p73 = scmp.eq.s32.totalorder %s25, 1
    %p74 = por %p72, %p73
    %p76 = scmp.ne.s32.totalorder %s59, %s75
    %p77 = scmp.eq.s32.totalorder %s25, 0
    %p78 = por %p76, %p77
    %s80 = sadd.s32 %s79, 1
    %p83 = scmp.eq.s32.totalorder %s19, 1
    %p84 = scmp.ne.s32.totalorder %s79, %s81
    %p85 = scmp.eq.s32.totalorder %s19, 0
    %p86 = por %p84, %p85
    %p87 = scmp.ne.s32.totalorder %s79, %s81
    %p88 = scmp.eq.s32.totalorder %s24, 1
    %p89 = por %p87, %p88
    %p90 = scmp.ne.s32.totalorder %s81, %s82
    %p91 = scmp.eq.s32.totalorder %s24, 0
    %p92 = por %p90, %p91
    %p93 = scmp.ne.s32.totalorder %s81, %s82
    %p94 = scmp.eq.s32.totalorder %s25, 1
    %p95 = por %p93, %p94
    %p97 = scmp.ne.s32.totalorder %s82, %s96
    %p98 = scmp.eq.s32.totalorder %s25, 0
    %p99 = por %p97, %p98
    %s101 = sadd.s32 %s100, 1
    %p104 = scmp.eq.s32.totalorder %s19, 1
    %p105 = scmp.ne.s32.totalorder %s100, %s102
    %p106 = scmp.eq.s32.totalorder %s19, 0
    %p107 = por %p105, %p106
    %p108 = scmp.ne.s32.totalorder %s100, %s102
    %p109 = scmp.eq.s32.totalorder %s24, 1
    %p110 = por %p108, %p109
    %p111 = scmp.ne.s32.totalorder %s102, %s103
    %p112 = scmp.eq.s32.totalorder %s24, 0
    %p113 = por %p111, %p112
    %p114 = scmp.ne.s32.totalorder %s102, %s103
    %p115 = scmp.eq.s32.totalorder %s25, 1
    %p116 = por %p114, %p115
    %p118 = scmp.ne.s32.totalorder %s103, %s117
    %p119 = scmp.eq.s32.totalorder %s25, 0
    %p120 = por %p118, %p119
    %s122 = sadd.s32 %s121, 1
    %p125 = scmp.eq.s32.totalorder %s19, 1
    %p126 = scmp.ne.s32.totalorder %s121, %s123
    %p127 = scmp.eq.s32.totalorder %s19, 0
    %p128 = por %p126, %p127
    %p129 = scmp.ne.s32.totalorder %s121, %s123
    %p130 = scmp.eq.s32.totalorder %s24, 1
    %p131 = por %p129, %p130
    %p132 = scmp.ne.s32.totalorder %s123, %s124
    %p133 = scmp.eq.s32.totalorder %s24, 0
    %p134 = por %p132, %p133
    %p135 = scmp.ne.s32.totalorder %s123, %s124
    %p136 = scmp.eq.s32.totalorder %s25, 1
    %p137 = por %p135, %p136
    %p139 = scmp.ne.s32.totalorder %s124, %s138
    %p140 = scmp.eq.s32.totalorder %s25, 0
    %p141 = por %p139, %p140
    %s143 = sadd.s32 %s142, 1
    %p146 = scmp.eq.s32.totalorder %s19, 1
    %p147 = scmp.ne.s32.totalorder %s142, %s144
    %p148 = scmp.eq.s32.totalorder %s19, 0
    %p149 = por %p147, %p148
    %p150 = scmp.ne.s32.totalorder %s142, %s144
    %p151 = scmp.eq.s32.totalorder %s24, 1
    %p152 = por %p150, %p151
    %p153 = scmp.ne.s32.totalorder %s144, %s145
    %p154 = scmp.eq.s32.totalorder %s24, 0
    %p155 = por %p153, %p154
    %p156 = scmp.ne.s32.totalorder %s144, %s145
    %p157 = scmp.eq.s32.totalorder %s25, 1
    %p158 = por %p156, %p157
    %p160 = scmp.ne.s32.totalorder %s145, %s159
    %p161 = scmp.eq.s32.totalorder %s25, 0
    %p162 = por %p160, %p161
    %s164 = sadd.s32 %s163, 1
    %p167 = scmp.eq.s32.totalorder %s19, 1
    %p168 = scmp.ne.s32.totalorder %s163, %s165
    %p169 = scmp.eq.s32.totalorder %s19, 0
    %p170 = por %p168, %p169
    %p171 = scmp.ne.s32.totalorder %s163, %s165
    %p172 = scmp.eq.s32.totalorder %s24, 1
    %p173 = por %p171, %p172
    %p174 = scmp.ne.s32.totalorder %s165, %s166
    %p175 = scmp.eq.s32.totalorder %s24, 0
    %p176 = por %p174, %p175
    %p177 = scmp.ne.s32.totalorder %s165, %s166
    %p178 = scmp.eq.s32.totalorder %s25, 1
    %p179 = por %p177, %p178
    %p181 = scmp.ne.s32.totalorder %s166, %s180
    %p182 = scmp.eq.s32.totalorder %s25, 0
    %p183 = por %p181, %p182
    %s185 = sadd.s32 %s184, 1
    %p188 = scmp.eq.s32.totalorder %s19, 1
    %p189 = scmp.ne.s32.totalorder %s184, %s186
    %p190 = scmp.eq.s32.totalorder %s19, 0
    %p191 = por %p189, %p190
    %p192 = scmp.ne.s32.totalorder %s184, %s186
    %p193 = scmp.eq.s32.totalorder %s24, 1
    %p194 = por %p192, %p193
    %p195 = scmp.ne.s32.totalorder %s186, %s187
    %p196 = scmp.eq.s32.totalorder %s24, 0
    %p197 = por %p195, %p196
    %p198 = scmp.ne.s32.totalorder %s186, %s187
    %p199 = scmp.eq.s32.totalorder %s25, 1
    %p200 = por %p198, %p199
    %p202 = scmp.ne.s32.totalorder %s187, %s201
    %p203 = scmp.eq.s32.totalorder %s25, 0
    %p204 = por %p202, %p203
    %s206 = sadd.s32 %s205, 1
    %p209 = scmp.eq.s32.totalorder %s19, 1
    %p210 = scmp.ne.s32.totalorder %s205, %s207
    %p211 = scmp.eq.s32.totalorder %s19, 0
    %p212 = por %p210, %p211
    %p213 = scmp.ne.s32.totalorder %s205, %s207
    %p214 = scmp.eq.s32.totalorder %s24, 1
    %p215 = por %p213, %p214
    %p216 = scmp.ne.s32.totalorder %s207, %s208
    %p217 = scmp.eq.s32.totalorder %s24, 0
    %p218 = por %p216, %p217
    %p219 = scmp.ne.s32.totalorder %s207, %s208
    %p220 = scmp.eq.s32.totalorder %s25, 1
    %p221 = por %p219, %p220
    %p223 = scmp.ne.s32.totalorder %s208, %s222
    %p224 = scmp.eq.s32.totalorder %s25, 0
    %p225 = por %p223, %p224
    %s227 = sadd.s32 %s226, 1
    %p230 = scmp.eq.s32.totalorder %s19, 1
    %p231 = scmp.ne.s32.totalorder %s226, %s228
    %p232 = scmp.eq.s32.totalorder %s19, 0
    %p233 = por %p231, %p232
    %p234 = scmp.ne.s32.totalorder %s226, %s228
    %p235 = scmp.eq.s32.totalorder %s24, 1
    %p236 = por %p234, %p235
    %p237 = scmp.ne.s32.totalorder %s228, %s229
    %p238 = scmp.eq.s32.totalorder %s24, 0
    %p239 = por %p237, %p238
    %p240 = scmp.ne.s32.totalorder %s228, %s229
    %p241 = scmp.eq.s32.totalorder %s25, 1
    %p242 = por %p240, %p241
    %p244 = scmp.ne.s32.totalorder %s229, %s243
    %p245 = scmp.eq.s32.totalorder %s25, 0
    %p246 = por %p244, %p245
    %s248 = sadd.s32 %s247, 1
    %p251 = scmp.eq.s32.totalorder %s19, 1
    %p252 = scmp.ne.s32.totalorder %s247, %s249
    %p253 = scmp.eq.s32.totalorder %s19, 0
    %p254 = por %p252, %p253
    %p255 = scmp.ne.s32.totalorder %s247, %s249
    %p256 = scmp.eq.s32.totalorder %s24, 1
    %p257 = por %p255, %p256
    %p258 = scmp.ne.s32.totalorder %s249, %s250
    %p259 = scmp.eq.s32.totalorder %s24, 0
    %p260 = por %p258, %p259
    %p261 = scmp.ne.s32.totalorder %s249, %s250
    %p262 = scmp.eq.s32.totalorder %s25, 1
    %p263 = por %p261, %p262
    %p265 = scmp.ne.s32.totalorder %s250, %s264
    %p266 = scmp.eq.s32.totalorder %s25, 0
    %p267 = por %p265, %p266
    %s268 = ssub.s32 %s19, %s26
    %p269 = scmp.eq.s32.totalorder %s268, 0
    %s271 = sadd.s32 %s270, 1
    %s272 = scalar_select %p269, %s270, %s271
    %p275 = pneg %p269
    %p276 = scmp.eq.s32.totalorder %s19, 1
    %p277 = por %p275, %p276
    %p278 = scmp.ne.s32.totalorder %s270, %s273
    %p279 = scmp.eq.s32.totalorder %s19, 0
    %p280 = por %p278, %p279
    %p281 = scmp.ne.s32.totalorder %s270, %s273
    %p282 = scmp.eq.s32.totalorder %s24, 1
    %p283 = por %p281, %p282
    %p284 = scmp.ne.s32.totalorder %s273, %s274
    %p285 = scmp.eq.s32.totalorder %s24, 0
    %p286 = por %p284, %p285
    %p287 = scmp.ne.s32.totalorder %s273, %s274
    %p288 = scmp.eq.s32.totalorder %s25, 1
    %p289 = por %p287, %p288
    %p291 = scmp.ne.s32.totalorder %s274, %s290
    %p292 = scmp.eq.s32.totalorder %s25, 0
    %p293 = por %p291, %p292
    %p294 = scmp.le.s32.totalorder 1, %s19
    %p295 = scmp.lt.s32.totalorder %s19, 3
    %p296 = pnand %p294, %p295
    %p297 = pneg %p296
    // Predicated region
    $region9: #{pallas_forward.1} parent=5 // pred_check
      _
    $region10: #{pallas_forward.1} parent=5 // pred_check_branch
      %299 = sbr.rel (%p296) target = $region12
    $region11: #{pallas_forward.1} parent=5 // pred_region
      %s300 = ssub.s32 %s19, 1
      // Predicated region
      $region13: #{pallas_forward.1} parent=11 // pred_check
        %p301 = pneg %p92
      $region14: #{pallas_forward.1} parent=11 // pred_check_branch
        %303 = sbr.rel (%p301) target = $region16
      $region15: #{pallas_forward.1} parent=11 // pred_region
        _
      $region16: #{pallas_forward.1} parent=11 // pred_fallthru
        _
      // Predicated region
      $region17: #{pallas_forward.1} parent=11 // pred_check
        %p304 = pneg %p113
      $region18: #{pallas_forward.1} parent=11 // pred_check_branch
        %306 = sbr.rel (%p304) target = $region20
      $region19: #{pallas_forward.1} parent=11 // pred_region
        _
      $region20: #{pallas_forward.1} parent=11 // pred_fallthru
        _
      // Predicated region
      $region21: #{pallas_forward.1} parent=11 // pred_check
        %p307 = pneg %p134
      $region22: #{pallas_forward.1} parent=11 // pred_check_branch
        %309 = sbr.rel (%p307) target = $region24
      $region23: #{pallas_forward.1} parent=11 // pred_region
        _
      $region24: #{pallas_forward.1} parent=11 // pred_fallthru
        _
      // Predicated region
      $region25: #{pallas_forward.1} parent=11 // pred_check
        %p310 = pneg %p155
      $region26: #{pallas_forward.1} parent=11 // pred_check_branch
        %312 = sbr.rel (%p310) target = $region28
      $region27: #{pallas_forward.1} parent=11 // pred_region
        _
      $region28: #{pallas_forward.1} parent=11 // pred_fallthru
        _
      // Predicated region
      $region29: #{pallas_forward.1} parent=11 // pred_check
        %p313 = pneg %p176
      $region30: #{pallas_forward.1} parent=11 // pred_check_branch
        %315 = sbr.rel (%p313) target = $region32
      $region31: #{pallas_forward.1} parent=11 // pred_region
        _
      $region32: #{pallas_forward.1} parent=11 // pred_fallthru
        _
      // Predicated region
      $region33: #{pallas_forward.1} parent=11 // pred_check
        %p316 = pneg %p197
      $region34: #{pallas_forward.1} parent=11 // pred_check_branch
        %318 = sbr.rel (%p316) target = $region36
      $region35: #{pallas_forward.1} parent=11 // pred_region
        _
      $region36: #{pallas_forward.1} parent=11 // pred_fallthru
        _
      // Predicated region
      $region37: #{pallas_forward.1} parent=11 // pred_check
        %p319 = pneg %p218
      $region38: #{pallas_forward.1} parent=11 // pred_check_branch
        %321 = sbr.rel (%p319) target = $region40
      $region39: #{pallas_forward.1} parent=11 // pred_region
        _
      $region40: #{pallas_forward.1} parent=11 // pred_fallthru
        _
      // Predicated region
      $region41: #{pallas_forward.1} parent=11 // pred_check
        %p322 = pneg %p239
      $region42: #{pallas_forward.1} parent=11 // pred_check_branch
        %324 = sbr.rel (%p322) target = $region44
      $region43: #{pallas_forward.1} parent=11 // pred_region
        _
      $region44: #{pallas_forward.1} parent=11 // pred_fallthru
        _
      // Predicated region
      $region45: #{pallas_forward.1} parent=11 // pred_check
        %p325 = pneg %p260
      $region46: #{pallas_forward.1} parent=11 // pred_check_branch
        %327 = sbr.rel (%p325) target = $region48
      $region47: #{pallas_forward.1} parent=11 // pred_region
        _
      $region48: #{pallas_forward.1} parent=11 // pred_fallthru
        _
    $region12: #{pallas_forward.1} parent=5 // pred_fallthru
      _
    %p328 = scmp.lt.s32.totalorder %s19, 2
    // Predicated region
    $region49: #{pallas_forward.1} parent=5 // pred_check
      %p329 = pneg %p328
    $region50: #{pallas_forward.1} parent=5 // pred_check_branch
      %331 = sbr.rel (%p329) target = $region52
    $region51: #{pallas_forward.1} parent=5 // pred_region
      // Predicated region
      $region53: #{pallas_forward.1} parent=51 // pred_check
        %p332 = pneg %p39
      $region54: #{pallas_forward.1} parent=51 // pred_check_branch
        %334 = sbr.rel (%p332) target = $region56
      $region55: #{pallas_forward.1} parent=51 // pred_region
        %p335 = scmp.lt.s32.totalorder %s19, 1
        %s336 = scalar_select %p335, %s19, 1
        %s337 = scalar_lea.vmem %s0, %s336
      $region56: #{pallas_forward.1} parent=51 // pred_fallthru
        _
      // Predicated region
      $region57: #{pallas_forward.1} parent=51 // pred_check
        %p338 = pneg %p65
      $region58: #{pallas_forward.1} parent=51 // pred_check_branch
        %340 = sbr.rel (%p338) target = $region60
      $region59: #{pallas_forward.1} parent=51 // pred_region
        %p341 = scmp.lt.s32.totalorder %s19, 1
        %s342 = scalar_select %p341, %s19, 1
        %s343 = smul.addr %s342, 3
        %s344 = smul.addr %s343, 4
        %s345 = scalar_lea.vmem %s1, %s344
      $region60: #{pallas_forward.1} parent=51 // pred_fallthru
        _
    $region52: #{pallas_forward.1} parent=5 // pred_fallthru
      _
    %p346 = scmp.le.s32.totalorder 1, %s19
    %p347 = scmp.lt.s32.totalorder %s19, 3
    %p348 = pnand %p346, %p347
    %p349 = pneg %p348
    // Predicated region
    $region61: #{pallas_forward.1} parent=5 // pred_check
      _
    $region62: #{pallas_forward.1} parent=5 // pred_check_branch
      %351 = sbr.rel (%p348) target = $region64
    $region63: #{pallas_forward.1} parent=5 // pred_region
      %s352 = ssub.s32 %s19, 1
      %p353 = scmp.lt.s32.totalorder %s24, 1
      %s354 = scalar_select %p353, %s24, 1
      %s355 = scalar_lea.vmem %s0, %s354
      %p356 = pneg %p45
      %p357 = pneg %p42
      %p358 = scmp.lt.s32.totalorder %s24, 1
      %s359 = scalar_select %p358, %s24, 1
      %s360 = smul.addr %s359, 3
      %s361 = smul.addr %s360, 4
      %s362 = scalar_lea.vmem %s1, %s361
      %p363 = pneg %p71
      %p364 = pneg %p68
      %p365 = pneg %p92
      %p366 = pneg %p89
      %p367 = pneg %p113
      %p368 = pneg %p110
      %p369 = pneg %p134
      %p370 = pneg %p131
      %p371 = pneg %p155
      %p372 = pneg %p152
      %p373 = pneg %p176
      %p374 = pneg %p173
      %p375 = pneg %p197
      %p376 = pneg %p194
      %p377 = pneg %p218
      %p378 = pneg %p215
      %p379 = pneg %p239
      %p380 = pneg %p236
      %p381 = pneg %p260
      %p382 = pneg %p257
      %p383 = pneg %p286
      %p384 = pneg %p283
      %p385 = scmp.lt.s32.totalorder %s24, 1
      %s386 = scalar_select %p385, %s24, 1
      %s387 = scalar_lea.vmem %s11, %s386
      %p388 = scmp.lt.s32.totalorder %s24, 1
      %s389 = scalar_select %p388, %s24, 1
      %s390 = scalar_lea.vmem %s0, %s389
      %p391 = scmp.lt.s32.totalorder %s24, 1
      %s392 = scalar_select %p391, %s24, 1
      %s393 = smul.addr %s392, 3
      %s394 = smul.addr %s393, 4
      %s395 = scalar_lea.vmem %s1, %s394
      %p396 = scmp.lt.s32.totalorder %s24, 1
      %s397 = scalar_select %p396, %s24, 1
      %s398 = scalar_lea.vmem %s11, %s397
      %v399 = vld [vmem:[%s390] sm:$0x1]
      %v400 = vld [vmem:[%s395] sm:$0xff]
      %v401 = vld [vmem:[%s395 + $0x8] sm:$0xf]
      %v402 = vld [vmem:[%s2] sm:$0x7]
      %v403 = vld [vmem:[%s3] sm:$0xff]
      %v404 = vld [vmem:[%s3 + $0x8] sm:$0xff]
      %v405 = vld [vmem:[%s3 + $0x10] sm:$0xff]
      %v406 = vld [vmem:[%s3 + $0x18] sm:$0xff]
      %v407 = vld [vmem:[%s3 + $0x20] sm:$0xff]
      %v408 = vld [vmem:[%s3 + $0x28] sm:$0xff]
      %v409 = vld [vmem:[%s3 + $0x30] sm:$0xff]
      %v410 = vld [vmem:[%s3 + $0x38] sm:$0xff]
      %v411 = vld [vmem:[%s3 + $0x40] sm:$0xff]
      %v412 = vld [vmem:[%s3 + $0x48] sm:$0xff]
      %v413 = vld [vmem:[%s3 + $0x50] sm:$0xff]
      %v414 = vld [vmem:[%s3 + $0x58] sm:$0xff]
      %v415 = vld [vmem:[%s3 + $0x60] sm:$0xff]
      %v416 = vld [vmem:[%s3 + $0x68] sm:$0xff]
      %v417 = vld [vmem:[%s3 + $0x70] sm:$0xff]
      %v418 = vld [vmem:[%s3 + $0x78] sm:$0xff]
      %v419 = vld [vmem:[%s3 + $0x80] sm:$0xff]
      %v420 = vld [vmem:[%s3 + $0x88] sm:$0xff]
      %v421 = vld [vmem:[%s3 + $0x90] sm:$0xff]
      %v422 = vld [vmem:[%s3 + $0x98] sm:$0xff]
      %v423 = vld [vmem:[%s3 + $0xa0] sm:$0xff]
      %v424 = vld [vmem:[%s3 + $0xa8] sm:$0xff]
      %v425 = vld [vmem:[%s3 + $0xb0] sm:$0xff]
      %v426 = vld [vmem:[%s3 + $0xb8] sm:$0xff]
      %v427 = vld [vmem:[%s3 + $0xc0] sm:$0xff]
      %v428 = vld [vmem:[%s3 + $0xc8] sm:$0xff]
      %v429 = vld [vmem:[%s3 + $0xd0] sm:$0xff]
      %v430 = vld [vmem:[%s3 + $0xd8] sm:$0xff]
      %v431 = vld [vmem:[%s4] sm:$0x7f]
      %v433 = vlaneseq
      %v434 = vshrl.u32 %v433, 7
      %v435 = vsub.s32 0, %v434
      %v436 = vrot.slane %v431, %v435
      %v437 = vlaneseq
      %v438 = vshrl.u32 %v437, 7
      %v439 = vsub.s32 1, %v438
      %v440 = vrot.slane %v431, %v439
      %v441 = vlaneseq
      %v442 = vshrl.u32 %v441, 7
      %v443 = vsub.s32 2, %v442
      %v444 = vrot.slane %v431, %v443
      %v445 = vlaneseq
      %v446 = vshrl.u32 %v445, 7
      %v447 = vsub.s32 3, %v446
      %v448 = vrot.slane %v431, %v447
      %v449 = vlaneseq
      %v450 = vshrl.u32 %v449, 7
      %v451 = vsub.s32 4, %v450
      %v452 = vrot.slane %v431, %v451
      %v453 = vlaneseq
      %v454 = vshrl.u32 %v453, 7
      %v455 = vsub.s32 5, %v454
      %v456 = vrot.slane %v431, %v455
      %v457 = vlaneseq
      %v458 = vshrl.u32 %v457, 7
      %v459 = vsub.s32 6, %v458
      %v460 = vrot.slane %v431, %v459
      %vm468 = vcmask 261120
      %v470 = vsel %vm468, %v399, 0
      %472 = vmatprep.subr.mxu0 %v404
      %473 = vmatpush1.msra.mxu0 %v403
      %474 = vmatprep.subr.mxu0 %v411
      %475 = vmatpush1.msra.mxu0 %v410
      %476 = vmatprep.subr.mxu0 %v418
      %477 = vmatpush1.msra.mxu0 %v417
      %478 = vmatprep.subr.mxu0 %v425
      %479 = vmatpush1.msra.mxu0 %v424
      %480 = vmatprep.subr.mxu0 0.0
      %481 = vmatpush1.msra.mxu0 0.0
      %482 = vmatprep.subr.mxu0 0.0
      %483 = vmatpush1.msra.mxu0 0.0
      %484 = vmatprep.subr.mxu0 0.0
      %485 = vmatpush1.msra.mxu0 0.0
      %486 = vmatprep.subr.mxu0 0.0
      %487 = vmatpush1.msra.mxu0 0.0
      %488 = vmatprep.subr.mxu0 0.0
      %489 = vmatpush1.msra.mxu0 0.0
      %490 = vmatprep.subr.mxu0 0.0
      %491 = vmatpush1.msra.mxu0 0.0
      %492 = vmatprep.subr.mxu0 0.0
      %493 = vmatpush1.msra.mxu0 0.0
      %494 = vmatprep.subr.mxu0 0.0
      %495 = vmatpush1.msra.mxu0 0.0
      %496 = vmatprep.subr.mxu0 0.0
      %497 = vmatpush1.msra.mxu0 0.0
      %498 = vmatprep.subr.mxu0 0.0
      %499 = vmatpush1.msra.mxu0 0.0
      %500 = vmatprep.subr.mxu0 0.0
      %501 = vmatpush1.msra.mxu0 0.0
      %502 = vmatprep.subr.mxu0 0.0
      %503 = vmatpush1.msra.mxu0 0.0
      %504 = vmatprep.subr.mxu0 0.0
      %505 = vmatpush1.msra.mxu0 0.0
      %506 = vmatprep.subr.mxu0 0.0
      %507 = vmatpush1.msra.mxu0 0.0
      %508 = vmatprep.subr.mxu0 0.0
      %509 = vmatpush1.msra.mxu0 0.0
      %510 = vmatprep.subr.mxu0 0.0
      %511 = vmatpush1.msra.mxu0 0.0
      %512 = vmatprep.subr.mxu0 0.0
      %513 = vmatpush1.msra.mxu0 0.0
      %514 = vmatprep.subr.mxu0 0.0
      %515 = vmatpush1.msra.mxu0 0.0
      %516 = vmatprep.subr.mxu0 0.0
      %517 = vmatpush1.msra.mxu0 0.0
      %518 = vmatprep.subr.mxu0 0.0
      %519 = vmatpush1.msra.mxu0 0.0
      %520 = vmatprep.subr.mxu0 0.0
      %521 = vmatpush1.msra.mxu0 0.0
      %522 = vmatprep.subr.mxu0 0.0
      %523 = vmatpush1.msra.mxu0 0.0
      %524 = vmatprep.subr.mxu0 0.0
      %525 = vmatpush1.msra.mxu0 0.0
      %526 = vmatprep.subr.mxu0 0.0
      %527 = vmatpush1.msra.mxu0 0.0
      %528 = vmatprep.subr.mxu0 0.0
      %529 = vmatpush1.msra.mxu0 0.0
      %530 = vmatprep.subr.mxu0 0.0
      %531 = vmatpush1.msra.mxu0 0.0
      %532 = vmatprep.subr.mxu0 0.0
      %533 = vmatpush1.msra.mxu0 0.0
      %534 = vmatprep.subr.mxu0 0.0
      %535 = vmatpush1.msra.mxu0 0.0
      %536 = vmatprep.mubr.f32.mxu0 0.0
      %537 = vmatmul.mubr.f32.gmra.mrb[0].mxu0 %v470
      %v538 = vpop.f32.mrb[0].mxu0
      %v539 = vadd.f32 %v436, %v538
      %v540 = vpop.f32.mrb[0].mxu0
      %v541 = vadd.f32 %v440, %v540
      %542 = vdwg.mxu0
      %543 = vmatprep.subr.mxu0 %v406
      %544 = vmatpush1.msra.mxu0 %v405
      %545 = vmatprep.subr.mxu0 %v413
      %546 = vmatpush1.msra.mxu0 %v412
      %547 = vmatprep.subr.mxu0 %v420
      %548 = vmatpush1.msra.mxu0 %v419
      %549 = vmatprep.subr.mxu0 %v427
      %550 = vmatpush1.msra.mxu0 %v426
      %551 = vmatprep.subr.mxu0 0.0
      %552 = vmatpush1.msra.mxu0 0.0
      %553 = vmatprep.subr.mxu0 0.0
      %554 = vmatpush1.msra.mxu0 0.0
      %555 = vmatprep.subr.mxu0 0.0
      %556 = vmatpush1.msra.mxu0 0.0
      %557 = vmatprep.subr.mxu0 0.0
      %558 = vmatpush1.msra.mxu0 0.0
      %559 = vmatprep.subr.mxu0 0.0
      %560 = vmatpush1.msra.mxu0 0.0
      %561 = vmatprep.subr.mxu0 0.0
      %562 = vmatpush1.msra.mxu0 0.0
      %563 = vmatprep.subr.mxu0 0.0
      %564 = vmatpush1.msra.mxu0 0.0
      %565 = vmatprep.subr.mxu0 0.0
      %566 = vmatpush1.msra.mxu0 0.0
      %567 = vmatprep.subr.mxu0 0.0
      %568 = vmatpush1.msra.mxu0 0.0
      %569 = vmatprep.subr.mxu0 0.0
      %570 = vmatpush1.msra.mxu0 0.0
      %571 = vmatprep.subr.mxu0 0.0
      %572 = vmatpush1.msra.mxu0 0.0
      %573 = vmatprep.subr.mxu0 0.0
      %574 = vmatpush1.msra.mxu0 0.0
      %575 = vmatprep.subr.mxu0 0.0
      %576 = vmatpush1.msra.mxu0 0.0
      %577 = vmatprep.subr.mxu0 0.0
      %578 = vmatpush1.msra.mxu0 0.0
      %579 = vmatprep.subr.mxu0 0.0
      %580 = vmatpush1.msra.mxu0 0.0
      %581 = vmatprep.subr.mxu0 0.0
      %582 = vmatpush1.msra.mxu0 0.0
      %583 = vmatprep.subr.mxu0 0.0
      %584 = vmatpush1.msra.mxu0 0.0
      %585 = vmatprep.subr.mxu0 0.0
      %586 = vmatpush1.msra.mxu0 0.0
      %587 = vmatprep.subr.mxu0 0.0
      %588 = vmatpush1.msra.mxu0 0.0
      %589 = vmatprep.subr.mxu0 0.0
      %590 = vmatpush1.msra.mxu0 0.0
      %591 = vmatprep.subr.mxu0 0.0
      %592 = vmatpush1.msra.mxu0 0.0
      %593 = vmatprep.subr.mxu0 0.0
      %594 = vmatpush1.msra.mxu0 0.0
      %595 = vmatprep.subr.mxu0 0.0
      %596 = vmatpush1.msra.mxu0 0.0
      %597 = vmatprep.subr.mxu0 0.0
      %598 = vmatpush1.msra.mxu0 0.0
      %599 = vmatprep.subr.mxu0 0.0
      %600 = vmatpush1.msra.mxu0 0.0
      %601 = vmatprep.subr.mxu0 0.0
      %602 = vmatpush1.msra.mxu0 0.0
      %603 = vmatprep.subr.mxu0 0.0
      %604 = vmatpush1.msra.mxu0 0.0
      %605 = vmatprep.subr.mxu0 0.0
      %606 = vmatpush1.msra.mxu0 0.0
      %607 = vmatprep.mubr.f32.mxu0 0.0
      %608 = vmatmul.mubr.f32.gmra.mrb[0].mxu0 %v470
      %v609 = vpop.f32.mrb[0].mxu0
      %v610 = vadd.f32 %v444, %v609
      %v611 = vpop.f32.mrb[0].mxu0
      %v612 = vadd.f32 %v448, %v611
      %613 = vdwg.mxu0
      %614 = vmatprep.subr.mxu0 %v408
      %615 = vmatpush1.msra.mxu0 %v407
      %616 = vmatprep.subr.mxu0 %v415
      %617 = vmatpush1.msra.mxu0 %v414
      %618 = vmatprep.subr.mxu0 %v422
      %619 = vmatpush1.msra.mxu0 %v421
      %620 = vmatprep.subr.mxu0 %v429
      %621 = vmatpush1.msra.mxu0 %v428
      %622 = vmatprep.subr.mxu0 0.0
      %623 = vmatpush1.msra.mxu0 0.0
      %624 = vmatprep.subr.mxu0 0.0
      %625 = vmatpush1.msra.mxu0 0.0
      %626 = vmatprep.subr.mxu0 0.0
      %627 = vmatpush1.msra.mxu0 0.0
      %628 = vmatprep.subr.mxu0 0.0
      %629 = vmatpush1.msra.mxu0 0.0
      %630 = vmatprep.subr.mxu0 0.0
      %631 = vmatpush1.msra.mxu0 0.0
      %632 = vmatprep.subr.mxu0 0.0
      %633 = vmatpush1.msra.mxu0 0.0
      %634 = vmatprep.subr.mxu0 0.0
      %635 = vmatpush1.msra.mxu0 0.0
      %636 = vmatprep.subr.mxu0 0.0
      %637 = vmatpush1.msra.mxu0 0.0
      %638 = vmatprep.subr.mxu0 0.0
      %639 = vmatpush1.msra.mxu0 0.0
      %640 = vmatprep.subr.mxu0 0.0
      %641 = vmatpush1.msra.mxu0 0.0
      %642 = vmatprep.subr.mxu0 0.0
      %643 = vmatpush1.msra.mxu0 0.0
      %644 = vmatprep.subr.mxu0 0.0
      %645 = vmatpush1.msra.mxu0 0.0
      %646 = vmatprep.subr.mxu0 0.0
      %647 = vmatpush1.msra.mxu0 0.0
      %648 = vmatprep.subr.mxu0 0.0
      %649 = vmatpush1.msra.mxu0 0.0
      %650 = vmatprep.subr.mxu0 0.0
      %651 = vmatpush1.msra.mxu0 0.0
      %652 = vmatprep.subr.mxu0 0.0
      %653 = vmatpush1.msra.mxu0 0.0
      %654 = vmatprep.subr.mxu0 0.0
      %655 = vmatpush1.msra.mxu0 0.0
      %656 = vmatprep.subr.mxu0 0.0
      %657 = vmatpush1.msra.mxu0 0.0
      %658 = vmatprep.subr.mxu0 0.0
      %659 = vmatpush1.msra.mxu0 0.0
      %660 = vmatprep.subr.mxu0 0.0
      %661 = vmatpush1.msra.mxu0 0.0
      %662 = vmatprep.subr.mxu0 0.0
      %663 = vmatpush1.msra.mxu0 0.0
      %664 = vmatprep.subr.mxu0 0.0
      %665 = vmatpush1.msra.mxu0 0.0
      %666 = vmatprep.subr.mxu0 0.0
      %667 = vmatpush1.msra.mxu0 0.0
      %668 = vmatprep.subr.mxu0 0.0
      %669 = vmatpush1.msra.mxu0 0.0
      %670 = vmatprep.subr.mxu0 0.0
      %671 = vmatpush1.msra.mxu0 0.0
      %672 = vmatprep.subr.mxu0 0.0
      %673 = vmatpush1.msra.mxu0 0.0
      %674 = vmatprep.subr.mxu0 0.0
      %675 = vmatpush1.msra.mxu0 0.0
      %676 = vmatprep.subr.mxu0 0.0
      %677 = vmatpush1.msra.mxu0 0.0
      %678 = vmatprep.mubr.f32.mxu0 0.0
      %679 = vmatmul.mubr.f32.gmra.mrb[0].mxu0 %v470
      %v680 = vpop.f32.mrb[0].mxu0
      %v681 = vadd.f32 %v452, %v680
      %v682 = vpop.f32.mrb[0].mxu0
      %v683 = vadd.f32 %v456, %v682
      %684 = vdwg.mxu0
      %685 = vmatprep.subr.mxu0 0.0
      %686 = vmatpush1.msra.mxu0 %v409
      %687 = vmatprep.subr.mxu0 0.0
      %688 = vmatpush1.msra.mxu0 %v416
      %689 = vmatprep.subr.mxu0 0.0
      %690 = vmatpush1.msra.mxu0 %v423
      %691 = vmatprep.subr.mxu0 0.0
      %692 = vmatpush1.msra.mxu0 %v430
      %693 = vmatprep.subr.mxu0 0.0
      %694 = vmatpush1.msra.mxu0 0.0
      %695 = vmatprep.subr.mxu0 0.0
      %696 = vmatpush1.msra.mxu0 0.0
      %697 = vmatprep.subr.mxu0 0.0
      %698 = vmatpush1.msra.mxu0 0.0
      %699 = vmatprep.subr.mxu0 0.0
      %700 = vmatpush1.msra.mxu0 0.0
      %701 = vmatprep.subr.mxu0 0.0
      %702 = vmatpush1.msra.mxu0 0.0
      %703 = vmatprep.subr.mxu0 0.0
      %704 = vmatpush1.msra.mxu0 0.0
      %705 = vmatprep.subr.mxu0 0.0
      %706 = vmatpush1.msra.mxu0 0.0
      %707 = vmatprep.subr.mxu0 0.0
      %708 = vmatpush1.msra.mxu0 0.0
      %709 = vmatprep.subr.mxu0 0.0
      %710 = vmatpush1.msra.mxu0 0.0
      %711 = vmatprep.subr.mxu0 0.0
      %712 = vmatpush1.msra.mxu0 0.0
      %713 = vmatprep.subr.mxu0 0.0
      %714 = vmatpush1.msra.mxu0 0.0
      %715 = vmatprep.subr.mxu0 0.0
      %716 = vmatpush1.msra.mxu0 0.0
      %717 = vmatprep.subr.mxu0 0.0
      %718 = vmatpush1.msra.mxu0 0.0
      %719 = vmatprep.subr.mxu0 0.0
      %720 = vmatpush1.msra.mxu0 0.0
      %721 = vmatprep.subr.mxu0 0.0
      %722 = vmatpush1.msra.mxu0 0.0
      %723 = vmatprep.subr.mxu0 0.0
      %724 = vmatpush1.msra.mxu0 0.0
      %725 = vmatprep.subr.mxu0 0.0
      %726 = vmatpush1.msra.mxu0 0.0
      %727 = vmatprep.subr.mxu0 0.0
      %728 = vmatpush1.msra.mxu0 0.0
      %729 = vmatprep.subr.mxu0 0.0
      %730 = vmatpush1.msra.mxu0 0.0
      %731 = vmatprep.subr.mxu0 0.0
      %732 = vmatpush1.msra.mxu0 0.0
      %733 = vmatprep.subr.mxu0 0.0
      %734 = vmatpush1.msra.mxu0 0.0
      %735 = vmatprep.subr.mxu0 0.0
      %736 = vmatpush1.msra.mxu0 0.0
      %737 = vmatprep.subr.mxu0 0.0
      %738 = vmatpush1.msra.mxu0 0.0
      %739 = vmatprep.subr.mxu0 0.0
      %740 = vmatpush1.msra.mxu0 0.0
      %741 = vmatprep.subr.mxu0 0.0
      %742 = vmatpush1.msra.mxu0 0.0
      %743 = vmatprep.subr.mxu0 0.0
      %744 = vmatpush1.msra.mxu0 0.0
      %745 = vmatprep.subr.mxu0 0.0
      %746 = vmatpush1.msra.mxu0 0.0
      %747 = vmatprep.subr.mxu0 0.0
      %748 = vmatpush1.msra.mxu0 0.0
      %749 = vmatprep.mubr.f32.mxu0 0.0
      %750 = vmatmul.mubr.f32.gmra.mrb[0].mxu0 %v470
      %v751 = vpop.f32.mrb[0].mxu0
      %v752 = vadd.f32 %v460, %v751
      %v753 = vpop.f32.mrb[0].mxu0
      %754 = vdwg.mxu0
      %v756 = vrot.slane %v539, 7
      %757 = vrot.lane.b32.xlu0 %v756, 91
      %v758 = vpop.permute.xlu0 %757
      %v760 = vrot.slane %v539, 6
      %761 = vrot.lane.b32.xlu0 %v760, 54
      %v762 = vpop.permute.xlu0 %761
      %v765 = vrot.slane %v539, 5
      %v766 = vrot.slane %v541, 5
      %767 = vrot.lane.b32.xlu0 %v765, 17
      %v768 = vpop.permute.xlu0 %767
      %769 = vrot.lane.b32.xlu0 %v766, 17
      %v770 = vpop.permute.xlu0 %769
      %vm771 = vcmask 138240
      %v772 = vsel %vm771, %v768, %v770
      %v774 = vrot.slane %v541, 4
      %775 = vrot.lane.b32.xlu0 %v774, 108
      %v776 = vpop.permute.xlu0 %775
      %v778 = vrot.slane %v541, 3
      %779 = vrot.lane.b32.xlu0 %v778, 71
      %v780 = vpop.permute.xlu0 %779
      %v783 = vrot.slane %v541, 2
      %v784 = vrot.slane %v610, 2
      %785 = vrot.lane.b32.xlu0 %v783, 34
      %v786 = vpop.permute.xlu0 %785
      %787 = vrot.lane.b32.xlu0 %v784, 34
      %v788 = vpop.permute.xlu0 %787
      %vm789 = vcmask 277504
      %v790 = vsel %vm789, %v786, %v788
      %v792 = vrot.slane %v610, 1
      %793 = vrot.lane.b32.xlu0 %v792, 125
      %v794 = vpop.permute.xlu0 %793
      %vm796 = vcmask 1040384
      %v797 = vsel %vm796, %v539, %v758
      %vm798 = vcmask 1041408
      %v799 = vsel %vm798, %v797, %v762
      %vm800 = vcmask 1042432
      %v801 = vsel %vm800, %v799, %v772
      %vm802 = vcmask 1043456
      %v803 = vsel %vm802, %v801, %v776
      %vm804 = vcmask 1044480
      %v805 = vsel %vm804, %v803, %v780
      %vm806 = vcmask 1045504
      %v807 = vsel %vm806, %v805, %v790
      %vm808 = vcmask 1046528
      %v809 = vsel %vm808, %v807, %v794
      %v812 = vcombine.high %v400, %v400
      %v814 = vcombine.low %v400, %v400
      %v815 = vcombine.low %v401, %v401
      %816 = vrot.lane.b32.xlu0 %v814, 127
      %v817 = vpop.permute.xlu0 %816
      %818 = vrot.lane.b32.xlu0 %v400, 127
      %v819 = vpop.permute.xlu0 %818
      %820 = vrot.lane.b32.xlu0 %v815, 127
      %v821 = vpop.permute.xlu0 %820
      %vm822 = vcmask 1039360
      %v823 = vsel %vm822, %v817, %v819
      %v824 = vsel %vm822, %v819, %v821
      %828 = vrot.lane.b32.xlu0 %v400, 126
      %v829 = vpop.permute.xlu0 %828
      %830 = vrot.lane.b32.xlu0 %v812, 126
      %v831 = vpop.permute.xlu0 %830
      %832 = vrot.lane.b32.xlu0 %v401, 126
      %v833 = vpop.permute.xlu0 %832
      %vm834 = vcmask 1031168
      %v835 = vsel %vm834, %v829, %v831
      %v836 = vsel %vm834, %v831, %v833
      %840 = vrot.lane.b32.xlu0 %v814, 110
      %v841 = vpop.permute.xlu0 %840
      %842 = vrot.lane.b32.xlu0 %v400, 110
      %v843 = vpop.permute.xlu0 %842
      %844 = vrot.lane.b32.xlu0 %v815, 110
      %v845 = vpop.permute.xlu0 %844
      %vm846 = vcmask 900096
      %v847 = vsel %vm846, %v841, %v843
      %v848 = vsel %vm846, %v843, %v845
      %852 = vrot.lane.b32.xlu0 %v400, 109
      %v853 = vpop.permute.xlu0 %852
      %854 = vrot.lane.b32.xlu0 %v812, 109
      %v855 = vpop.permute.xlu0 %854
      %856 = vrot.lane.b32.xlu0 %v401, 109
      %v857 = vpop.permute.xlu0 %856
      %vm858 = vcmask 891904
      %v859 = vsel %vm858, %v853, %v855
      %v860 = vsel %vm858, %v855, %v857
      %864 = vrot.lane.b32.xlu0 %v814, 108
      %v865 = vpop.permute.xlu0 %864
      %866 = vrot.lane.b32.xlu0 %v400, 108
      %v867 = vpop.permute.xlu0 %866
      %868 = vrot.lane.b32.xlu0 %v815, 108
      %v869 = vpop.permute.xlu0 %868
      %vm870 = vcmask 883712
      %v871 = vsel %vm870, %v865, %v867
      %v872 = vsel %vm870, %v867, %v869
      %876 = vrot.lane.b32.xlu0 %v400, 92
      %v877 = vpop.permute.xlu0 %876
      %878 = vrot.lane.b32.xlu0 %v812, 92
      %v879 = vpop.permute.xlu0 %878
      %880 = vrot.lane.b32.xlu0 %v401, 92
      %v881 = vpop.permute.xlu0 %880
      %vm882 = vcmask 752640
      %v883 = vsel %vm882, %v877, %v879
      %v884 = vsel %vm882, %v879, %v881
      %888 = vrot.lane.b32.xlu0 %v814, 91
      %v889 = vpop.permute.xlu0 %888
      %890 = vrot.lane.b32.xlu0 %v400, 91
      %v891 = vpop.permute.xlu0 %890
      %892 = vrot.lane.b32.xlu0 %v815, 91
      %v893 = vpop.permute.xlu0 %892
      %vm894 = vcmask 744448
      %v895 = vsel %vm894, %v889, %v891
      %v896 = vsel %vm894, %v891, %v893
      %900 = vrot.lane.b32.xlu0 %v400, 90
      %v901 = vpop.permute.xlu0 %900
      %902 = vrot.lane.b32.xlu0 %v812, 90
      %v903 = vpop.permute.xlu0 %902
      %904 = vrot.lane.b32.xlu0 %v401, 90
      %v905 = vpop.permute.xlu0 %904
      %vm906 = vcmask 736256
      %v907 = vsel %vm906, %v901, %v903
      %v908 = vsel %vm906, %v903, %v905
      %v912 = vsel %vm802, %v400, %v823
      %v913 = vsel %vm802, %v812, %v824
      %v914 = vsel %vm802, %v401, %v821
      %v915 = vsel %vm802, %v835, %v847
      %v916 = vsel %vm802, %v836, %v848
      %v917 = vsel %vm802, %v833, %v845
      %v918 = vsel %vm802, %v859, %v871
      %v919 = vsel %vm802, %v860, %v872
      %v920 = vsel %vm802, %v857, %v869
      %v921 = vsel %vm802, %v883, %v895
      %v922 = vsel %vm802, %v884, %v896
      %v923 = vsel %vm802, %v881, %v893
      %v924 = vsel %vm802, %v907, 1.0
      %v925 = vsel %vm802, %v908, 1.0
      %v926 = vsel %vm802, %v905, 1.0
      %vm927 = vcmask 302080
      %v929 = vsel %vm927, %v809, 0
      %v932 = vsel %vm804, %v924, 0
      %v935 = vsel %vm804, %v925, 0
      %v938 = vsel %vm804, %v926, 0
      %940 = vmatprep.subr.mxu0 %v913
      %941 = vmatpush1.msra.mxu0 %v912
      %942 = vmatprep.subr.mxu0 %v916
      %943 = vmatpush1.msra.mxu0 %v915
      %944 = vmatprep.subr.mxu0 %v919
      %945 = vmatpush1.msra.mxu0 %v918
      %946 = vmatprep.subr.mxu0 %v922
      %947 = vmatpush1.msra.mxu0 %v921
      %948 = vmatprep.subr.mxu0 %v935
      %949 = vmatpush1.msra.mxu0 %v932
      %950 = vmatprep.subr.mxu0 0.0
      %951 = vmatpush1.msra.mxu0 0.0
      %952 = vmatprep.subr.mxu0 0.0
      %953 = vmatpush1.msra.mxu0 0.0
      %954 = vmatprep.subr.mxu0 0.0
      %955 = vmatpush1.msra.mxu0 0.0
      %956 = vmatprep.subr.mxu0 0.0
      %957 = vmatpush1.msra.mxu0 0.0
      %958 = vmatprep.subr.mxu0 0.0
      %959 = vmatpush1.msra.mxu0 0.0
      %960 = vmatprep.subr.mxu0 0.0
      %961 = vmatpush1.msra.mxu0 0.0
      %962 = vmatprep.subr.mxu0 0.0
      %963 = vmatpush1.msra.mxu0 0.0
      %964 = vmatprep.subr.mxu0 0.0
      %965 = vmatpush1.msra.mxu0 0.0
      %966 = vmatprep.subr.mxu0 0.0
      %967 = vmatpush1.msra.mxu0 0.0
      %968 = vmatprep.subr.mxu0 0.0
      %969 = vmatpush1.msra.mxu0 0.0
      %970 = vmatprep.subr.mxu0 0.0
      %971 = vmatpush1.msra.mxu0 0.0
      %972 = vmatprep.subr.mxu0 0.0
      %973 = vmatpush1.msra.mxu0 0.0
      %974 = vmatprep.subr.mxu0 0.0
      %975 = vmatpush1.msra.mxu0 0.0
      %976 = vmatprep.subr.mxu0 0.0
      %977 = vmatpush1.msra.mxu0 0.0
      %978 = vmatprep.subr.mxu0 0.0
      %979 = vmatpush1.msra.mxu0 0.0
      %980 = vmatprep.subr.mxu0 0.0
      %981 = vmatpush1.msra.mxu0 0.0
      %982 = vmatprep.subr.mxu0 0.0
      %983 = vmatpush1.msra.mxu0 0.0
      %984 = vmatprep.subr.mxu0 0.0
      %985 = vmatpush1.msra.mxu0 0.0
      %986 = vmatprep.subr.mxu0 0.0
      %987 = vmatpush1.msra.mxu0 0.0
      %988 = vmatprep.subr.mxu0 0.0
      %989 = vmatpush1.msra.mxu0 0.0
      %990 = vmatprep.subr.mxu0 0.0
      %991 = vmatpush1.msra.mxu0 0.0
      %992 = vmatprep.subr.mxu0 0.0
      %993 = vmatpush1.msra.mxu0 0.0
      %994 = vmatprep.subr.mxu0 0.0
      %995 = vmatpush1.msra.mxu0 0.0
      %996 = vmatprep.subr.mxu0 0.0
      %997 = vmatpush1.msra.mxu0 0.0
      %998 = vmatprep.subr.mxu0 0.0
      %999 = vmatpush1.msra.mxu0 0.0
      %1000 = vmatprep.subr.mxu0 0.0
      %1001 = vmatpush1.msra.mxu0 0.0
      %1002 = vmatprep.subr.mxu0 0.0
      %1003 = vmatpush1.msra.mxu0 0.0
      %1004 = vmatprep.mubr.f32.mxu0 0.0
      %1005 = vmatmul.mubr.f32.gmra.mrb[0].mxu0 %v929
      %v1006 = vpop.f32.mrb[0].mxu0
      %v1007 = vadd.f32 0.0, %v1006
      %v1008 = vpop.f32.mrb[0].mxu0
      %v1009 = vadd.f32 0.0, %v1008
      %1010 = vdwg.mxu0
      %1011 = vmatprep.subr.mxu0 0.0
      %1012 = vmatpush1.msra.mxu0 %v914
      %1013 = vmatprep.subr.mxu0 0.0
      %1014 = vmatpush1.msra.mxu0 %v917
      %1015 = vmatprep.subr.mxu0 0.0
      %1016 = vmatpush1.msra.mxu0 %v920
      %1017 = vmatprep.subr.mxu0 0.0
      %1018 = vmatpush1.msra.mxu0 %v923
      %1019 = vmatprep.subr.mxu0 0.0
      %1020 = vmatpush1.msra.mxu0 %v938
      %1021 = vmatprep.subr.mxu0 0.0
      %1022 = vmatpush1.msra.mxu0 0.0
      %1023 = vmatprep.subr.mxu0 0.0
      %1024 = vmatpush1.msra.mxu0 0.0
      %1025 = vmatprep.subr.mxu0 0.0
      %1026 = vmatpush1.msra.mxu0 0.0
      %1027 = vmatprep.subr.mxu0 0.0
      %1028 = vmatpush1.msra.mxu0 0.0
      %1029 = vmatprep.subr.mxu0 0.0
      %1030 = vmatpush1.msra.mxu0 0.0
      %1031 = vmatprep.subr.mxu0 0.0
      %1032 = vmatpush1.msra.mxu0 0.0
      %1033 = vmatprep.subr.mxu0 0.0
      %1034 = vmatpush1.msra.mxu0 0.0
      %1035 = vmatprep.subr.mxu0 0.0
      %1036 = vmatpush1.msra.mxu0 0.0
      %1037 = vmatprep.subr.mxu0 0.0
      %1038 = vmatpush1.msra.mxu0 0.0
      %1039 = vmatprep.subr.mxu0 0.0
      %1040 = vmatpush1.msra.mxu0 0.0
      %1041 = vmatprep.subr.mxu0 0.0
      %1042 = vmatpush1.msra.mxu0 0.0
      %1043 = vmatprep.subr.mxu0 0.0
      %1044 = vmatpush1.msra.mxu0 0.0
      %1045 = vmatprep.subr.mxu0 0.0
      %1046 = vmatpush1.msra.mxu0 0.0
      %1047 = vmatprep.subr.mxu0 0.0
      %1048 = vmatpush1.msra.mxu0 0.0
      %1049 = vmatprep.subr.mxu0 0.0
      %1050 = vmatpush1.msra.mxu0 0.0
      %1051 = vmatprep.subr.mxu0 0.0
      %1052 = vmatpush1.msra.mxu0 0.0
      %1053 = vmatprep.subr.mxu0 0.0
      %1054 = vmatpush1.msra.mxu0 0.0
      %1055 = vmatprep.subr.mxu0 0.0
      %1056 = vmatpush1.msra.mxu0 0.0
      %1057 = vmatprep.subr.mxu0 0.0
      %1058 = vmatpush1.msra.mxu0 0.0
      %1059 = vmatprep.subr.mxu0 0.0
      %1060 = vmatpush1.msra.mxu0 0.0
      %1061 = vmatprep.subr.mxu0 0.0
      %1062 = vmatpush1.msra.mxu0 0.0
      %1063 = vmatprep.subr.mxu0 0.0
      %1064 = vmatpush1.msra.mxu0 0.0
      %1065 = vmatprep.subr.mxu0 0.0
      %1066 = vmatpush1.msra.mxu0 0.0
      %1067 = vmatprep.subr.mxu0 0.0
      %1068 = vmatpush1.msra.mxu0 0.0
      %1069 = vmatprep.subr.mxu0 0.0
      %1070 = vmatpush1.msra.mxu0 0.0
      %1071 = vmatprep.subr.mxu0 0.0
      %1072 = vmatpush1.msra.mxu0 0.0
      %1073 = vmatprep.subr.mxu0 0.0
      %1074 = vmatpush1.msra.mxu0 0.0
      %1075 = vmatprep.mubr.f32.mxu0 0.0
      %1076 = vmatmul.mubr.f32.gmra.mrb[0].mxu0 %v929
      %v1077 = vpop.f32.mrb[0].mxu0
      %v1078 = vadd.f32 0.0, %v1077
      %v1079 = vpop.f32.mrb[0].mxu0
      %1080 = vdwg.mxu0
      %v1081 = vmax.f32 %v1007, 0.0
      %v1082 = vmax.f32 %v1009, 0.0
      %v1083 = vmax.f32 %v1078, 0.0
      %v1085 = vlaneseq
      %v1086 = vshrl.u32 %v1085, 7
      %v1087 = vsub.s32 0, %v1086
      %v1088 = vrot.slane %v402, %v1087
      %v1089 = vlaneseq
      %v1090 = vshrl.u32 %v1089, 7
      %v1091 = vsub.s32 1, %v1090
      %v1092 = vrot.slane %v402, %v1091
      %v1093 = vlaneseq
      %v1094 = vshrl.u32 %v1093, 7
      %v1095 = vsub.s32 2, %v1094
      %v1096 = vrot.slane %v402, %v1095
      %v1100 = vmul.f32 %v1081, %v1088
      %v1101 = vmul.f32 %v1082, %v1092
      %v1102 = vmul.f32 %v1083, %v1096
      %1106 = vrot.lane.b32.xlu0 %v1100, 19
      %v1107 = vpop.permute.xlu0 %1106
      %1108 = vrot.lane.b32.xlu0 %v1101, 19
      %v1109 = vpop.permute.xlu0 %1108
      %1110 = vrot.lane.b32.xlu0 %v1102, 19
      %v1111 = vpop.permute.xlu0 %1110
      %vm1112 = vcmask 154624
      %v1113 = vsel %vm1112, %v1107, %v1109
      %v1114 = vsel %vm1112, %v1109, %v1111
      %v1118 = vsel %vm1112, 0.0, %v1107
      %vm1119 = vcmask 711680
      %v1120 = vsel %vm1119, %v1114, 0.0
      %v1122 = vrot.slane %v610, 7
      %v1123 = vrot.slane %v612, 7
      %1124 = vrot.lane.b32.xlu0 %v1122, 55
      %v1125 = vpop.permute.xlu0 %1124
      %1126 = vrot.lane.b32.xlu0 %v1123, 55
      %v1127 = vpop.permute.xlu0 %1126
      %vm1128 = vcmask 449536
      %v1129 = vsel %vm1128, %v1125, %v1127
      %v1132 = vrot.slane %v612, 6
      %v1133 = vrot.slane %v681, 6
      %1134 = vrot.lane.b32.xlu0 %v1132, 110
      %v1135 = vpop.permute.xlu0 %1134
      %1136 = vrot.lane.b32.xlu0 %v1133, 110
      %v1137 = vpop.permute.xlu0 %1136
      %v1138 = vsel %vm846, %v1135, %v1137
      %v1140 = vrot.slane %v681, 5
      %1141 = vrot.lane.b32.xlu0 %v1140, 37
      %v1142 = vpop.permute.xlu0 %1141
      %v1145 = vrot.slane %v681, 4
      %v1146 = vrot.slane %v683, 4
      %1147 = vrot.lane.b32.xlu0 %v1145, 92
      %v1148 = vpop.permute.xlu0 %1147
      %1149 = vrot.lane.b32.xlu0 %v1146, 92
      %v1150 = vpop.permute.xlu0 %1149
      %v1151 = vsel %vm882, %v1148, %v1150
      %v1153 = vrot.slane %v683, 3
      %1154 = vrot.lane.b32.xlu0 %v1153, 19
      %v1155 = vpop.permute.xlu0 %1154
      %v1158 = vrot.slane %v683, 2
      %v1159 = vrot.slane %v752, 2
      %1160 = vrot.lane.b32.xlu0 %v1158, 74
      %v1161 = vpop.permute.xlu0 %1160
      %1162 = vrot.lane.b32.xlu0 %v1159, 74
      %v1163 = vpop.permute.xlu0 %1162
      %vm1164 = vcmask 605184
      %v1165 = vsel %vm1164, %v1161, %v1163
      %v1167 = vrot.slane %v752, 1
      %1168 = vrot.lane.b32.xlu0 %v1167, 1
      %v1169 = vpop.permute.xlu0 %1168
      %v1171 = vsel %vm796, %v610, %v1129
      %v1172 = vsel %vm798, %v1171, %v1138
      %v1173 = vsel %vm800, %v1172, %v1142
      %v1174 = vsel %vm802, %v1173, %v1151
      %v1175 = vsel %vm804, %v1174, %v1155
      %v1176 = vsel %vm806, %v1175, %v1165
      %v1177 = vsel %vm808, %v1176, %v1169
      %1180 = vrot.lane.b32.xlu0 %v1118, 127
      %v1181 = vpop.permute.xlu0 %1180
      %1182 = vrot.lane.b32.xlu0 %v1113, 127
      %v1183 = vpop.permute.xlu0 %1182
      %1184 = vrot.lane.b32.xlu0 %v1120, 127
      %v1185 = vpop.permute.xlu0 %1184
      %v1186 = vsel %vm822, %v1181, %v1183
      %v1187 = vsel %vm822, %v1183, %v1185
      %1191 = vrot.lane.b32.xlu0 %v1118, 126
      %v1192 = vpop.permute.xlu0 %1191
      %1193 = vrot.lane.b32.xlu0 %v1113, 126
      %v1194 = vpop.permute.xlu0 %1193
      %1195 = vrot.lane.b32.xlu0 %v1120, 126
      %v1196 = vpop.permute.xlu0 %1195
      %v1197 = vsel %vm834, %v1192, %v1194
      %v1198 = vsel %vm834, %v1194, %v1196
      %1202 = vrot.lane.b32.xlu0 %v1118, 110
      %v1203 = vpop.permute.xlu0 %1202
      %1204 = vrot.lane.b32.xlu0 %v1113, 110
      %v1205 = vpop.permute.xlu0 %1204
      %1206 = vrot.lane.b32.xlu0 %v1120, 110
      %v1207 = vpop.permute.xlu0 %1206
      %v1208 = vsel %vm846, %v1203, %v1205
      %v1209 = vsel %vm846, %v1205, %v1207
      %1213 = vrot.lane.b32.xlu0 %v1118, 109
      %v1214 = vpop.permute.xlu0 %1213
      %1215 = vrot.lane.b32.xlu0 %v1113, 109
      %v1216 = vpop.permute.xlu0 %1215
      %1217 = vrot.lane.b32.xlu0 %v1120, 109
      %v1218 = vpop.permute.xlu0 %1217
      %v1219 = vsel %vm858, %v1214, %v1216
      %v1220 = vsel %vm858, %v1216, %v1218
      %1224 = vrot.lane.b32.xlu0 %v1118, 108
      %v1225 = vpop.permute.xlu0 %1224
      %1226 = vrot.lane.b32.xlu0 %v1113, 108
      %v1227 = vpop.permute.xlu0 %1226
      %1228 = vrot.lane.b32.xlu0 %v1120, 108
      %v1229 = vpop.permute.xlu0 %1228
      %v1230 = vsel %vm870, %v1225, %v1227
      %v1231 = vsel %vm870, %v1227, %v1229
      %1235 = vrot.lane.b32.xlu0 %v1118, 92
      %v1236 = vpop.permute.xlu0 %1235
      %1237 = vrot.lane.b32.xlu0 %v1113, 92
      %v1238 = vpop.permute.xlu0 %1237
      %1239 = vrot.lane.b32.xlu0 %v1120, 92
      %v1240 = vpop.permute.xlu0 %1239
      %v1241 = vsel %vm882, %v1236, %v1238
      %v1242 = vsel %vm882, %v1238, %v1240
      %1246 = vrot.lane.b32.xlu0 %v1118, 91
      %v1247 = vpop.permute.xlu0 %1246
      %1248 = vrot.lane.b32.xlu0 %v1113, 91
      %v1249 = vpop.permute.xlu0 %1248
      %1250 = vrot.lane.b32.xlu0 %v1120, 91
      %v1251 = vpop.permute.xlu0 %1250
      %v1252 = vsel %vm894, %v1247, %v1249
      %v1253 = vsel %vm894, %v1249, %v1251
      %1257 = vrot.lane.b32.xlu0 %v1118, 90
      %v1258 = vpop.permute.xlu0 %1257
      %1259 = vrot.lane.b32.xlu0 %v1113, 90
      %v1260 = vpop.permute.xlu0 %1259
      %1261 = vrot.lane.b32.xlu0 %v1120, 90
      %v1262 = vpop.permute.xlu0 %1261
      %v1263 = vsel %vm906, %v1258, %v1260
      %v1264 = vsel %vm906, %v1260, %v1262
      %1269 = vrot.lane.b32.xlu0 %v1177, 88
      %v1270 = vpop.permute.xlu0 %1269
      %vm1271 = vcmask 596992
      %v1272 = vsel %vm1271, %v1270, 0
      %v1275 = vsel %vm796, 1.0, 0
      %1277 = vmatprep.subr.mxu0 %v1113
      %1278 = vmatpush1.msra.mxu0 %v1118
      %1279 = vmatprep.subr.mxu0 %v1187
      %1280 = vmatpush1.msra.mxu0 %v1186
      %1281 = vmatprep.subr.mxu0 %v1198
      %1282 = vmatpush1.msra.mxu0 %v1197
      %1283 = vmatprep.subr.mxu0 %v1209
      %1284 = vmatpush1.msra.mxu0 %v1208
      %1285 = vmatprep.subr.mxu0 %v1220
      %1286 = vmatpush1.msra.mxu0 %v1219
      %1287 = vmatprep.subr.mxu0 %v1231
      %1288 = vmatpush1.msra.mxu0 %v1230
      %1289 = vmatprep.subr.mxu0 %v1242
      %1290 = vmatpush1.msra.mxu0 %v1241
      %1291 = vmatprep.subr.mxu0 %v1253
      %1292 = vmatpush1.msra.mxu0 %v1252
      %1293 = vmatprep.subr.mxu0 %v1264
      %1294 = vmatpush1.msra.mxu0 %v1263
      %1295 = vmatprep.subr.mxu0 %v1275
      %1296 = vmatpush1.msra.mxu0 %v1275
      %1297 = vmatprep.subr.mxu0 0.0
      %1298 = vmatpush1.msra.mxu0 0.0
      %1299 = vmatprep.subr.mxu0 0.0
      %1300 = vmatpush1.msra.mxu0 0.0
      %1301 = vmatprep.subr.mxu0 0.0
      %1302 = vmatpush1.msra.mxu0 0.0
      %1303 = vmatprep.subr.mxu0 0.0
      %1304 = vmatpush1.msra.mxu0 0.0
      %1305 = vmatprep.subr.mxu0 0.0
      %1306 = vmatpush1.msra.mxu0 0.0
      %1307 = vmatprep.subr.mxu0 0.0
      %1308 = vmatpush1.msra.mxu0 0.0
      %1309 = vmatprep.subr.mxu0 0.0
      %1310 = vmatpush1.msra.mxu0 0.0
      %1311 = vmatprep.subr.mxu0 0.0
      %1312 = vmatpush1.msra.mxu0 0.0
      %1313 = vmatprep.subr.mxu0 0.0
      %1314 = vmatpush1.msra.mxu0 0.0
      %1315 = vmatprep.subr.mxu0 0.0
      %1316 = vmatpush1.msra.mxu0 0.0
      %1317 = vmatprep.subr.mxu0 0.0
      %1318 = vmatpush1.msra.mxu0 0.0
      %1319 = vmatprep.subr.mxu0 0.0
      %1320 = vmatpush1.msra.mxu0 0.0
      %1321 = vmatprep.subr.mxu0 0.0
      %1322 = vmatpush1.msra.mxu0 0.0
      %1323 = vmatprep.subr.mxu0 0.0
      %1324 = vmatpush1.msra.mxu0 0.0
      %1325 = vmatprep.subr.mxu0 0.0
      %1326 = vmatpush1.msra.mxu0 0.0
      %1327 = vmatprep.subr.mxu0 0.0
      %1328 = vmatpush1.msra.mxu0 0.0
      %1329 = vmatprep.subr.mxu0 0.0
      %1330 = vmatpush1.msra.mxu0 0.0
      %1331 = vmatprep.subr.mxu0 0.0
      %1332 = vmatpush1.msra.mxu0 0.0
      %1333 = vmatprep.subr.mxu0 0.0
      %1334 = vmatpush1.msra.mxu0 0.0
      %1335 = vmatprep.subr.mxu0 0.0
      %1336 = vmatpush1.msra.mxu0 0.0
      %1337 = vmatprep.subr.mxu0 0.0
      %1338 = vmatpush1.msra.mxu0 0.0
      %1339 = vmatprep.subr.mxu0 0.0
      %1340 = vmatpush1.msra.mxu0 0.0
      %1341 = vmatprep.mubr.f32.mxu0 0.0
      %1342 = vmatmul.mubr.f32.gmra.mrb[0].mxu0 %v1272
      %v1343 = vpop.f32.mrb[0].mxu0
      %v1344 = vadd.f32 0.0, %v1343
      %v1345 = vpop.f32.mrb[0].mxu0
      %v1346 = vadd.f32 0.0, %v1345
      %1347 = vdwg.mxu0
      %1348 = vmatprep.subr.mxu0 0.0
      %1349 = vmatpush1.msra.mxu0 %v1120
      %1350 = vmatprep.subr.mxu0 0.0
      %1351 = vmatpush1.msra.mxu0 %v1185
      %1352 = vmatprep.subr.mxu0 0.0
      %1353 = vmatpush1.msra.mxu0 %v1196
      %1354 = vmatprep.subr.mxu0 0.0
      %1355 = vmatpush1.msra.mxu0 %v1207
      %1356 = vmatprep.subr.mxu0 0.0
      %1357 = vmatpush1.msra.mxu0 %v1218
      %1358 = vmatprep.subr.mxu0 0.0
      %1359 = vmatpush1.msra.mxu0 %v1229
      %1360 = vmatprep.subr.mxu0 0.0
      %1361 = vmatpush1.msra.mxu0 %v1240
      %1362 = vmatprep.subr.mxu0 0.0
      %1363 = vmatpush1.msra.mxu0 %v1251
      %1364 = vmatprep.subr.mxu0 0.0
      %1365 = vmatpush1.msra.mxu0 %v1262
      %1366 = vmatprep.subr.mxu0 0.0
      %1367 = vmatpush1.msra.mxu0 %v1275
      %1368 = vmatprep.subr.mxu0 0.0
      %1369 = vmatpush1.msra.mxu0 0.0
      %1370 = vmatprep.subr.mxu0 0.0
      %1371 = vmatpush1.msra.mxu0 0.0
      %1372 = vmatprep.subr.mxu0 0.0
      %1373 = vmatpush1.msra.mxu0 0.0
      %1374 = vmatprep.subr.mxu0 0.0
      %1375 = vmatpush1.msra.mxu0 0.0
      %1376 = vmatprep.subr.mxu0 0.0
      %1377 = vmatpush1.msra.mxu0 0.0
      %1378 = vmatprep.subr.mxu0 0.0
      %1379 = vmatpush1.msra.mxu0 0.0
      %1380 = vmatprep.subr.mxu0 0.0
      %1381 = vmatpush1.msra.mxu0 0.0
      %1382 = vmatprep.subr.mxu0 0.0
      %1383 = vmatpush1.msra.mxu0 0.0
      %1384 = vmatprep.subr.mxu0 0.0
      %1385 = vmatpush1.msra.mxu0 0.0
      %1386 = vmatprep.subr.mxu0 0.0
      %1387 = vmatpush1.msra.mxu0 0.0
      %1388 = vmatprep.subr.mxu0 0.0
      %1389 = vmatpush1.msra.mxu0 0.0
      %1390 = vmatprep.subr.mxu0 0.0
      %1391 = vmatpush1.msra.mxu0 0.0
      %1392 = vmatprep.subr.mxu0 0.0
      %1393 = vmatpush1.msra.mxu0 0.0
      %1394 = vmatprep.subr.mxu0 0.0
      %1395 = vmatpush1.msra.mxu0 0.0
      %1396 = vmatprep.subr.mxu0 0.0
      %1397 = vmatpush1.msra.mxu0 0.0
      %1398 = vmatprep.subr.mxu0 0.0
      %1399 = vmatpush1.msra.mxu0 0.0
      %1400 = vmatprep.subr.mxu0 0.0
      %1401 = vmatpush1.msra.mxu0 0.0
      %1402 = vmatprep.subr.mxu0 0.0
      %1403 = vmatpush1.msra.mxu0 0.0
      %1404 = vmatprep.subr.mxu0 0.0
      %1405 = vmatpush1.msra.mxu0 0.0
      %1406 = vmatprep.subr.mxu0 0.0
      %1407 = vmatpush1.msra.mxu0 0.0
      %1408 = vmatprep.subr.mxu0 0.0
      %1409 = vmatpush1.msra.mxu0 0.0
      %1410 = vmatprep.subr.mxu0 0.0
      %1411 = vmatpush1.msra.mxu0 0.0
      %1412 = vmatprep.mubr.f32.mxu0 0.0
      %1413 = vmatmul.mubr.f32.gmra.mrb[0].mxu0 %v1272
      %v1414 = vpop.f32.mrb[0].mxu0
      %v1415 = vadd.f32 0.0, %v1414
      %v1416 = vpop.f32.mrb[0].mxu0
      %1417 = vdwg.mxu0
      %v1418 = vmax.f32 %v1344, 0.0
      %v1419 = vmax.f32 %v1346, 0.0
      %v1420 = vmax.f32 %v1415, 0.0
      %v1421 = vmul.f32 %v1418, %v1088
      %v1422 = vmul.f32 %v1419, %v1092
      %v1423 = vmul.f32 %v1420, %v1096
      %v1427 = vrot.slane %v1421, 1
      %v1428 = vrot.slane %v1422, 1
      %v1429 = vrot.slane %v1423, 1
      %1430 = vrot.lane.b32.xlu0 %v1427, 68
      %v1431 = vpop.permute.xlu0 %1430
      %1432 = vrot.lane.b32.xlu0 %v1428, 68
      %v1433 = vpop.permute.xlu0 %1432
      %1434 = vrot.lane.b32.xlu0 %v1429, 68
      %v1435 = vpop.permute.xlu0 %1434
      %vm1436 = vcmask 556032
      %v1437 = vsel %vm1436, %v1431, %v1433
      %v1438 = vsel %vm1436, %v1433, %v1435
      %v1443 = vrot.slane %v1421, 2
      %v1444 = vrot.slane %v1422, 2
      %v1445 = vrot.slane %v1423, 2
      %1446 = vrot.lane.b32.xlu0 %v1443, 8
      %v1447 = vpop.permute.xlu0 %1446
      %1448 = vrot.lane.b32.xlu0 %v1444, 8
      %v1449 = vpop.permute.xlu0 %1448
      %1450 = vrot.lane.b32.xlu0 %v1445, 8
      %v1451 = vpop.permute.xlu0 %1450
      %vm1452 = vcmask 64512
      %v1453 = vsel %vm1452, %v1447, %v1449
      %v1454 = vsel %vm1452, %v1449, %v1451
      %v1458 = vrot.slane %v1421, 3
      %v1459 = vrot.slane %v1422, 3
      %v1460 = vrot.slane %v1423, 3
      %1461 = vrot.lane.b32.xlu0 %v1458, 76
      %v1462 = vpop.permute.xlu0 %1461
      %1463 = vrot.lane.b32.xlu0 %v1459, 76
      %v1464 = vpop.permute.xlu0 %1463
      %1465 = vrot.lane.b32.xlu0 %v1460, 76
      %v1466 = vpop.permute.xlu0 %1465
      %vm1467 = vcmask 621568
      %v1468 = vsel %vm1467, %v1462, %v1464
      %v1469 = vsel %vm1467, %v1464, %v1466
      %v1474 = vrot.slane %v1421, 4
      %v1475 = vrot.slane %v1422, 4
      %v1476 = vrot.slane %v1423, 4
      %1477 = vrot.lane.b32.xlu0 %v1474, 16
      %v1478 = vpop.permute.xlu0 %1477
      %1479 = vrot.lane.b32.xlu0 %v1475, 16
      %v1480 = vpop.permute.xlu0 %1479
      %1481 = vrot.lane.b32.xlu0 %v1476, 16
      %v1482 = vpop.permute.xlu0 %1481
      %vm1483 = vcmask 130048
      %v1484 = vsel %vm1483, %v1478, %v1480
      %v1485 = vsel %vm1483, %v1480, %v1482
      %v1489 = vrot.slane %v1421, 5
      %v1490 = vrot.slane %v1422, 5
      %v1491 = vrot.slane %v1423, 5
      %1492 = vrot.lane.b32.xlu0 %v1489, 84
      %v1493 = vpop.permute.xlu0 %1492
      %1494 = vrot.lane.b32.xlu0 %v1490, 84
      %v1495 = vpop.permute.xlu0 %1494
      %1496 = vrot.lane.b32.xlu0 %v1491, 84
      %v1497 = vpop.permute.xlu0 %1496
      %vm1498 = vcmask 687104
      %v1499 = vsel %vm1498, %v1493, %v1495
      %v1500 = vsel %vm1498, %v1495, %v1497
      %v1505 = vrot.slane %v1421, 6
      %v1506 = vrot.slane %v1422, 6
      %v1507 = vrot.slane %v1423, 6
      %1508 = vrot.lane.b32.xlu0 %v1505, 24
      %v1509 = vpop.permute.xlu0 %1508
      %1510 = vrot.lane.b32.xlu0 %v1506, 24
      %v1511 = vpop.permute.xlu0 %1510
      %1512 = vrot.lane.b32.xlu0 %v1507, 24
      %v1513 = vpop.permute.xlu0 %1512
      %vm1514 = vcmask 195584
      %v1515 = vsel %vm1514, %v1509, %v1511
      %v1516 = vsel %vm1514, %v1511, %v1513
      %v1520 = vrot.slane %v1421, 7
      %v1521 = vrot.slane %v1422, 7
      %v1522 = vrot.slane %v1423, 7
      %1523 = vrot.lane.b32.xlu0 %v1520, 92
      %v1524 = vpop.permute.xlu0 %1523
      %1525 = vrot.lane.b32.xlu0 %v1521, 92
      %v1526 = vpop.permute.xlu0 %1525
      %1527 = vrot.lane.b32.xlu0 %v1522, 92
      %v1528 = vpop.permute.xlu0 %1527
      %v1529 = vsel %vm882, %v1524, %v1526
      %v1530 = vsel %vm882, %v1526, %v1528
      %v1534 = vsel %vm1436, %v1423, %v1431
      %v1535 = vsel %vm1452, %v1435, %v1447
      %v1536 = vsel %vm1467, %v1454, %v1462
      %v1537 = vsel %vm1483, %v1466, %v1478
      %v1538 = vsel %vm1498, %v1485, %v1493
      %v1539 = vsel %vm1514, %v1497, %v1509
      %v1540 = vsel %vm882, %v1516, %v1524
      %v1541 = vld [vmem:[%s5] sm:$0xff]
      %v1542 = vld [vmem:[%s5 + $0x8] sm:$0xff]
      %v1543 = vld [vmem:[%s5 + $0x10] sm:$0xff]
      %v1544 = vld [vmem:[%s5 + $0x18] sm:$0xff]
      %v1545 = vld [vmem:[%s5 + $0x20] sm:$0xff]
      %v1546 = vld [vmem:[%s5 + $0x28] sm:$0xff]
      %v1547 = vld [vmem:[%s5 + $0x30] sm:$0xff]
      %v1548 = vld [vmem:[%s5 + $0x38] sm:$0xff]
      %v1549 = vld [vmem:[%s5 + $0x40] sm:$0xff]
      %v1550 = vld [vmem:[%s5 + $0x48] sm:$0xff]
      %v1551 = vld [vmem:[%s5 + $0x50] sm:$0xff]
      %v1552 = vld [vmem:[%s5 + $0x58] sm:$0xff]
      %v1553 = vld [vmem:[%s5 + $0x60] sm:$0xff]
      %v1554 = vld [vmem:[%s5 + $0x68] sm:$0xff]
      %v1555 = vld [vmem:[%s5 + $0x70] sm:$0xff]
      %v1556 = vld [vmem:[%s5 + $0x78] sm:$0xff]
      %v1557 = vld [vmem:[%s5 + $0x80] sm:$0xff]
      %v1558 = vld [vmem:[%s5 + $0x88] sm:$0xff]
      %v1559 = vld [vmem:[%s5 + $0x90] sm:$0xff]
      %v1560 = vld [vmem:[%s5 + $0x98] sm:$0xff]
      %v1561 = vld [vmem:[%s5 + $0xa0] sm:$0xff]
      %v1562 = vld [vmem:[%s5 + $0xa8] sm:$0xff]
      %v1563 = vld [vmem:[%s5 + $0xb0] sm:$0xff]
      %v1564 = vld [vmem:[%s5 + $0xb8] sm:$0xff]
      %v1565 = vld [vmem:[%s5 + $0xc0] sm:$0xff]
      %v1566 = vld [vmem:[%s5 + $0xc8] sm:$0xff]
      %v1567 = vld [vmem:[%s5 + $0xd0] sm:$0xff]
      %v1568 = vld [vmem:[%s5 + $0xd8] sm:$0xff]
      %v1569 = vld [vmem:[%s5 + $0xe0] sm:$0xff]
      %v1570 = vld [vmem:[%s5 + $0xe8] sm:$0xff]
      %v1571 = vld [vmem:[%s5 + $0xf0] sm:$0xff]
      %v1572 = vld [vmem:[%s5 + $0xf8] sm:$0xff]
      %v1573 = vld [vmem:[%s5 + $0x100] sm:$0xff]
      %v1574 = vld [vmem:[%s5 + $0x108] sm:$0xff]
      %v1575 = vld [vmem:[%s5 + $0x110] sm:$0xff]
      %v1576 = vld [vmem:[%s5 + $0x118] sm:$0xff]
      %v1577 = vld [vmem:[%s5 + $0x120] sm:$0xff]
      %v1578 = vld [vmem:[%s5 + $0x128] sm:$0xff]
      %v1579 = vld [vmem:[%s5 + $0x130] sm:$0xff]
      %v1580 = vld [vmem:[%s5 + $0x138] sm:$0xff]
      %v1581 = vld [vmem:[%s5 + $0x140] sm:$0xff]
      %v1582 = vld [vmem:[%s5 + $0x148] sm:$0xff]
      %v1583 = vld [vmem:[%s5 + $0x150] sm:$0xff]
      %v1584 = vld [vmem:[%s5 + $0x158] sm:$0xff]
      %v1585 = vld [vmem:[%s5 + $0x160] sm:$0xff]
      %v1586 = vld [vmem:[%s5 + $0x168] sm:$0xff]
      %v1587 = vld [vmem:[%s5 + $0x170] sm:$0xff]
      %v1588 = vld [vmem:[%s5 + $0x178] sm:$0xff]
      %v1589 = vld [vmem:[%s5 + $0x180] sm:$0xff]
      %v1590 = vld [vmem:[%s5 + $0x188] sm:$0xff]
      %v1591 = vld [vmem:[%s5 + $0x190] sm:$0xff]
      %v1592 = vld [vmem:[%s5 + $0x198] sm:$0xff]
      %v1593 = vld [vmem:[%s5 + $0x1a0] sm:$0xff]
      %v1594 = vld [vmem:[%s5 + $0x1a8] sm:$0xff]
      %v1595 = vld [vmem:[%s5 + $0x1b0] sm:$0xff]
      %v1596 = vld [vmem:[%s5 + $0x1b8] sm:$0xff]
      %v1597 = vld [vmem:[%s5 + $0x1c0] sm:$0xff]
      %v1598 = vld [vmem:[%s5 + $0x1c8] sm:$0xff]
      %v1599 = vld [vmem:[%s5 + $0x1d0] sm:$0xff]
      %v1600 = vld [vmem:[%s5 + $0x1d8] sm:$0xff]
      %v1601 = vld [vmem:[%s5 + $0x1e0] sm:$0xff]
      %v1602 = vld [vmem:[%s5 + $0x1e8] sm:$0xff]
      %v1603 = vld [vmem:[%s5 + $0x1f0] sm:$0xff]
      %v1604 = vld [vmem:[%s5 + $0x1f8] sm:$0xff]
      %v1605 = vld [vmem:[%s5 + $0x200] sm:$0xff]
      %v1606 = vld [vmem:[%s5 + $0x208] sm:$0xff]
      %v1607 = vld [vmem:[%s5 + $0x210] sm:$0xff]
      %v1608 = vld [vmem:[%s5 + $0x218] sm:$0xff]
      %v1609 = vld [vmem:[%s5 + $0x220] sm:$0xff]
      %v1610 = vld [vmem:[%s5 + $0x228] sm:$0xff]
      %v1611 = vld [vmem:[%s5 + $0x230] sm:$0xff]
      %v1612 = vld [vmem:[%s5 + $0x238] sm:$0xff]
      %v1613 = vld [vmem:[%s5 + $0x240] sm:$0xff]
      %v1614 = vld [vmem:[%s5 + $0x248] sm:$0xff]
      %v1615 = vld [vmem:[%s5 + $0x250] sm:$0xff]
      %v1616 = vld [vmem:[%s5 + $0x258] sm:$0xff]
      %v1617 = vld [vmem:[%s5 + $0x260] sm:$0xff]
      %v1618 = vld [vmem:[%s5 + $0x268] sm:$0xff]
      %v1619 = vld [vmem:[%s5 + $0x270] sm:$0xff]
      %v1620 = vld [vmem:[%s5 + $0x278] sm:$0xff]
      %v1621 = vld [vmem:[%s5 + $0x280] sm:$0xff]
      %v1622 = vld [vmem:[%s5 + $0x288] sm:$0xff]
      %v1623 = vld [vmem:[%s5 + $0x290] sm:$0xff]
      %v1624 = vld [vmem:[%s5 + $0x298] sm:$0xff]
      %v1625 = vld [vmem:[%s5 + $0x2a0] sm:$0xff]
      %v1626 = vld [vmem:[%s5 + $0x2a8] sm:$0xff]
      %v1627 = vld [vmem:[%s5 + $0x2b0] sm:$0xff]
      %v1628 = vld [vmem:[%s5 + $0x2b8] sm:$0xff]
      %v1629 = vld [vmem:[%s5 + $0x2c0] sm:$0xff]
      %v1630 = vld [vmem:[%s5 + $0x2c8] sm:$0xff]
      %v1631 = vld [vmem:[%s5 + $0x2d0] sm:$0xff]
      %v1632 = vld [vmem:[%s5 + $0x2d8] sm:$0xff]
      %v1633 = vld [vmem:[%s5 + $0x2e0] sm:$0xff]
      %v1634 = vld [vmem:[%s5 + $0x2e8] sm:$0xff]
      %v1635 = vld [vmem:[%s5 + $0x2f0] sm:$0xff]
      %v1636 = vld [vmem:[%s5 + $0x2f8] sm:$0xff]
      %v1637 = vld [vmem:[%s5 + $0x300] sm:$0xff]
      %v1638 = vld [vmem:[%s5 + $0x308] sm:$0xff]
      %v1639 = vld [vmem:[%s5 + $0x310] sm:$0xff]
      %v1640 = vld [vmem:[%s5 + $0x318] sm:$0xff]
      %v1641 = vld [vmem:[%s5 + $0x320] sm:$0xff]
      %v1642 = vld [vmem:[%s5 + $0x328] sm:$0xff]
      %v1643 = vld [vmem:[%s5 + $0x330] sm:$0xff]
      %v1644 = vld [vmem:[%s5 + $0x338] sm:$0xff]
      %v1645 = vld [vmem:[%s5 + $0x340] sm:$0xff]
      %v1646 = vld [vmem:[%s5 + $0x348] sm:$0xff]
      %v1647 = vld [vmem:[%s5 + $0x350] sm:$0xff]
      %v1648 = vld [vmem:[%s5 + $0x358] sm:$0xff]
      %v1649 = vld [vmem:[%s5 + $0x360] sm:$0xff]
      %v1650 = vld [vmem:[%s5 + $0x368] sm:$0xff]
      %v1651 = vld [vmem:[%s5 + $0x370] sm:$0xff]
      %v1652 = vld [vmem:[%s5 + $0x378] sm:$0xff]
      %v1653 = vld [vmem:[%s5 + $0x380] sm:$0xff]
      %v1654 = vld [vmem:[%s5 + $0x388] sm:$0xff]
      %v1655 = vld [vmem:[%s5 + $0x390] sm:$0xff]
      %v1656 = vld [vmem:[%s5 + $0x398] sm:$0xff]
      %v1657 = vld [vmem:[%s5 + $0x3a0] sm:$0xff]
      %v1658 = vld [vmem:[%s5 + $0x3a8] sm:$0xff]
      %v1659 = vld [vmem:[%s5 + $0x3b0] sm:$0xff]
      %v1660 = vld [vmem:[%s5 + $0x3b8] sm:$0xff]
      %v1661 = vld [vmem:[%s5 + $0x3c0] sm:$0xff]
      %v1662 = vld [vmem:[%s5 + $0x3c8] sm:$0xff]
      %v1663 = vld [vmem:[%s5 + $0x3d0] sm:$0xff]
      %v1664 = vld [vmem:[%s5 + $0x3d8] sm:$0xff]
      %v1665 = vld [vmem:[%s5 + $0x3e0] sm:$0xff]
      %v1666 = vld [vmem:[%s5 + $0x3e8] sm:$0xff]
      %v1667 = vld [vmem:[%s5 + $0x3f0] sm:$0xff]
      %v1668 = vld [vmem:[%s5 + $0x3f8] sm:$0xff]
      %v1669 = vld [vmem:[%s5 + $0x400] sm:$0xff]
      %v1670 = vld [vmem:[%s5 + $0x408] sm:$0xff]
      %v1671 = vld [vmem:[%s5 + $0x410] sm:$0xff]
      %v1672 = vld [vmem:[%s5 + $0x418] sm:$0xff]
      %v1673 = vld [vmem:[%s5 + $0x420] sm:$0xff]
      %v1674 = vld [vmem:[%s5 + $0x428] sm:$0xff]
      %v1675 = vld [vmem:[%s5 + $0x430] sm:$0xff]
      %v1676 = vld [vmem:[%s5 + $0x438] sm:$0xff]
      %v1677 = vld [vmem:[%s5 + $0x440] sm:$0xff]
      %v1678 = vld [vmem:[%s5 + $0x448] sm:$0xff]
      %v1679 = vld [vmem:[%s5 + $0x450] sm:$0xff]
      %v1680 = vld [vmem:[%s5 + $0x458] sm:$0xff]
      %v1681 = vld [vmem:[%s5 + $0x460] sm:$0xff]
      %v1682 = vld [vmem:[%s5 + $0x468] sm:$0xff]
      %v1683 = vld [vmem:[%s5 + $0x470] sm:$0xff]
      %v1684 = vld [vmem:[%s5 + $0x478] sm:$0xff]
      %v1685 = vld [vmem:[%s5 + $0x480] sm:$0xff]
      %v1686 = vld [vmem:[%s5 + $0x488] sm:$0xff]
      %v1687 = vld [vmem:[%s5 + $0x490] sm:$0xff]
      %v1688 = vld [vmem:[%s5 + $0x498] sm:$0xff]
      %v1689 = vld [vmem:[%s5 + $0x4a0] sm:$0xff]
      %v1690 = vld [vmem:[%s5 + $0x4a8] sm:$0xff]
      %v1691 = vld [vmem:[%s5 + $0x4b0] sm:$0xff]
      %v1692 = vld [vmem:[%s5 + $0x4b8] sm:$0xff]
      %v1693 = vld [vmem:[%s5 + $0x4c0] sm:$0xff]
      %v1694 = vld [vmem:[%s5 + $0x4c8] sm:$0xff]
      %v1695 = vld [vmem:[%s5 + $0x4d0] sm:$0xff]
      %v1696 = vld [vmem:[%s5 + $0x4d8] sm:$0xff]
      %v1697 = vld [vmem:[%s5 + $0x4e0] sm:$0xff]
      %v1698 = vld [vmem:[%s5 + $0x4e8] sm:$0xff]
      %v1699 = vld [vmem:[%s5 + $0x4f0] sm:$0xff]
      %v1700 = vld [vmem:[%s5 + $0x4f8] sm:$0xff]
      %v1701 = vld [vmem:[%s5 + $0x500] sm:$0xff]
      %v1702 = vld [vmem:[%s5 + $0x508] sm:$0xff]
      %v1703 = vld [vmem:[%s5 + $0x510] sm:$0xff]
      %v1704 = vld [vmem:[%s5 + $0x518] sm:$0xff]
      %v1705 = vld [vmem:[%s5 + $0x520] sm:$0xff]
      %v1706 = vld [vmem:[%s5 + $0x528] sm:$0xff]
      %v1707 = vld [vmem:[%s5 + $0x530] sm:$0xff]
      %v1708 = vld [vmem:[%s5 + $0x538] sm:$0xff]
      %v1709 = vld [vmem:[%s5 + $0x540] sm:$0xff]
      %v1710 = vld [vmem:[%s5 + $0x548] sm:$0xff]
      %v1711 = vld [vmem:[%s5 + $0x550] sm:$0xff]
      %v1712 = vld [vmem:[%s5 + $0x558] sm:$0xff]
      %v1713 = vld [vmem:[%s5 + $0x560] sm:$0xff]
      %v1714 = vld [vmem:[%s5 + $0x568] sm:$0xff]
      %v1715 = vld [vmem:[%s5 + $0x570] sm:$0xff]
      %v1716 = vld [vmem:[%s5 + $0x578] sm:$0xff]
      %v1717 = vld [vmem:[%s5 + $0x580] sm:$0xff]
      %v1718 = vld [vmem:[%s5 + $0x588] sm:$0xff]
      %v1719 = vld [vmem:[%s5 + $0x590] sm:$0xff]
      %v1720 = vld [vmem:[%s5 + $0x598] sm:$0xff]
      %v1721 = vld [vmem:[%s5 + $0x5a0] sm:$0xff]
      %v1722 = vld [vmem:[%s5 + $0x5a8] sm:$0xff]
      %v1723 = vld [vmem:[%s5 + $0x5b0] sm:$0xff]
      %v1724 = vld [vmem:[%s5 + $0x5b8] sm:$0xff]
      %v1725 = vld [vmem:[%s5 + $0x5c0] sm:$0xff]
      %v1726 = vld [vmem:[%s5 + $0x5c8] sm:$0xff]
      %v1727 = vld [vmem:[%s5 + $0x5d0] sm:$0xff]
      %v1728 = vld [vmem:[%s5 + $0x5d8] sm:$0xff]
      %v1729 = vld [vmem:[%s5 + $0x5e0] sm:$0xff]
      %v1730 = vld [vmem:[%s5 + $0x5e8] sm:$0xff]
      %v1731 = vld [vmem:[%s5 + $0x5f0] sm:$0xff]
      %v1732 = vld [vmem:[%s5 + $0x5f8] sm:$0xff]
      %v1733 = vld [vmem:[%s5 + $0x600] sm:$0xff]
      %v1734 = vld [vmem:[%s5 + $0x608] sm:$0xff]
      %v1735 = vld [vmem:[%s5 + $0x610] sm:$0xff]
      %v1736 = vld [vmem:[%s5 + $0x618] sm:$0xff]
      %v1737 = vld [vmem:[%s5 + $0x620] sm:$0xff]
      %v1738 = vld [vmem:[%s5 + $0x628] sm:$0xff]
      %v1739 = vld [vmem:[%s5 + $0x630] sm:$0xff]
      %v1740 = vld [vmem:[%s5 + $0x638] sm:$0xff]
      %v1741 = vld [vmem:[%s5 + $0x640] sm:$0xff]
      %v1742 = vld [vmem:[%s5 + $0x648] sm:$0xff]
      %v1743 = vld [vmem:[%s5 + $0x650] sm:$0xff]
      %v1744 = vld [vmem:[%s5 + $0x658] sm:$0xff]
      %v1745 = vld [vmem:[%s5 + $0x660] sm:$0xff]
      %v1746 = vld [vmem:[%s5 + $0x668] sm:$0xff]
      %v1747 = vld [vmem:[%s5 + $0x670] sm:$0xff]
      %v1748 = vld [vmem:[%s5 + $0x678] sm:$0xff]
      %v1749 = vld [vmem:[%s5 + $0x680] sm:$0xff]
      %v1750 = vld [vmem:[%s5 + $0x688] sm:$0xff]
      %v1751 = vld [vmem:[%s5 + $0x690] sm:$0xff]
      %v1752 = vld [vmem:[%s5 + $0x698] sm:$0xff]
      %v1753 = vld [vmem:[%s5 + $0x6a0] sm:$0xff]
      %v1754 = vld [vmem:[%s5 + $0x6a8] sm:$0xff]
      %v1755 = vld [vmem:[%s5 + $0x6b0] sm:$0xff]
      %v1756 = vld [vmem:[%s5 + $0x6b8] sm:$0xff]
      %v1757 = vld [vmem:[%s5 + $0x6c0] sm:$0xff]
      %v1758 = vld [vmem:[%s5 + $0x6c8] sm:$0xff]
      %v1759 = vld [vmem:[%s5 + $0x6d0] sm:$0xff]
      %v1760 = vld [vmem:[%s5 + $0x6d8] sm:$0xff]
      %v1761 = vld [vmem:[%s5 + $0x6e0] sm:$0xff]
      %v1762 = vld [vmem:[%s5 + $0x6e8] sm:$0xff]
      %v1763 = vld [vmem:[%s5 + $0x6f0] sm:$0xff]
      %v1764 = vld [vmem:[%s5 + $0x6f8] sm:$0xff]
      %v1765 = vld [vmem:[%s5 + $0x700] sm:$0xff]
      %v1766 = vld [vmem:[%s5 + $0x708] sm:$0xff]
      %v1767 = vld [vmem:[%s5 + $0x710] sm:$0xff]
      %v1768 = vld [vmem:[%s5 + $0x718] sm:$0xff]
      %v1769 = vld [vmem:[%s5 + $0x720] sm:$0xff]
      %v1770 = vld [vmem:[%s5 + $0x728] sm:$0xff]
      %v1771 = vld [vmem:[%s5 + $0x730] sm:$0xff]
      %v1772 = vld [vmem:[%s5 + $0x738] sm:$0xff]
      %v1773 = vld [vmem:[%s5 + $0x740] sm:$0xff]
      %v1774 = vld [vmem:[%s5 + $0x748] sm:$0xff]
      %v1775 = vld [vmem:[%s5 + $0x750] sm:$0xff]
      %v1776 = vld [vmem:[%s5 + $0x758] sm:$0xff]
      %v1777 = vld [vmem:[%s5 + $0x760] sm:$0xff]
      %v1778 = vld [vmem:[%s5 + $0x768] sm:$0xff]
      %v1779 = vld [vmem:[%s5 + $0x770] sm:$0xff]
      %v1780 = vld [vmem:[%s5 + $0x778] sm:$0xff]
      %v1781 = vld [vmem:[%s5 + $0x780] sm:$0xff]
      %v1782 = vld [vmem:[%s5 + $0x788] sm:$0xff]
      %v1783 = vld [vmem:[%s5 + $0x790] sm:$0xff]
      %v1784 = vld [vmem:[%s5 + $0x798] sm:$0xff]
      %v1785 = vld [vmem:[%s5 + $0x7a0] sm:$0xff]
      %v1786 = vld [vmem:[%s5 + $0x7a8] sm:$0xff]
      %v1787 = vld [vmem:[%s5 + $0x7b0] sm:$0xff]
      %v1788 = vld [vmem:[%s5 + $0x7b8] sm:$0xff]
      %v1789 = vld [vmem:[%s5 + $0x7c0] sm:$0xff]
      %v1790 = vld [vmem:[%s5 + $0x7c8] sm:$0xff]
      %v1791 = vld [vmem:[%s5 + $0x7d0] sm:$0xff]
      %v1792 = vld [vmem:[%s5 + $0x7d8] sm:$0xff]
      %v1793 = vld [vmem:[%s5 + $0x7e0] sm:$0xff]
      %v1794 = vld [vmem:[%s5 + $0x7e8] sm:$0xff]
      %v1795 = vld [vmem:[%s5 + $0x7f0] sm:$0xff]
      %v1796 = vld [vmem:[%s5 + $0x7f8] sm:$0xff]
      %v1797 = vld [vmem:[%s5 + $0x800] sm:$0xff]
      %v1798 = vld [vmem:[%s5 + $0x808] sm:$0xff]
      %v1799 = vld [vmem:[%s5 + $0x810] sm:$0xff]
      %v1800 = vld [vmem:[%s5 + $0x818] sm:$0xff]
      %v1801 = vld [vmem:[%s5 + $0x820] sm:$0xff]
      %v1802 = vld [vmem:[%s5 + $0x828] sm:$0xff]
      %v1803 = vld [vmem:[%s5 + $0x830] sm:$0xff]
      %v1804 = vld [vmem:[%s5 + $0x838] sm:$0xff]
      %v1805 = vld [vmem:[%s5 + $0x840] sm:$0xff]
      %v1806 = vld [vmem:[%s5 + $0x848] sm:$0xff]
      %v1807 = vld [vmem:[%s5 + $0x850] sm:$0xff]
      %v1808 = vld [vmem:[%s5 + $0x858] sm:$0xff]
      %v1809 = vld [vmem:[%s5 + $0x860] sm:$0xff]
      %v1810 = vld [vmem:[%s5 + $0x868] sm:$0xff]
      %v1811 = vld [vmem:[%s5 + $0x870] sm:$0xff]
      %v1812 = vld [vmem:[%s5 + $0x878] sm:$0xff]
      %v1813 = vld [vmem:[%s5 + $0x880] sm:$0xff]
      %v1814 = vld [vmem:[%s5 + $0x888] sm:$0xff]
      %v1815 = vld [vmem:[%s5 + $0x890] sm:$0xff]
      %v1816 = vld [vmem:[%s5 + $0x898] sm:$0xff]
      %v1817 = vld [vmem:[%s5 + $0x8a0] sm:$0xff]
      %v1818 = vld [vmem:[%s5 + $0x8a8] sm:$0xff]
      %v1819 = vld [vmem:[%s5 + $0x8b0] sm:$0xff]
      %v1820 = vld [vmem:[%s5 + $0x8b8] sm:$0xff]
      %v1821 = vld [vmem:[%s5 + $0x8c0] sm:$0xff]
      %v1822 = vld [vmem:[%s5 + $0x8c8] sm:$0xff]
      %v1823 = vld [vmem:[%s5 + $0x8d0] sm:$0xff]
      %v1824 = vld [vmem:[%s5 + $0x8d8] sm:$0xff]
      %v1825 = vld [vmem:[%s5 + $0x8e0] sm:$0xff]
      %v1826 = vld [vmem:[%s5 + $0x8e8] sm:$0xff]
      %v1827 = vld [vmem:[%s5 + $0x8f0] sm:$0xff]
      %v1828 = vld [vmem:[%s5 + $0x8f8] sm:$0xff]
      %v1829 = vld [vmem:[%s5 + $0x900] sm:$0xff]
      %v1830 = vld [vmem:[%s5 + $0x908] sm:$0xff]
      %v1831 = vld [vmem:[%s5 + $0x910] sm:$0xff]
      %v1832 = vld [vmem:[%s5 + $0x918] sm:$0xff]
      %v1833 = vld [vmem:[%s5 + $0x920] sm:$0xff]
      %v1834 = vld [vmem:[%s5 + $0x928] sm:$0xff]
      %v1835 = vld [vmem:[%s5 + $0x930] sm:$0xff]
      %v1836 = vld [vmem:[%s5 + $0x938] sm:$0xff]
      %v1837 = vld [vmem:[%s5 + $0x940] sm:$0xff]
      %v1838 = vld [vmem:[%s5 + $0x948] sm:$0xff]
      %v1839 = vld [vmem:[%s5 + $0x950] sm:$0xff]
      %v1840 = vld [vmem:[%s5 + $0x958] sm:$0xff]
      %v1841 = vld [vmem:[%s5 + $0x960] sm:$0xff]
      %v1842 = vld [vmem:[%s5 + $0x968] sm:$0xff]
      %v1843 = vld [vmem:[%s5 + $0x970] sm:$0xff]
      %v1844 = vld [vmem:[%s5 + $0x978] sm:$0xff]
      %v1845 = vld [vmem:[%s5 + $0x980] sm:$0xff]
      %v1846 = vld [vmem:[%s5 + $0x988] sm:$0xff]
      %v1847 = vld [vmem:[%s5 + $0x990] sm:$0xff]
      %v1848 = vld [vmem:[%s5 + $0x998] sm:$0xff]
      %v1849 = vld [vmem:[%s5 + $0x9a0] sm:$0xff]
      %v1850 = vld [vmem:[%s5 + $0x9a8] sm:$0xff]
      %v1851 = vld [vmem:[%s5 + $0x9b0] sm:$0xff]
      %v1852 = vld [vmem:[%s5 + $0x9b8] sm:$0xff]
      %v1853 = vld [vmem:[%s5 + $0x9c0] sm:$0xff]
      %v1854 = vld [vmem:[%s5 + $0x9c8] sm:$0xff]
      %v1855 = vld [vmem:[%s5 + $0x9d0] sm:$0xff]
      %v1856 = vld [vmem:[%s5 + $0x9d8] sm:$0xff]
      %v1857 = vld [vmem:[%s5 + $0x9e0] sm:$0xff]
      %v1858 = vld [vmem:[%s5 + $0x9e8] sm:$0xff]
      %v1859 = vld [vmem:[%s5 + $0x9f0] sm:$0xff]
      %v1860 = vld [vmem:[%s5 + $0x9f8] sm:$0xff]
      %v1861 = vld [vmem:[%s5 + $0xa00] sm:$0xff]
      %v1862 = vld [vmem:[%s5 + $0xa08] sm:$0xff]
      %v1863 = vld [vmem:[%s5 + $0xa10] sm:$0xff]
      %v1864 = vld [vmem:[%s5 + $0xa18] sm:$0xff]
      %v1865 = vld [vmem:[%s6] sm:$0x1]
      %v1866 = vsel %vm468, %v1528, 0
      %1868 = vmatprep.subr.mxu0 0.0
      %1869 = vmatpush1.msra.mxu0 %v1541
      %1870 = vmatprep.subr.mxu0 0.0
      %1871 = vmatpush1.msra.mxu0 %v1542
      %1872 = vmatprep.subr.mxu0 0.0
      %1873 = vmatpush1.msra.mxu0 %v1543
      %1874 = vmatprep.subr.mxu0 0.0
      %1875 = vmatpush1.msra.mxu0 %v1544
      %1876 = vmatprep.subr.mxu0 0.0
      %1877 = vmatpush1.msra.mxu0 %v1545
      %1878 = vmatprep.subr.mxu0 0.0
      %1879 = vmatpush1.msra.mxu0 %v1546
      %1880 = vmatprep.subr.mxu0 0.0
      %1881 = vmatpush1.msra.mxu0 %v1547
      %1882 = vmatprep.subr.mxu0 0.0
      %1883 = vmatpush1.msra.mxu0 %v1548
      %1884 = vmatprep.subr.mxu0 0.0
      %1885 = vmatpush1.msra.mxu0 %v1549
      %1886 = vmatprep.subr.mxu0 0.0
      %1887 = vmatpush1.msra.mxu0 %v1550
      %1888 = vmatprep.subr.mxu0 0.0
      %1889 = vmatpush1.msra.mxu0 %v1551
      %1890 = vmatprep.subr.mxu0 0.0
      %1891 = vmatpush1.msra.mxu0 %v1552
      %1892 = vmatprep.subr.mxu0 0.0
      %1893 = vmatpush1.msra.mxu0 %v1553
      %1894 = vmatprep.subr.mxu0 0.0
      %1895 = vmatpush1.msra.mxu0 %v1554
      %1896 = vmatprep.subr.mxu0 0.0
      %1897 = vmatpush1.msra.mxu0 %v1555
      %1898 = vmatprep.subr.mxu0 0.0
      %1899 = vmatpush1.msra.mxu0 %v1556
      %1900 = vmatprep.subr.mxu0 0.0
      %1901 = vmatpush1.msra.mxu0 %v1557
      %1902 = vmatprep.subr.mxu0 0.0
      %1903 = vmatpush1.msra.mxu0 %v1558
      %1904 = vmatprep.subr.mxu0 0.0
      %1905 = vmatpush1.msra.mxu0 %v1559
      %1906 = vmatprep.subr.mxu0 0.0
      %1907 = vmatpush1.msra.mxu0 %v1560
      %1908 = vmatprep.subr.mxu0 0.0
      %1909 = vmatpush1.msra.mxu0 %v1561
      %1910 = vmatprep.subr.mxu0 0.0
      %1911 = vmatpush1.msra.mxu0 %v1562
      %1912 = vmatprep.subr.mxu0 0.0
      %1913 = vmatpush1.msra.mxu0 %v1563
      %1914 = vmatprep.subr.mxu0 0.0
      %1915 = vmatpush1.msra.mxu0 %v1564
      %1916 = vmatprep.subr.mxu0 0.0
      %1917 = vmatpush1.msra.mxu0 %v1565
      %1918 = vmatprep.subr.mxu0 0.0
      %1919 = vmatpush1.msra.mxu0 %v1566
      %1920 = vmatprep.subr.mxu0 0.0
      %1921 = vmatpush1.msra.mxu0 %v1567
      %1922 = vmatprep.subr.mxu0 0.0
      %1923 = vmatpush1.msra.mxu0 %v1568
      %1924 = vmatprep.subr.mxu0 0.0
      %1925 = vmatpush1.msra.mxu0 %v1569
      %1926 = vmatprep.subr.mxu0 0.0
      %1927 = vmatpush1.msra.mxu0 %v1570
      %1928 = vmatprep.subr.mxu0 0.0
      %1929 = vmatpush1.msra.mxu0 %v1571
      %1930 = vmatprep.subr.mxu0 0.0
      %1931 = vmatpush1.msra.mxu0 %v1572
      %1932 = vmatprep.mubr.f32.mxu0 %v1422
      %1933 = vmatmul.mubr.f32.gmra.mrb[0].mxu0 %v1421
      %v1934 = vpop.f32.mrb[0].mxu0
      %v1935 = vadd.f32 %v1865, %v1934
      %v1936 = vpop.f32.mrb[0].mxu0
      %1937 = vdwg.mxu0
      %1938 = vmatprep.subr.mxu0 0.0
      %1939 = vmatpush1.msra.mxu0 %v1573
      %1940 = vmatprep.subr.mxu0 0.0
      %1941 = vmatpush1.msra.mxu0 %v1574
      %1942 = vmatprep.subr.mxu0 0.0
      %1943 = vmatpush1.msra.mxu0 %v1575
      %1944 = vmatprep.subr.mxu0 0.0
      %1945 = vmatpush1.msra.mxu0 %v1576
      %1946 = vmatprep.subr.mxu0 0.0
      %1947 = vmatpush1.msra.mxu0 %v1577
      %1948 = vmatprep.subr.mxu0 0.0
      %1949 = vmatpush1.msra.mxu0 %v1578
      %1950 = vmatprep.subr.mxu0 0.0
      %1951 = vmatpush1.msra.mxu0 %v1579
      %1952 = vmatprep.subr.mxu0 0.0
      %1953 = vmatpush1.msra.mxu0 %v1580
      %1954 = vmatprep.subr.mxu0 0.0
      %1955 = vmatpush1.msra.mxu0 %v1581
      %1956 = vmatprep.subr.mxu0 0.0
      %1957 = vmatpush1.msra.mxu0 %v1582
      %1958 = vmatprep.subr.mxu0 0.0
      %1959 = vmatpush1.msra.mxu0 %v1583
      %1960 = vmatprep.subr.mxu0 0.0
      %1961 = vmatpush1.msra.mxu0 %v1584
      %1962 = vmatprep.subr.mxu0 0.0
      %1963 = vmatpush1.msra.mxu0 %v1585
      %1964 = vmatprep.subr.mxu0 0.0
      %1965 = vmatpush1.msra.mxu0 %v1586
      %1966 = vmatprep.subr.mxu0 0.0
      %1967 = vmatpush1.msra.mxu0 %v1587
      %1968 = vmatprep.subr.mxu0 0.0
      %1969 = vmatpush1.msra.mxu0 %v1588
      %1970 = vmatprep.subr.mxu0 0.0
      %1971 = vmatpush1.msra.mxu0 %v1589
      %1972 = vmatprep.subr.mxu0 0.0
      %1973 = vmatpush1.msra.mxu0 %v1590
      %1974 = vmatprep.subr.mxu0 0.0
      %1975 = vmatpush1.msra.mxu0 %v1591
      %1976 = vmatprep.subr.mxu0 0.0
      %1977 = vmatpush1.msra.mxu0 %v1592
      %1978 = vmatprep.subr.mxu0 0.0
      %1979 = vmatpush1.msra.mxu0 %v1593
      %1980 = vmatprep.subr.mxu0 0.0
      %1981 = vmatpush1.msra.mxu0 %v1594
      %1982 = vmatprep.subr.mxu0 0.0
      %1983 = vmatpush1.msra.mxu0 %v1595
      %1984 = vmatprep.subr.mxu0 0.0
      %1985 = vmatpush1.msra.mxu0 %v1596
      %1986 = vmatprep.subr.mxu0 0.0
      %1987 = vmatpush1.msra.mxu0 %v1597
      %1988 = vmatprep.subr.mxu0 0.0
      %1989 = vmatpush1.msra.mxu0 %v1598
      %1990 = vmatprep.subr.mxu0 0.0
      %1991 = vmatpush1.msra.mxu0 %v1599
      %1992 = vmatprep.subr.mxu0 0.0
      %1993 = vmatpush1.msra.mxu0 %v1600
      %1994 = vmatprep.subr.mxu0 0.0
      %1995 = vmatpush1.msra.mxu0 %v1601
      %1996 = vmatprep.subr.mxu0 0.0
      %1997 = vmatpush1.msra.mxu0 %v1602
      %1998 = vmatprep.subr.mxu0 0.0
      %1999 = vmatpush1.msra.mxu0 %v1603
      %2000 = vmatprep.subr.mxu0 0.0
      %2001 = vmatpush1.msra.mxu0 %v1604
      %2002 = vmatprep.mubr.f32.mxu0 %v1437
      %2003 = vmatmul.mubr.f32.gmra.mrb[0].mxu0 %v1534
      %v2004 = vpop.f32.mrb[0].mxu0
      %v2005 = vadd.f32 %v1935, %v2004
      %v2006 = vpop.f32.mrb[0].mxu0
      %2007 = vdwg.mxu0
      %2008 = vmatprep.subr.mxu0 0.0
      %2009 = vmatpush1.msra.mxu0 %v1605
      %2010 = vmatprep.subr.mxu0 0.0
      %2011 = vmatpush1.msra.mxu0 %v1606
      %2012 = vmatprep.subr.mxu0 0.0
      %2013 = vmatpush1.msra.mxu0 %v1607
      %2014 = vmatprep.subr.mxu0 0.0
      %2015 = vmatpush1.msra.mxu0 %v1608
      %2016 = vmatprep.subr.mxu0 0.0
      %2017 = vmatpush1.msra.mxu0 %v1609
      %2018 = vmatprep.subr.mxu0 0.0
      %2019 = vmatpush1.msra.mxu0 %v1610
      %2020 = vmatprep.subr.mxu0 0.0
      %2021 = vmatpush1.msra.mxu0 %v1611
      %2022 = vmatprep.subr.mxu0 0.0
      %2023 = vmatpush1.msra.mxu0 %v1612
      %2024 = vmatprep.subr.mxu0 0.0
      %2025 = vmatpush1.msra.mxu0 %v1613
      %2026 = vmatprep.subr.mxu0 0.0
      %2027 = vmatpush1.msra.mxu0 %v1614
      %2028 = vmatprep.subr.mxu0 0.0
      %2029 = vmatpush1.msra.mxu0 %v1615
      %2030 = vmatprep.subr.mxu0 0.0
      %2031 = vmatpush1.msra.mxu0 %v1616
      %2032 = vmatprep.subr.mxu0 0.0
      %2033 = vmatpush1.msra.mxu0 %v1617
      %2034 = vmatprep.subr.mxu0 0.0
      %2035 = vmatpush1.msra.mxu0 %v1618
      %2036 = vmatprep.subr.mxu0 0.0
      %2037 = vmatpush1.msra.mxu0 %v1619
      %2038 = vmatprep.subr.mxu0 0.0
      %2039 = vmatpush1.msra.mxu0 %v1620
      %2040 = vmatprep.subr.mxu0 0.0
      %2041 = vmatpush1.msra.mxu0 %v1621
      %2042 = vmatprep.subr.mxu0 0.0
      %2043 = vmatpush1.msra.mxu0 %v1622
      %2044 = vmatprep.subr.mxu0 0.0
      %2045 = vmatpush1.msra.mxu0 %v1623
      %2046 = vmatprep.subr.mxu0 0.0
      %2047 = vmatpush1.msra.mxu0 %v1624
      %2048 = vmatprep.subr.mxu0 0.0
      %2049 = vmatpush1.msra.mxu0 %v1625
      %2050 = vmatprep.subr.mxu0 0.0
      %2051 = vmatpush1.msra.mxu0 %v1626
      %2052 = vmatprep.subr.mxu0 0.0
      %2053 = vmatpush1.msra.mxu0 %v1627
      %2054 = vmatprep.subr.mxu0 0.0
      %2055 = vmatpush1.msra.mxu0 %v1628
      %2056 = vmatprep.subr.mxu0 0.0
      %2057 = vmatpush1.msra.mxu0 %v1629
      %2058 = vmatprep.subr.mxu0 0.0
      %2059 = vmatpush1.msra.mxu0 %v1630
      %2060 = vmatprep.subr.mxu0 0.0
      %2061 = vmatpush1.msra.mxu0 %v1631
      %2062 = vmatprep.subr.mxu0 0.0
      %2063 = vmatpush1.msra.mxu0 %v1632
      %2064 = vmatprep.subr.mxu0 0.0
      %2065 = vmatpush1.msra.mxu0 %v1633
      %2066 = vmatprep.subr.mxu0 0.0
      %2067 = vmatpush1.msra.mxu0 %v1634
      %2068 = vmatprep.subr.mxu0 0.0
      %2069 = vmatpush1.msra.mxu0 %v1635
      %2070 = vmatprep.subr.mxu0 0.0
      %2071 = vmatpush1.msra.mxu0 %v1636
      %2072 = vmatprep.mubr.f32.mxu0 %v1535
      %2073 = vmatmul.mubr.f32.gmra.mrb[0].mxu0 %v1438
      %v2074 = vpop.f32.mrb[0].mxu0
      %v2075 = vadd.f32 %v2005, %v2074
      %v2076 = vpop.f32.mrb[0].mxu0
      %2077 = vdwg.mxu0
      %2078 = vmatprep.subr.mxu0 0.0
      %2079 = vmatpush1.msra.mxu0 %v1637
      %2080 = vmatprep.subr.mxu0 0.0
      %2081 = vmatpush1.msra.mxu0 %v1638
      %2082 = vmatprep.subr.mxu0 0.0
      %2083 = vmatpush1.msra.mxu0 %v1639
      %2084 = vmatprep.subr.mxu0 0.0
      %2085 = vmatpush1.msra.mxu0 %v1640
      %2086 = vmatprep.subr.mxu0 0.0
      %2087 = vmatpush1.msra.mxu0 %v1641
      %2088 = vmatprep.subr.mxu0 0.0
      %2089 = vmatpush1.msra.mxu0 %v1642
      %2090 = vmatprep.subr.mxu0 0.0
      %2091 = vmatpush1.msra.mxu0 %v1643
      %2092 = vmatprep.subr.mxu0 0.0
      %2093 = vmatpush1.msra.mxu0 %v1644
      %2094 = vmatprep.subr.mxu0 0.0
      %2095 = vmatpush1.msra.mxu0 %v1645
      %2096 = vmatprep.subr.mxu0 0.0
      %2097 = vmatpush1.msra.mxu0 %v1646
      %2098 = vmatprep.subr.mxu0 0.0
      %2099 = vmatpush1.msra.mxu0 %v1647
      %2100 = vmatprep.subr.mxu0 0.0
      %2101 = vmatpush1.msra.mxu0 %v1648
      %2102 = vmatprep.subr.mxu0 0.0
      %2103 = vmatpush1.msra.mxu0 %v1649
      %2104 = vmatprep.subr.mxu0 0.0
      %2105 = vmatpush1.msra.mxu0 %v1650
      %2106 = vmatprep.subr.mxu0 0.0
      %2107 = vmatpush1.msra.mxu0 %v1651
      %2108 = vmatprep.subr.mxu0 0.0
      %2109 = vmatpush1.msra.mxu0 %v1652
      %2110 = vmatprep.subr.mxu0 0.0
      %2111 = vmatpush1.msra.mxu0 %v1653
      %2112 = vmatprep.subr.mxu0 0.0
      %2113 = vmatpush1.msra.mxu0 %v1654
      %2114 = vmatprep.subr.mxu0 0.0
      %2115 = vmatpush1.msra.mxu0 %v1655
      %2116 = vmatprep.subr.mxu0 0.0
      %2117 = vmatpush1.msra.mxu0 %v1656
      %2118 = vmatprep.subr.mxu0 0.0
      %2119 = vmatpush1.msra.mxu0 %v1657
      %2120 = vmatprep.subr.mxu0 0.0
      %2121 = vmatpush1.msra.mxu0 %v1658
      %2122 = vmatprep.subr.mxu0 0.0
      %2123 = vmatpush1.msra.mxu0 %v1659
      %2124 = vmatprep.subr.mxu0 0.0
      %2125 = vmatpush1.msra.mxu0 %v1660
      %2126 = vmatprep.subr.mxu0 0.0
      %2127 = vmatpush1.msra.mxu0 %v1661
      %2128 = vmatprep.subr.mxu0 0.0
      %2129 = vmatpush1.msra.mxu0 %v1662
      %2130 = vmatprep.subr.mxu0 0.0
      %2131 = vmatpush1.msra.mxu0 %v1663
      %2132 = vmatprep.subr.mxu0 0.0
      %2133 = vmatpush1.msra.mxu0 %v1664
      %2134 = vmatprep.subr.mxu0 0.0
      %2135 = vmatpush1.msra.mxu0 %v1665
      %2136 = vmatprep.subr.mxu0 0.0
      %2137 = vmatpush1.msra.mxu0 %v1666
      %2138 = vmatprep.subr.mxu0 0.0
      %2139 = vmatpush1.msra.mxu0 %v1667
      %2140 = vmatprep.subr.mxu0 0.0
      %2141 = vmatpush1.msra.mxu0 %v1668
      %2142 = vmatprep.mubr.f32.mxu0 %v1536
      %2143 = vmatmul.mubr.f32.gmra.mrb[0].mxu0 %v1453
      %v2144 = vpop.f32.mrb[0].mxu0
      %v2145 = vadd.f32 %v2075, %v2144
      %v2146 = vpop.f32.mrb[0].mxu0
      %2147 = vdwg.mxu0
      %2148 = vmatprep.subr.mxu0 0.0
      %2149 = vmatpush1.msra.mxu0 %v1669
      %2150 = vmatprep.subr.mxu0 0.0
      %2151 = vmatpush1.msra.mxu0 %v1670
      %2152 = vmatprep.subr.mxu0 0.0
      %2153 = vmatpush1.msra.mxu0 %v1671
      %2154 = vmatprep.subr.mxu0 0.0
      %2155 = vmatpush1.msra.mxu0 %v1672
      %2156 = vmatprep.subr.mxu0 0.0
      %2157 = vmatpush1.msra.mxu0 %v1673
      %2158 = vmatprep.subr.mxu0 0.0
      %2159 = vmatpush1.msra.mxu0 %v1674
      %2160 = vmatprep.subr.mxu0 0.0
      %2161 = vmatpush1.msra.mxu0 %v1675
      %2162 = vmatprep.subr.mxu0 0.0
      %2163 = vmatpush1.msra.mxu0 %v1676
      %2164 = vmatprep.subr.mxu0 0.0
      %2165 = vmatpush1.msra.mxu0 %v1677
      %2166 = vmatprep.subr.mxu0 0.0
      %2167 = vmatpush1.msra.mxu0 %v1678
      %2168 = vmatprep.subr.mxu0 0.0
      %2169 = vmatpush1.msra.mxu0 %v1679
      %2170 = vmatprep.subr.mxu0 0.0
      %2171 = vmatpush1.msra.mxu0 %v1680
      %2172 = vmatprep.subr.mxu0 0.0
      %2173 = vmatpush1.msra.mxu0 %v1681
      %2174 = vmatprep.subr.mxu0 0.0
      %2175 = vmatpush1.msra.mxu0 %v1682
      %2176 = vmatprep.subr.mxu0 0.0
      %2177 = vmatpush1.msra.mxu0 %v1683
      %2178 = vmatprep.subr.mxu0 0.0
      %2179 = vmatpush1.msra.mxu0 %v1684
      %2180 = vmatprep.subr.mxu0 0.0
      %2181 = vmatpush1.msra.mxu0 %v1685
      %2182 = vmatprep.subr.mxu0 0.0
      %2183 = vmatpush1.msra.mxu0 %v1686
      %2184 = vmatprep.subr.mxu0 0.0
      %2185 = vmatpush1.msra.mxu0 %v1687
      %2186 = vmatprep.subr.mxu0 0.0
      %2187 = vmatpush1.msra.mxu0 %v1688
      %2188 = vmatprep.subr.mxu0 0.0
      %2189 = vmatpush1.msra.mxu0 %v1689
      %2190 = vmatprep.subr.mxu0 0.0
      %2191 = vmatpush1.msra.mxu0 %v1690
      %2192 = vmatprep.subr.mxu0 0.0
      %2193 = vmatpush1.msra.mxu0 %v1691
      %2194 = vmatprep.subr.mxu0 0.0
      %2195 = vmatpush1.msra.mxu0 %v1692
      %2196 = vmatprep.subr.mxu0 0.0
      %2197 = vmatpush1.msra.mxu0 %v1693
      %2198 = vmatprep.subr.mxu0 0.0
      %2199 = vmatpush1.msra.mxu0 %v1694
      %2200 = vmatprep.subr.mxu0 0.0
      %2201 = vmatpush1.msra.mxu0 %v1695
      %2202 = vmatprep.subr.mxu0 0.0
      %2203 = vmatpush1.msra.mxu0 %v1696
      %2204 = vmatprep.subr.mxu0 0.0
      %2205 = vmatpush1.msra.mxu0 %v1697
      %2206 = vmatprep.subr.mxu0 0.0
      %2207 = vmatpush1.msra.mxu0 %v1698
      %2208 = vmatprep.subr.mxu0 0.0
      %2209 = vmatpush1.msra.mxu0 %v1699
      %2210 = vmatprep.subr.mxu0 0.0
      %2211 = vmatpush1.msra.mxu0 %v1700
      %2212 = vmatprep.mubr.f32.mxu0 %v1469
      %2213 = vmatmul.mubr.f32.gmra.mrb[0].mxu0 %v1468
      %v2214 = vpop.f32.mrb[0].mxu0
      %v2215 = vadd.f32 %v2145, %v2214
      %v2216 = vpop.f32.mrb[0].mxu0
      %2217 = vdwg.mxu0
      %2218 = vmatprep.subr.mxu0 0.0
      %2219 = vmatpush1.msra.mxu0 %v1701
      %2220 = vmatprep.subr.mxu0 0.0
      %2221 = vmatpush1.msra.mxu0 %v1702
      %2222 = vmatprep.subr.mxu0 0.0
      %2223 = vmatpush1.msra.mxu0 %v1703
      %2224 = vmatprep.subr.mxu0 0.0
      %2225 = vmatpush1.msra.mxu0 %v1704
      %2226 = vmatprep.subr.mxu0 0.0
      %2227 = vmatpush1.msra.mxu0 %v1705
      %2228 = vmatprep.subr.mxu0 0.0
      %2229 = vmatpush1.msra.mxu0 %v1706
      %2230 = vmatprep.subr.mxu0 0.0
      %2231 = vmatpush1.msra.mxu0 %v1707
      %2232 = vmatprep.subr.mxu0 0.0
      %2233 = vmatpush1.msra.mxu0 %v1708
      %2234 = vmatprep.subr.mxu0 0.0
      %2235 = vmatpush1.msra.mxu0 %v1709
      %2236 = vmatprep.subr.mxu0 0.0
      %2237 = vmatpush1.msra.mxu0 %v1710
      %2238 = vmatprep.subr.mxu0 0.0
      %2239 = vmatpush1.msra.mxu0 %v1711
      %2240 = vmatprep.subr.mxu0 0.0
      %2241 = vmatpush1.msra.mxu0 %v1712
      %2242 = vmatprep.subr.mxu0 0.0
      %2243 = vmatpush1.msra.mxu0 %v1713
      %2244 = vmatprep.subr.mxu0 0.0
      %2245 = vmatpush1.msra.mxu0 %v1714
      %2246 = vmatprep.subr.mxu0 0.0
      %2247 = vmatpush1.msra.mxu0 %v1715
      %2248 = vmatprep.subr.mxu0 0.0
      %2249 = vmatpush1.msra.mxu0 %v1716
      %2250 = vmatprep.subr.mxu0 0.0
      %2251 = vmatpush1.msra.mxu0 %v1717
      %2252 = vmatprep.subr.mxu0 0.0
      %2253 = vmatpush1.msra.mxu0 %v1718
      %2254 = vmatprep.subr.mxu0 0.0
      %2255 = vmatpush1.msra.mxu0 %v1719
      %2256 = vmatprep.subr.mxu0 0.0
      %2257 = vmatpush1.msra.mxu0 %v1720
      %2258 = vmatprep.subr.mxu0 0.0
      %2259 = vmatpush1.msra.mxu0 %v1721
      %2260 = vmatprep.subr.mxu0 0.0
      %2261 = vmatpush1.msra.mxu0 %v1722
      %2262 = vmatprep.subr.mxu0 0.0
      %2263 = vmatpush1.msra.mxu0 %v1723
      %2264 = vmatprep.subr.mxu0 0.0
      %2265 = vmatpush1.msra.mxu0 %v1724
      %2266 = vmatprep.subr.mxu0 0.0
      %2267 = vmatpush1.msra.mxu0 %v1725
      %2268 = vmatprep.subr.mxu0 0.0
      %2269 = vmatpush1.msra.mxu0 %v1726
      %2270 = vmatprep.subr.mxu0 0.0
      %2271 = vmatpush1.msra.mxu0 %v1727
      %2272 = vmatprep.subr.mxu0 0.0
      %2273 = vmatpush1.msra.mxu0 %v1728
      %2274 = vmatprep.subr.mxu0 0.0
      %2275 = vmatpush1.msra.mxu0 %v1729
      %2276 = vmatprep.subr.mxu0 0.0
      %2277 = vmatpush1.msra.mxu0 %v1730
      %2278 = vmatprep.subr.mxu0 0.0
      %2279 = vmatpush1.msra.mxu0 %v1731
      %2280 = vmatprep.subr.mxu0 0.0
      %2281 = vmatpush1.msra.mxu0 %v1732
      %2282 = vmatprep.mubr.f32.mxu0 %v1484
      %2283 = vmatmul.mubr.f32.gmra.mrb[0].mxu0 %v1537
      %v2284 = vpop.f32.mrb[0].mxu0
      %v2285 = vadd.f32 %v2215, %v2284
      %v2286 = vpop.f32.mrb[0].mxu0
      %2287 = vdwg.mxu0
      %2288 = vmatprep.subr.mxu0 0.0
      %2289 = vmatpush1.msra.mxu0 %v1733
      %2290 = vmatprep.subr.mxu0 0.0
      %2291 = vmatpush1.msra.mxu0 %v1734
      %2292 = vmatprep.subr.mxu0 0.0
      %2293 = vmatpush1.msra.mxu0 %v1735
      %2294 = vmatprep.subr.mxu0 0.0
      %2295 = vmatpush1.msra.mxu0 %v1736
      %2296 = vmatprep.subr.mxu0 0.0
      %2297 = vmatpush1.msra.mxu0 %v1737
      %2298 = vmatprep.subr.mxu0 0.0
      %2299 = vmatpush1.msra.mxu0 %v1738
      %2300 = vmatprep.subr.mxu0 0.0
      %2301 = vmatpush1.msra.mxu0 %v1739
      %2302 = vmatprep.subr.mxu0 0.0
      %2303 = vmatpush1.msra.mxu0 %v1740
      %2304 = vmatprep.subr.mxu0 0.0
      %2305 = vmatpush1.msra.mxu0 %v1741
      %2306 = vmatprep.subr.mxu0 0.0
      %2307 = vmatpush1.msra.mxu0 %v1742
      %2308 = vmatprep.subr.mxu0 0.0
      %2309 = vmatpush1.msra.mxu0 %v1743
      %2310 = vmatprep.subr.mxu0 0.0
      %2311 = vmatpush1.msra.mxu0 %v1744
      %2312 = vmatprep.subr.mxu0 0.0
      %2313 = vmatpush1.msra.mxu0 %v1745
      %2314 = vmatprep.subr.mxu0 0.0
      %2315 = vmatpush1.msra.mxu0 %v1746
      %2316 = vmatprep.subr.mxu0 0.0
      %2317 = vmatpush1.msra.mxu0 %v1747
      %2318 = vmatprep.subr.mxu0 0.0
      %2319 = vmatpush1.msra.mxu0 %v1748
      %2320 = vmatprep.subr.mxu0 0.0
      %2321 = vmatpush1.msra.mxu0 %v1749
      %2322 = vmatprep.subr.mxu0 0.0
      %2323 = vmatpush1.msra.mxu0 %v1750
      %2324 = vmatprep.subr.mxu0 0.0
      %2325 = vmatpush1.msra.mxu0 %v1751
      %2326 = vmatprep.subr.mxu0 0.0
      %2327 = vmatpush1.msra.mxu0 %v1752
      %2328 = vmatprep.subr.mxu0 0.0
      %2329 = vmatpush1.msra.mxu0 %v1753
      %2330 = vmatprep.subr.mxu0 0.0
      %2331 = vmatpush1.msra.mxu0 %v1754
      %2332 = vmatprep.subr.mxu0 0.0
      %2333 = vmatpush1.msra.mxu0 %v1755
      %2334 = vmatprep.subr.mxu0 0.0
      %2335 = vmatpush1.msra.mxu0 %v1756
      %2336 = vmatprep.subr.mxu0 0.0
      %2337 = vmatpush1.msra.mxu0 %v1757
      %2338 = vmatprep.subr.mxu0 0.0
      %2339 = vmatpush1.msra.mxu0 %v1758
      %2340 = vmatprep.subr.mxu0 0.0
      %2341 = vmatpush1.msra.mxu0 %v1759
      %2342 = vmatprep.subr.mxu0 0.0
      %2343 = vmatpush1.msra.mxu0 %v1760
      %2344 = vmatprep.subr.mxu0 0.0
      %2345 = vmatpush1.msra.mxu0 %v1761
      %2346 = vmatprep.subr.mxu0 0.0
      %2347 = vmatpush1.msra.mxu0 %v1762
      %2348 = vmatprep.subr.mxu0 0.0
      %2349 = vmatpush1.msra.mxu0 %v1763
      %2350 = vmatprep.subr.mxu0 0.0
      %2351 = vmatpush1.msra.mxu0 %v1764
      %2352 = vmatprep.mubr.f32.mxu0 %v1499
      %2353 = vmatmul.mubr.f32.gmra.mrb[0].mxu0 %v1538
      %v2354 = vpop.f32.mrb[0].mxu0
      %v2355 = vadd.f32 %v2285, %v2354
      %v2356 = vpop.f32.mrb[0].mxu0
      %2357 = vdwg.mxu0
      %2358 = vmatprep.subr.mxu0 0.0
      %2359 = vmatpush1.msra.mxu0 %v1765
      %2360 = vmatprep.subr.mxu0 0.0
      %2361 = vmatpush1.msra.mxu0 %v1766
      %2362 = vmatprep.subr.mxu0 0.0
      %2363 = vmatpush1.msra.mxu0 %v1767
      %2364 = vmatprep.subr.mxu0 0.0
      %2365 = vmatpush1.msra.mxu0 %v1768
      %2366 = vmatprep.subr.mxu0 0.0
      %2367 = vmatpush1.msra.mxu0 %v1769
      %2368 = vmatprep.subr.mxu0 0.0
      %2369 = vmatpush1.msra.mxu0 %v1770
      %2370 = vmatprep.subr.mxu0 0.0
      %2371 = vmatpush1.msra.mxu0 %v1771
      %2372 = vmatprep.subr.mxu0 0.0
      %2373 = vmatpush1.msra.mxu0 %v1772
      %2374 = vmatprep.subr.mxu0 0.0
      %2375 = vmatpush1.msra.mxu0 %v1773
      %2376 = vmatprep.subr.mxu0 0.0
      %2377 = vmatpush1.msra.mxu0 %v1774
      %2378 = vmatprep.subr.mxu0 0.0
      %2379 = vmatpush1.msra.mxu0 %v1775
      %2380 = vmatprep.subr.mxu0 0.0
      %2381 = vmatpush1.msra.mxu0 %v1776
      %2382 = vmatprep.subr.mxu0 0.0
      %2383 = vmatpush1.msra.mxu0 %v1777
      %2384 = vmatprep.subr.mxu0 0.0
      %2385 = vmatpush1.msra.mxu0 %v1778
      %2386 = vmatprep.subr.mxu0 0.0
      %2387 = vmatpush1.msra.mxu0 %v1779
      %2388 = vmatprep.subr.mxu0 0.0
      %2389 = vmatpush1.msra.mxu0 %v1780
      %2390 = vmatprep.subr.mxu0 0.0
      %2391 = vmatpush1.msra.mxu0 %v1781
      %2392 = vmatprep.subr.mxu0 0.0
      %2393 = vmatpush1.msra.mxu0 %v1782
      %2394 = vmatprep.subr.mxu0 0.0
      %2395 = vmatpush1.msra.mxu0 %v1783
      %2396 = vmatprep.subr.mxu0 0.0
      %2397 = vmatpush1.msra.mxu0 %v1784
      %2398 = vmatprep.subr.mxu0 0.0
      %2399 = vmatpush1.msra.mxu0 %v1785
      %2400 = vmatprep.subr.mxu0 0.0
      %2401 = vmatpush1.msra.mxu0 %v1786
      %2402 = vmatprep.subr.mxu0 0.0
      %2403 = vmatpush1.msra.mxu0 %v1787
      %2404 = vmatprep.subr.mxu0 0.0
      %2405 = vmatpush1.msra.mxu0 %v1788
      %2406 = vmatprep.subr.mxu0 0.0
      %2407 = vmatpush1.msra.mxu0 %v1789
      %2408 = vmatprep.subr.mxu0 0.0
      %2409 = vmatpush1.msra.mxu0 %v1790
      %2410 = vmatprep.subr.mxu0 0.0
      %2411 = vmatpush1.msra.mxu0 %v1791
      %2412 = vmatprep.subr.mxu0 0.0
      %2413 = vmatpush1.msra.mxu0 %v1792
      %2414 = vmatprep.subr.mxu0 0.0
      %2415 = vmatpush1.msra.mxu0 %v1793
      %2416 = vmatprep.subr.mxu0 0.0
      %2417 = vmatpush1.msra.mxu0 %v1794
      %2418 = vmatprep.subr.mxu0 0.0
      %2419 = vmatpush1.msra.mxu0 %v1795
      %2420 = vmatprep.subr.mxu0 0.0
      %2421 = vmatpush1.msra.mxu0 %v1796
      %2422 = vmatprep.mubr.f32.mxu0 %v1539
      %2423 = vmatmul.mubr.f32.gmra.mrb[0].mxu0 %v1500
      %v2424 = vpop.f32.mrb[0].mxu0
      %v2425 = vadd.f32 %v2355, %v2424
      %v2426 = vpop.f32.mrb[0].mxu0
      %2427 = vdwg.mxu0
      %2428 = vmatprep.subr.mxu0 0.0
      %2429 = vmatpush1.msra.mxu0 %v1797
      %2430 = vmatprep.subr.mxu0 0.0
      %2431 = vmatpush1.msra.mxu0 %v1798
      %2432 = vmatprep.subr.mxu0 0.0
      %2433 = vmatpush1.msra.mxu0 %v1799
      %2434 = vmatprep.subr.mxu0 0.0
      %2435 = vmatpush1.msra.mxu0 %v1800
      %2436 = vmatprep.subr.mxu0 0.0
      %2437 = vmatpush1.msra.mxu0 %v1801
      %2438 = vmatprep.subr.mxu0 0.0
      %2439 = vmatpush1.msra.mxu0 %v1802
      %2440 = vmatprep.subr.mxu0 0.0
      %2441 = vmatpush1.msra.mxu0 %v1803
      %2442 = vmatprep.subr.mxu0 0.0
      %2443 = vmatpush1.msra.mxu0 %v1804
      %2444 = vmatprep.subr.mxu0 0.0
      %2445 = vmatpush1.msra.mxu0 %v1805
      %2446 = vmatprep.subr.mxu0 0.0
      %2447 = vmatpush1.msra.mxu0 %v1806
      %2448 = vmatprep.subr.mxu0 0.0
      %2449 = vmatpush1.msra.mxu0 %v1807
      %2450 = vmatprep.subr.mxu0 0.0
      %2451 = vmatpush1.msra.mxu0 %v1808
      %2452 = vmatprep.subr.mxu0 0.0
      %2453 = vmatpush1.msra.mxu0 %v1809
      %2454 = vmatprep.subr.mxu0 0.0
      %2455 = vmatpush1.msra.mxu0 %v1810
      %2456 = vmatprep.subr.mxu0 0.0
      %2457 = vmatpush1.msra.mxu0 %v1811
      %2458 = vmatprep.subr.mxu0 0.0
      %2459 = vmatpush1.msra.mxu0 %v1812
      %2460 = vmatprep.subr.mxu0 0.0
      %2461 = vmatpush1.msra.mxu0 %v1813
      %2462 = vmatprep.subr.mxu0 0.0
      %2463 = vmatpush1.msra.mxu0 %v1814
      %2464 = vmatprep.subr.mxu0 0.0
      %2465 = vmatpush1.msra.mxu0 %v1815
      %2466 = vmatprep.subr.mxu0 0.0
      %2467 = vmatpush1.msra.mxu0 %v1816
      %2468 = vmatprep.subr.mxu0 0.0
      %2469 = vmatpush1.msra.mxu0 %v1817
      %2470 = vmatprep.subr.mxu0 0.0
      %2471 = vmatpush1.msra.mxu0 %v1818
      %2472 = vmatprep.subr.mxu0 0.0
      %2473 = vmatpush1.msra.mxu0 %v1819
      %2474 = vmatprep.subr.mxu0 0.0
      %2475 = vmatpush1.msra.mxu0 %v1820
      %2476 = vmatprep.subr.mxu0 0.0
      %2477 = vmatpush1.msra.mxu0 %v1821
      %2478 = vmatprep.subr.mxu0 0.0
      %2479 = vmatpush1.msra.mxu0 %v1822
      %2480 = vmatprep.subr.mxu0 0.0
      %2481 = vmatpush1.msra.mxu0 %v1823
      %2482 = vmatprep.subr.mxu0 0.0
      %2483 = vmatpush1.msra.mxu0 %v1824
      %2484 = vmatprep.subr.mxu0 0.0
      %2485 = vmatpush1.msra.mxu0 %v1825
      %2486 = vmatprep.subr.mxu0 0.0
      %2487 = vmatpush1.msra.mxu0 %v1826
      %2488 = vmatprep.subr.mxu0 0.0
      %2489 = vmatpush1.msra.mxu0 %v1827
      %2490 = vmatprep.subr.mxu0 0.0
      %2491 = vmatpush1.msra.mxu0 %v1828
      %2492 = vmatprep.mubr.f32.mxu0 %v1540
      %2493 = vmatmul.mubr.f32.gmra.mrb[0].mxu0 %v1515
      %v2494 = vpop.f32.mrb[0].mxu0
      %v2495 = vadd.f32 %v2425, %v2494
      %v2496 = vpop.f32.mrb[0].mxu0
      %2497 = vdwg.mxu0
      %2498 = vmatprep.subr.mxu0 0.0
      %2499 = vmatpush1.msra.mxu0 %v1829
      %2500 = vmatprep.subr.mxu0 0.0
      %2501 = vmatpush1.msra.mxu0 %v1830
      %2502 = vmatprep.subr.mxu0 0.0
      %2503 = vmatpush1.msra.mxu0 %v1831
      %2504 = vmatprep.subr.mxu0 0.0
      %2505 = vmatpush1.msra.mxu0 %v1832
      %2506 = vmatprep.subr.mxu0 0.0
      %2507 = vmatpush1.msra.mxu0 %v1833
      %2508 = vmatprep.subr.mxu0 0.0
      %2509 = vmatpush1.msra.mxu0 %v1834
      %2510 = vmatprep.subr.mxu0 0.0
      %2511 = vmatpush1.msra.mxu0 %v1835
      %2512 = vmatprep.subr.mxu0 0.0
      %2513 = vmatpush1.msra.mxu0 %v1836
      %2514 = vmatprep.subr.mxu0 0.0
      %2515 = vmatpush1.msra.mxu0 %v1837
      %2516 = vmatprep.subr.mxu0 0.0
      %2517 = vmatpush1.msra.mxu0 %v1838
      %2518 = vmatprep.subr.mxu0 0.0
      %2519 = vmatpush1.msra.mxu0 %v1839
      %2520 = vmatprep.subr.mxu0 0.0
      %2521 = vmatpush1.msra.mxu0 %v1840
      %2522 = vmatprep.subr.mxu0 0.0
      %2523 = vmatpush1.msra.mxu0 %v1841
      %2524 = vmatprep.subr.mxu0 0.0
      %2525 = vmatpush1.msra.mxu0 %v1842
      %2526 = vmatprep.subr.mxu0 0.0
      %2527 = vmatpush1.msra.mxu0 %v1843
      %2528 = vmatprep.subr.mxu0 0.0
      %2529 = vmatpush1.msra.mxu0 %v1844
      %2530 = vmatprep.subr.mxu0 0.0
      %2531 = vmatpush1.msra.mxu0 %v1845
      %2532 = vmatprep.subr.mxu0 0.0
      %2533 = vmatpush1.msra.mxu0 %v1846
      %2534 = vmatprep.subr.mxu0 0.0
      %2535 = vmatpush1.msra.mxu0 %v1847
      %2536 = vmatprep.subr.mxu0 0.0
      %2537 = vmatpush1.msra.mxu0 %v1848
      %2538 = vmatprep.subr.mxu0 0.0
      %2539 = vmatpush1.msra.mxu0 %v1849
      %2540 = vmatprep.subr.mxu0 0.0
      %2541 = vmatpush1.msra.mxu0 %v1850
      %2542 = vmatprep.subr.mxu0 0.0
      %2543 = vmatpush1.msra.mxu0 %v1851
      %2544 = vmatprep.subr.mxu0 0.0
      %2545 = vmatpush1.msra.mxu0 %v1852
      %2546 = vmatprep.subr.mxu0 0.0
      %2547 = vmatpush1.msra.mxu0 %v1853
      %2548 = vmatprep.subr.mxu0 0.0
      %2549 = vmatpush1.msra.mxu0 %v1854
      %2550 = vmatprep.subr.mxu0 0.0
      %2551 = vmatpush1.msra.mxu0 %v1855
      %2552 = vmatprep.subr.mxu0 0.0
      %2553 = vmatpush1.msra.mxu0 %v1856
      %2554 = vmatprep.subr.mxu0 0.0
      %2555 = vmatpush1.msra.mxu0 %v1857
      %2556 = vmatprep.subr.mxu0 0.0
      %2557 = vmatpush1.msra.mxu0 %v1858
      %2558 = vmatprep.subr.mxu0 0.0
      %2559 = vmatpush1.msra.mxu0 %v1859
      %2560 = vmatprep.subr.mxu0 0.0
      %2561 = vmatpush1.msra.mxu0 %v1860
      %2562 = vmatprep.mubr.f32.mxu0 %v1530
      %2563 = vmatmul.mubr.f32.gmra.mrb[0].mxu0 %v1529
      %v2564 = vpop.f32.mrb[0].mxu0
      %v2565 = vadd.f32 %v2495, %v2564
      %v2566 = vpop.f32.mrb[0].mxu0
      %2567 = vdwg.mxu0
      %2568 = vmatprep.subr.mxu0 0.0
      %2569 = vmatpush1.msra.mxu0 %v1861
      %2570 = vmatprep.subr.mxu0 0.0
      %2571 = vmatpush1.msra.mxu0 %v1862
      %2572 = vmatprep.subr.mxu0 0.0
      %2573 = vmatpush1.msra.mxu0 %v1863
      %2574 = vmatprep.subr.mxu0 0.0
      %2575 = vmatpush1.msra.mxu0 %v1864
      %2576 = vmatprep.subr.mxu0 0.0
      %2577 = vmatpush1.msra.mxu0 0.0
      %2578 = vmatprep.subr.mxu0 0.0
      %2579 = vmatpush1.msra.mxu0 0.0
      %2580 = vmatprep.subr.mxu0 0.0
      %2581 = vmatpush1.msra.mxu0 0.0
      %2582 = vmatprep.subr.mxu0 0.0
      %2583 = vmatpush1.msra.mxu0 0.0
      %2584 = vmatprep.subr.mxu0 0.0
      %2585 = vmatpush1.msra.mxu0 0.0
      %2586 = vmatprep.subr.mxu0 0.0
      %2587 = vmatpush1.msra.mxu0 0.0
      %2588 = vmatprep.subr.mxu0 0.0
      %2589 = vmatpush1.msra.mxu0 0.0
      %2590 = vmatprep.subr.mxu0 0.0
      %2591 = vmatpush1.msra.mxu0 0.0
      %2592 = vmatprep.subr.mxu0 0.0
      %2593 = vmatpush1.msra.mxu0 0.0
      %2594 = vmatprep.subr.mxu0 0.0
      %2595 = vmatpush1.msra.mxu0 0.0
      %2596 = vmatprep.subr.mxu0 0.0
      %2597 = vmatpush1.msra.mxu0 0.0
      %2598 = vmatprep.subr.mxu0 0.0
      %2599 = vmatpush1.msra.mxu0 0.0
      %2600 = vmatprep.subr.mxu0 0.0
      %2601 = vmatpush1.msra.mxu0 0.0
      %2602 = vmatprep.subr.mxu0 0.0
      %2603 = vmatpush1.msra.mxu0 0.0
      %2604 = vmatprep.subr.mxu0 0.0
      %2605 = vmatpush1.msra.mxu0 0.0
      %2606 = vmatprep.subr.mxu0 0.0
      %2607 = vmatpush1.msra.mxu0 0.0
      %2608 = vmatprep.subr.mxu0 0.0
      %2609 = vmatpush1.msra.mxu0 0.0
      %2610 = vmatprep.subr.mxu0 0.0
      %2611 = vmatpush1.msra.mxu0 0.0
      %2612 = vmatprep.subr.mxu0 0.0
      %2613 = vmatpush1.msra.mxu0 0.0
      %2614 = vmatprep.subr.mxu0 0.0
      %2615 = vmatpush1.msra.mxu0 0.0
      %2616 = vmatprep.subr.mxu0 0.0
      %2617 = vmatpush1.msra.mxu0 0.0
      %2618 = vmatprep.subr.mxu0 0.0
      %2619 = vmatpush1.msra.mxu0 0.0
      %2620 = vmatprep.subr.mxu0 0.0
      %2621 = vmatpush1.msra.mxu0 0.0
      %2622 = vmatprep.subr.mxu0 0.0
      %2623 = vmatpush1.msra.mxu0 0.0
      %2624 = vmatprep.subr.mxu0 0.0
      %2625 = vmatpush1.msra.mxu0 0.0
      %2626 = vmatprep.subr.mxu0 0.0
      %2627 = vmatpush1.msra.mxu0 0.0
      %2628 = vmatprep.subr.mxu0 0.0
      %2629 = vmatpush1.msra.mxu0 0.0
      %2630 = vmatprep.subr.mxu0 0.0
      %2631 = vmatpush1.msra.mxu0 0.0
      %2632 = vmatprep.mubr.f32.mxu0 0.0
      %2633 = vmatmul.mubr.f32.gmra.mrb[0].mxu0 %v1866
      %v2634 = vpop.f32.mrb[0].mxu0
      %v2635 = vadd.f32 %v2565, %v2634
      %v2636 = vpop.f32.mrb[0].mxu0
      %2637 = vdwg.mxu0
      %v2638 = vmax.f32 %v2635, 0.0
      %v2639 = vld [vmem:[%s7] sm:$0xff]
      %v2640 = vld [vmem:[%s7 + $0x8] sm:$0xff]
      %v2641 = vld [vmem:[%s7 + $0x10] sm:$0xff]
      %v2642 = vld [vmem:[%s7 + $0x18] sm:$0xff]
      %v2643 = vld [vmem:[%s8] sm:$0x1]
      %v2645 = vsel %vm468, %v2638, 0
      %2647 = vmatprep.subr.mxu0 0.0
      %2648 = vmatpush1.msra.mxu0 %v2639
      %2649 = vmatprep.subr.mxu0 0.0
      %2650 = vmatpush1.msra.mxu0 %v2640
      %2651 = vmatprep.subr.mxu0 0.0
      %2652 = vmatpush1.msra.mxu0 %v2641
      %2653 = vmatprep.subr.mxu0 0.0
      %2654 = vmatpush1.msra.mxu0 %v2642
      %2655 = vmatprep.subr.mxu0 0.0
      %2656 = vmatpush1.msra.mxu0 0.0
      %2657 = vmatprep.subr.mxu0 0.0
      %2658 = vmatpush1.msra.mxu0 0.0
      %2659 = vmatprep.subr.mxu0 0.0
      %2660 = vmatpush1.msra.mxu0 0.0
      %2661 = vmatprep.subr.mxu0 0.0
      %2662 = vmatpush1.msra.mxu0 0.0
      %2663 = vmatprep.subr.mxu0 0.0
      %2664 = vmatpush1.msra.mxu0 0.0
      %2665 = vmatprep.subr.mxu0 0.0
      %2666 = vmatpush1.msra.mxu0 0.0
      %2667 = vmatprep.subr.mxu0 0.0
      %2668 = vmatpush1.msra.mxu0 0.0
      %2669 = vmatprep.subr.mxu0 0.0
      %2670 = vmatpush1.msra.mxu0 0.0
      %2671 = vmatprep.subr.mxu0 0.0
      %2672 = vmatpush1.msra.mxu0 0.0
      %2673 = vmatprep.subr.mxu0 0.0
      %2674 = vmatpush1.msra.mxu0 0.0
      %2675 = vmatprep.subr.mxu0 0.0
      %2676 = vmatpush1.msra.mxu0 0.0
      %2677 = vmatprep.subr.mxu0 0.0
      %2678 = vmatpush1.msra.mxu0 0.0
      %2679 = vmatprep.subr.mxu0 0.0
      %2680 = vmatpush1.msra.mxu0 0.0
      %2681 = vmatprep.subr.mxu0 0.0
      %2682 = vmatpush1.msra.mxu0 0.0
      %2683 = vmatprep.subr.mxu0 0.0
      %2684 = vmatpush1.msra.mxu0 0.0
      %2685 = vmatprep.subr.mxu0 0.0
      %2686 = vmatpush1.msra.mxu0 0.0
      %2687 = vmatprep.subr.mxu0 0.0
      %2688 = vmatpush1.msra.mxu0 0.0
      %2689 = vmatprep.subr.mxu0 0.0
      %2690 = vmatpush1.msra.mxu0 0.0
      %2691 = vmatprep.subr.mxu0 0.0
      %2692 = vmatpush1.msra.mxu0 0.0
      %2693 = vmatprep.subr.mxu0 0.0
      %2694 = vmatpush1.msra.mxu0 0.0
      %2695 = vmatprep.subr.mxu0 0.0
      %2696 = vmatpush1.msra.mxu0 0.0
      %2697 = vmatprep.subr.mxu0 0.0
      %2698 = vmatpush1.msra.mxu0 0.0
      %2699 = vmatprep.subr.mxu0 0.0
      %2700 = vmatpush1.msra.mxu0 0.0
      %2701 = vmatprep.subr.mxu0 0.0
      %2702 = vmatpush1.msra.mxu0 0.0
      %2703 = vmatprep.subr.mxu0 0.0
      %2704 = vmatpush1.msra.mxu0 0.0
      %2705 = vmatprep.subr.mxu0 0.0
      %2706 = vmatpush1.msra.mxu0 0.0
      %2707 = vmatprep.subr.mxu0 0.0
      %2708 = vmatpush1.msra.mxu0 0.0
      %2709 = vmatprep.subr.mxu0 0.0
      %2710 = vmatpush1.msra.mxu0 0.0
      %2711 = vmatprep.mubr.f32.mxu0 0.0
      %2712 = vmatmul.mubr.f32.gmra.mrb[0].mxu0 %v2645
      %v2713 = vpop.f32.mrb[0].mxu0
      %v2714 = vadd.f32 %v2643, %v2713
      %v2715 = vpop.f32.mrb[0].mxu0
      %2716 = vdwg.mxu0
      %v2717 = vmax.f32 %v2714, 0.0
      %v2718 = vld [vmem:[%s9] sm:$0xff]
      %v2719 = vld [vmem:[%s9 + $0x8] sm:$0xff]
      %v2720 = vld [vmem:[%s9 + $0x10] sm:$0xff]
      %v2721 = vld [vmem:[%s9 + $0x18] sm:$0xff]
      %v2722 = vld [vmem:[#allocation2] sm:$0x1]
      %v2724 = vsel %vm468, %v2717, 0
      %2726 = vmatprep.subr.mxu0 0.0
      %2727 = vmatpush1.msra.mxu0 %v2718
      %2728 = vmatprep.subr.mxu0 0.0
      %2729 = vmatpush1.msra.mxu0 %v2719
      %2730 = vmatprep.subr.mxu0 0.0
      %2731 = vmatpush1.msra.mxu0 %v2720
      %2732 = vmatprep.subr.mxu0 0.0
      %2733 = vmatpush1.msra.mxu0 %v2721
      %2734 = vmatprep.subr.mxu0 0.0
      %2735 = vmatpush1.msra.mxu0 0.0
      %2736 = vmatprep.subr.mxu0 0.0
      %2737 = vmatpush1.msra.mxu0 0.0
      %2738 = vmatprep.subr.mxu0 0.0
      %2739 = vmatpush1.msra.mxu0 0.0
      %2740 = vmatprep.subr.mxu0 0.0
      %2741 = vmatpush1.msra.mxu0 0.0
      %2742 = vmatprep.subr.mxu0 0.0
      %2743 = vmatpush1.msra.mxu0 0.0
      %2744 = vmatprep.subr.mxu0 0.0
      %2745 = vmatpush1.msra.mxu0 0.0
      %2746 = vmatprep.subr.mxu0 0.0
      %2747 = vmatpush1.msra.mxu0 0.0
      %2748 = vmatprep.subr.mxu0 0.0
      %2749 = vmatpush1.msra.mxu0 0.0
      %2750 = vmatprep.subr.mxu0 0.0
      %2751 = vmatpush1.msra.mxu0 0.0
      %2752 = vmatprep.subr.mxu0 0.0
      %2753 = vmatpush1.msra.mxu0 0.0
      %2754 = vmatprep.subr.mxu0 0.0
      %2755 = vmatpush1.msra.mxu0 0.0
      %2756 = vmatprep.subr.mxu0 0.0
      %2757 = vmatpush1.msra.mxu0 0.0
      %2758 = vmatprep.subr.mxu0 0.0
      %2759 = vmatpush1.msra.mxu0 0.0
      %2760 = vmatprep.subr.mxu0 0.0
      %2761 = vmatpush1.msra.mxu0 0.0
      %2762 = vmatprep.subr.mxu0 0.0
      %2763 = vmatpush1.msra.mxu0 0.0
      %2764 = vmatprep.subr.mxu0 0.0
      %2765 = vmatpush1.msra.mxu0 0.0
      %2766 = vmatprep.subr.mxu0 0.0
      %2767 = vmatpush1.msra.mxu0 0.0
      %2768 = vmatprep.subr.mxu0 0.0
      %2769 = vmatpush1.msra.mxu0 0.0
      %2770 = vmatprep.subr.mxu0 0.0
      %2771 = vmatpush1.msra.mxu0 0.0
      %2772 = vmatprep.subr.mxu0 0.0
      %2773 = vmatpush1.msra.mxu0 0.0
      %2774 = vmatprep.subr.mxu0 0.0
      %2775 = vmatpush1.msra.mxu0 0.0
      %2776 = vmatprep.subr.mxu0 0.0
      %2777 = vmatpush1.msra.mxu0 0.0
      %2778 = vmatprep.subr.mxu0 0.0
      %2779 = vmatpush1.msra.mxu0 0.0
      %2780 = vmatprep.subr.mxu0 0.0
      %2781 = vmatpush1.msra.mxu0 0.0
      %2782 = vmatprep.subr.mxu0 0.0
      %2783 = vmatpush1.msra.mxu0 0.0
      %2784 = vmatprep.subr.mxu0 0.0
      %2785 = vmatpush1.msra.mxu0 0.0
      %2786 = vmatprep.subr.mxu0 0.0
      %2787 = vmatpush1.msra.mxu0 0.0
      %2788 = vmatprep.subr.mxu0 0.0
      %2789 = vmatpush1.msra.mxu0 0.0
      %2790 = vmatprep.mubr.f32.mxu0 0.0
      %2791 = vmatmul.mubr.f32.gmra.mrb[0].mxu0 %v2724
      %v2792 = vpop.f32.mrb[0].mxu0
      %v2793 = vadd.f32 %v2722, %v2792
      %v2794 = vpop.f32.mrb[0].mxu0
      %2795 = vdwg.mxu0
      %vm2796 = vcmask 0
      %2797 = vst.msk [vmem:[%s398] sm:$0x1] %vm2796, %v2793
      %p2798 = scmp.lt.s32.totalorder %s24, 1
      %s2799 = scalar_select %p2798, %s24, 1
      %s2800 = scalar_lea.vmem %s11, %s2799
      // Predicated region
      $region65: #{pallas_forward.1} parent=63 // pred_check
        %p2801 = pneg %p283
      $region66: #{pallas_forward.1} parent=63 // pred_check_branch
        %2803 = sbr.rel (%p2801) target = $region68
      $region67: #{pallas_forward.1} parent=63 // pred_region
        _
      $region68: #{pallas_forward.1} parent=63 // pred_fallthru
        _
    $region64: #{pallas_forward.1} parent=5 // pred_fallthru
      _
    %p2804 = scmp.le.s32.totalorder 2, %s19
    // Predicated region
    $region69: #{pallas_forward.1} parent=5 // pred_check
      %p2805 = pneg %p2804
    $region70: #{pallas_forward.1} parent=5 // pred_check_branch
      %2807 = sbr.rel (%p2805) target = $region72
    $region71: #{pallas_forward.1} parent=5 // pred_region
      %s2808 = ssub.s32 %s19, 2
      // Predicated region
      $region73: #{pallas_forward.1} parent=71 // pred_check
        %p2809 = pneg %p289
      $region74: #{pallas_forward.1} parent=71 // pred_check_branch
        %2811 = sbr.rel (%p2809) target = $region76
      $region75: #{pallas_forward.1} parent=71 // pred_region
        %p2812 = scmp.lt.s32.totalorder %s25, 1
        %s2813 = scalar_select %p2812, %s25, 1
        %s2814 = scalar_lea.vmem %s11, %s2813
      $region76: #{pallas_forward.1} parent=71 // pred_fallthru
        _
    $region72: #{pallas_forward.1} parent=5 // pred_fallthru
      _
  $region6: #{pallas_forward.1} parent=0 // loop_footer
    %s23 = sadd.s32 1, %s19
  $region7: #{pallas_forward.1} parent=0 // loop_footer_branch
    %18 = sbr.rel target = $region3
  $region8: #{pallas_forward.1} parent=0 // loop_exit
    _

</llo_original>
